<compile_context>
chip_gen: v7x
topology: tpu7x:2x2x1
jax: 0.10.0
libtpu: 0.0.40
codegen_flags: <defaults>
</compile_context>

<pallas_src>
import functools

import jax
import jax.numpy as jnp
import numpy as np
from jax.experimental import pallas as pl
from jax.experimental.pallas import tpu as pltpu

EPS = 1e-5                      # nn.BatchNorm2d default eps
MXU_DTYPE = jnp.bfloat16        # matmul operand dtype (f32 accumulation)
ACT_DTYPE = jnp.bfloat16        # inter-kernel activation storage dtype
VMEM_LIMIT = 32 * 1024 * 1024   # realistic cap; fits v7x (64 MiB physical)


# --------------------------------------------------------------------------
# Pallas kernels
# --------------------------------------------------------------------------
def _im2col_3x3(xpad, H, W, C):
    """(H+2, W+2, C) zero-halo tile -> (H*W, 9*C) patch matrix (one big K)."""
    cols = [xpad[dy:dy + H, dx:dx + W, :].reshape(H * W, C)
            for dy in range(3) for dx in range(3)]
    return jnp.concatenate(cols, axis=-1)


def _conv1_stats_kernel(x_ref, w_ref, z_ref, sum_ref, ssq_ref, scr_ref,
                        *, H, W, C):
    """conv1 (3x3, pad=1) as ONE im2col matmul + BN1 partial statistics.

    x_ref  : (C, H*W)      channel-major input block (free reshape of NCHW), f32
    w_ref  : (9*C, C)      conv1 weights, tap-major (bf16)
    z_ref  : (H, W, C)     pre-BN conv output (bf16)
    sum_ref/ssq_ref : (1, C) per-image sum / sum-of-squares of z (f32)
    scr_ref: (H+2, W+2, C) f32 VMEM scratch used as the zero-halo padded tile
    (conv bias omitted: cancelled exactly by the training-mode BN that follows)
    """
    # NCHW -> NHWC inside VMEM (XLU transpose); no wrapper transpose / pad.
    xt = jnp.transpose(x_ref[...])                         # (H*W, C) f32
    scr_ref[...] = jnp.zeros_like(scr_ref)                 # halo stays exactly 0
    scr_ref[1:H + 1, 1:W + 1, :] = xt.reshape(H, W, C)     # interior-only write
    patches = _im2col_3x3(scr_ref[...].astype(MXU_DTYPE), H, W, C)   # (H*W, 9C)
    z = jnp.dot(patches, w_ref[...],
                preferred_element_type=jnp.float32)        # single MXU dot
    z_ref[...] = z.reshape(H, W, C).astype(z_ref.dtype)
    sum_ref[...] = jnp.sum(z, axis=0, keepdims=True)
    ssq_ref[...] = jnp.sum(z * z, axis=0, keepdims=True)


def _bnrelu_conv2_stats_kernel(z_ref, s_ref, t_ref, w_ref,
                               o_ref, sum_ref, ssq_ref, scr_ref,
                               *, H, W, C):
    """Fused BN1-affine + ReLU + conv2 (one im2col matmul) + BN2 partial stats.

    z_ref  : (H, W, C)     conv1 pre-BN output (bf16)
    s_ref/t_ref : (1,1,C)  folded BN1 scale / shift (f32)
    w_ref  : (9*C, C)      conv2 weights (bf16)
    o_ref  : (C, H*W)      channel-major pre-BN conv2 output (bf16)
    scr_ref: (H+2, W+2, C) f32 zero-halo scratch (no iota mask needed: the
                           halo is never written, so it stays exactly zero)
    """
    y = jnp.maximum(z_ref[...].astype(jnp.float32) * s_ref[...] + t_ref[...],
                    0.0)                                   # BN1 affine + ReLU, f32
    scr_ref[...] = jnp.zeros_like(scr_ref)
    scr_ref[1:H + 1, 1:W + 1, :] = y
    patches = _im2col_3x3(scr_ref[...].astype(MXU_DTYPE), H, W, C)   # (H*W, 9C)
    o = jnp.dot(patches, w_ref[...],
                preferred_element_type=jnp.float32)        # single MXU dot
    sum_ref[...] = jnp.sum(o, axis=0, keepdims=True)
    ssq_ref[...] = jnp.sum(o * o, axis=0, keepdims=True)
    # channel-major layout so the residual epilogue stays in NCHW (no wrapper
    # transposes); XLU transpose is off the VALU/MXU critical slots.
    o_ref[...] = jnp.transpose(o).astype(o_ref.dtype)      # (C, H*W)


def _bn_scale_residual_kernel(o_ref, s_ref, t_ref, x_ref, out_ref):
    """out = BN2(o) * res_scale + x, channel-major (C, H*W) blocks (NCHW layout).
    res_scale folded into s/t by the wrapper."""
    out_ref[...] = (o_ref[...].astype(jnp.float32) * s_ref[...] + t_ref[...]
                    + x_ref[...])


# --------------------------------------------------------------------------
# Pallas wrappers
# --------------------------------------------------------------------------
def conv1_with_stats(x2d, wmat, H, W):
    N, C, HW = x2d.shape
    kernel = functools.partial(_conv1_stats_kernel, H=H, W=W, C=C)
    return pl.pallas_call(
        kernel,
        out_shape=(jax.ShapeDtypeStruct((N, H, W, C), ACT_DTYPE),
                   jax.ShapeDtypeStruct((N, 1, C), jnp.float32),
                   jax.ShapeDtypeStruct((N, 1, C), jnp.float32)),
        grid=(N,),
        in_specs=[
            pl.BlockSpec((None, C, HW), lambda n: (n, 0, 0)),
            pl.BlockSpec((9 * C, C), lambda n: (0, 0)),     # grid-invariant block
        ],
        out_specs=(
            pl.BlockSpec((None, H, W, C), lambda n: (n, 0, 0, 0)),
            pl.BlockSpec((None, 1, C), lambda n: (n, 0, 0)),
            pl.BlockSpec((None, 1, C), lambda n: (n, 0, 0)),
        ),
        scratch_shapes=[pltpu.VMEM((H + 2, W + 2, C), jnp.float32)],
        compiler_params=pltpu.CompilerParams(
            dimension_semantics=("parallel",),
            vmem_limit_bytes=VMEM_LIMIT),
    )(x2d, wmat)


def bnrelu_conv2_with_stats(z, scale1, shift1, wmat):
    N, H, W, C = z.shape
    kernel = functools.partial(_bnrelu_conv2_stats_kernel, H=H, W=W, C=C)
    return pl.pallas_call(
        kernel,
        out_shape=(jax.ShapeDtypeStruct((N, C, H * W), ACT_DTYPE),
                   jax.ShapeDtypeStruct((N, 1, C), jnp.float32),
                   jax.ShapeDtypeStruct((N, 1, C), jnp.float32)),
        grid=(N,),
        in_specs=[
            pl.BlockSpec((None, H, W, C), lambda n: (n, 0, 0, 0)),
            pl.BlockSpec((1, 1, C), lambda n: (0, 0, 0)),
            pl.BlockSpec((1, 1, C), lambda n: (0, 0, 0)),
            pl.BlockSpec((9 * C, C), lambda n: (0, 0)),
        ],
        out_specs=(
            pl.BlockSpec((None, C, H * W), lambda n: (n, 0, 0)),
            pl.BlockSpec((None, 1, C), lambda n: (n, 0, 0)),
            pl.BlockSpec((None, 1, C), lambda n: (n, 0, 0)),
        ),
        scratch_shapes=[pltpu.VMEM((H + 2, W + 2, C), jnp.float32)],
        compiler_params=pltpu.CompilerParams(
            dimension_semantics=("parallel",),
            vmem_limit_bytes=VMEM_LIMIT),
    )(z, scale1, shift1, wmat)


def bn_scale_residual(o2, scale2, shift2, x2d):
    N, C, HW = o2.shape
    return pl.pallas_call(
        _bn_scale_residual_kernel,
        out_shape=jax.ShapeDtypeStruct((N, C, HW), jnp.float32),
        grid=(N,),
        in_specs=[
            pl.BlockSpec((None, C, HW), lambda n: (n, 0, 0)),
            pl.BlockSpec((C, 1), lambda n: (0, 0)),
            pl.BlockSpec((C, 1), lambda n: (0, 0)),
            pl.BlockSpec((None, C, HW), lambda n: (n, 0, 0)),
        ],
        out_specs=pl.BlockSpec((None, C, HW), lambda n: (n, 0, 0)),
        compiler_params=pltpu.CompilerParams(
            dimension_semantics=("parallel",)),
    )(o2, scale2, shift2, x2d)


# --------------------------------------------------------------------------
# Forward pass (NCHW in / NCHW out, matching the PyTorch module)
# --------------------------------------------------------------------------
def _conv_weight_to_matmul(w):
    """PyTorch Conv2d weight (Cout, Cin, 3, 3) -> (9*Cin, Cout), tap-major, bf16."""
    cout, cin = w.shape[0], w.shape[1]
    return jnp.transpose(w, (2, 3, 1, 0)).reshape(9 * cin, cout).astype(MXU_DTYPE)


def _bn_affine_from_stats(sums, ssqs, gamma, beta, count):
    """Fold training-mode BatchNorm (batch stats, biased var) into scale/shift."""
    mean = jnp.sum(sums, axis=0).reshape(-1) / count
    var = jnp.sum(ssqs, axis=0).reshape(-1) / count - mean * mean
    var = jnp.maximum(var, 0.0)     # guard E[z^2]-mean^2 cancellation -> no NaN
    scale = gamma * jax.lax.rsqrt(var + EPS)
    shift = beta - mean * scale
    return scale, shift


def residual_block_forward(x_nchw, params):
    x = x_nchw.astype(jnp.float32)
    N, C, H, W = x.shape
    x2d = x.reshape(N, C, H * W)          # free reshape: channel-major, lane-dense
    count = N * H * W

    w1 = _conv_weight_to_matmul(params["w1"])
    w2 = _conv_weight_to_matmul(params["w2"])

    # conv1 (in-kernel halo + NCHW->NHWC transpose) + BN1 partial statistics
    z, s1, q1 = conv1_with_stats(x2d, w1, H, W)
    scale1, shift1 = _bn_affine_from_stats(s1, q1, params["gamma1"],
                                           params["beta1"], count)

    # fused BN1-affine + ReLU + conv2 (in-kernel halo) + BN2 partial stats
    o2, s2, q2 = bnrelu_conv2_with_stats(z, scale1.reshape(1, 1, C),
                                         shift1.reshape(1, 1, C), w2)
    scale2, shift2 = _bn_affine_from_stats(s2, q2, params["gamma2"],
                                           params["beta2"], count)
    rs = jnp.float32(params["res_scale"])       # fold res_scale into BN2 affine
    scale2 = scale2 * rs
    shift2 = shift2 * rs

    # BN2-affine * res_scale + residual add, channel-major (NCHW) layout
    out2d = bn_scale_residual(o2, scale2.reshape(C, 1),
                              shift2.reshape(C, 1), x2d)
    return out2d.reshape(N, C, H, W)            # free reshape back to NCHW


# --------------------------------------------------------------------------
# Pure-JAX f32 reference (for in-script verification)
# --------------------------------------------------------------------------
def residual_block_ref(x, p):
    def conv(a, w):
        return jax.lax.conv_general_dilated(
            a, w, window_strides=(1, 1), padding="SAME",
            dimension_numbers=("NCHW", "OIHW", "NCHW"),
            precision=jax.lax.Precision.HIGHEST)

    def bn(a, gamma, beta):
        mean = jnp.mean(a, axis=(0, 2, 3), keepdims=True)
        var = jnp.mean(jnp.square(a - mean), axis=(0, 2, 3), keepdims=True)
        return (gamma.reshape(1, -1, 1, 1) * (a - mean) *
                jax.lax.rsqrt(var + EPS) + beta.reshape(1, -1, 1, 1))

    z = bn(conv(x, p["w1"]), p["gamma1"], p["beta1"])
    y = jnp.maximum(z, 0.0)
    o = bn(conv(y, p["w2"]), p["gamma2"], p["beta2"])
    return o * p["res_scale"] + x


# --------------------------------------------------------------------------
# Deterministic parameters (synthetic weights, no checkpoint)
# --------------------------------------------------------------------------
def make_params(key, channels):
    ks = jax.random.split(key, 6)
    fan = np.sqrt(9.0 * channels)
    return dict(
        w1=jax.random.normal(ks[0], (channels, channels, 3, 3), jnp.float32) / fan,
        gamma1=1.0 + 0.1 * jax.random.normal(ks[1], (channels,), jnp.float32),
        beta1=0.01 * jax.random.normal(ks[2], (channels,), jnp.float32),
        w2=jax.random.normal(ks[3], (channels, channels, 3, 3), jnp.float32) / fan,
        gamma2=1.0 + 0.1 * jax.random.normal(ks[4], (channels,), jnp.float32),
        beta2=0.01 * jax.random.normal(ks[5], (channels,), jnp.float32),
        res_scale=1.0,
        # conv biases omitted: training-mode BatchNorm subtracts the batch mean
        # immediately after each conv, so the forward output is independent of
        # them.  (If eval-mode / running stats were ever used, biases would matter.)
    )


# --------------------------------------------------------------------------
if __name__ == "__main__":
    B, C, H, W = 2, 128, 16, 16          # C multiple of 128 -> lane-dense tiles

    key = jax.random.PRNGKey(0)
    kx, kp = jax.random.split(key)
    x = jax.random.normal(kx, (B, C, H, W), jnp.float32)          # NCHW input
    params = make_params(kp, C)

    fwd = jax.jit(functools.partial(residual_block_forward, params=params))
    out = fwd(x)
    jax.block_until_ready(out)

    assert out.shape == (B, C, H, W), out.shape
    assert bool(jnp.all(jnp.isfinite(out)))

    # verify against the pure-JAX f32 reference.  Tolerance covers bf16 MXU
    # operands AND bf16 inter-kernel activation storage (~1e-2 relative).
    ref = residual_block_ref(x, params)
    err = float(jnp.max(jnp.abs(out - ref)))
    ref_scale = float(jnp.max(jnp.abs(ref)))
    assert err <= 3e-2 * ref_scale + 1e-3, (err, ref_scale)

    print("KERNEL_OK")
</pallas_src>

<mosaic_0001>
module attributes {stable_mosaic.version = 11 : i64} {
  func.func @_conv1_stats_kernel(%arg0: i32, %arg1: memref<1x128x256xf32, #tpu.memory_space<vmem>>, %arg2: memref<1152x128xbf16, #tpu.memory_space<vmem>>, %arg3: memref<1x16x16x128xbf16, #tpu.memory_space<vmem>>, %arg4: memref<1x1x128xf32, #tpu.memory_space<vmem>>, %arg5: memref<1x1x128xf32, #tpu.memory_space<vmem>>, %arg6: memref<18x18x128xf32, #tpu.memory_space<vmem>>) attributes {dimension_semantics = [#tpu.dimension_semantics<parallel>], iteration_bounds = array<i64: 2>, scalar_prefetch = 0 : i64, scratch_operands = 1 : i64, tpu.core_type = #tpu.core_type<tc>, window_params = [{transform_indices = @transform_0, window_bounds = array<i64: 1, 128, 256>}, {pipeline_mode = #tpu.pipeline_mode<synchronous>, transform_indices = @transform_1, window_bounds = array<i64: 1152, 128>}, {transform_indices = @transform_2, window_bounds = array<i64: 1, 16, 16, 128>}, {transform_indices = @transform_3, window_bounds = array<i64: 1, 1, 128>}, {transform_indices = @transform_4, window_bounds = array<i64: 1, 1, 128>}]} {
    %c0 = arith.constant 0 : index
    %c0_0 = arith.constant 0 : index
    %c0_1 = arith.constant 0 : index
    %0 = vector.load %arg1[%c0, %c0_0, %c0_1] : memref<1x128x256xf32, #tpu.memory_space<vmem>>, vector<1x128x256xf32>
    %1 = vector.shape_cast %0 : vector<1x128x256xf32> to vector<128x256xf32>
    %2 = tpu.transpose %1, [1, 0] : vector<128x256xf32> -> vector<256x128xf32>
    %cst = arith.constant 0.000000e+00 : f32
    %3 = vector.broadcast %cst : f32 to vector<18x18x128xf32>
    %c0_2 = arith.constant 0 : index
    %c0_3 = arith.constant 0 : index
    %c0_4 = arith.constant 0 : index
    %4 = vector.load %arg6[%c0_2, %c0_3, %c0_4] : memref<18x18x128xf32, #tpu.memory_space<vmem>>, vector<18x18x128xf32>
    tpu.vector_store %arg6[%c0_2, %c0_3, %c0_4], %3 {strides = array<i32>} : memref<18x18x128xf32, #tpu.memory_space<vmem>>, vector<18x18x128xf32>,
    %5 = vector.shape_cast %2 : vector<256x128xf32> to vector<16x16x128xf32>
    %c1 = arith.constant 1 : index
    %c1_5 = arith.constant 1 : index
    %c0_6 = arith.constant 0 : index
    %6 = vector.load %arg6[%c1, %c1_5, %c0_6] : memref<18x18x128xf32, #tpu.memory_space<vmem>>, vector<16x16x128xf32>
    tpu.vector_store %arg6[%c1, %c1_5, %c0_6], %5 {strides = array<i32>} : memref<18x18x128xf32, #tpu.memory_space<vmem>>, vector<16x16x128xf32>,
    %c0_7 = arith.constant 0 : index
    %c0_8 = arith.constant 0 : index
    %c0_9 = arith.constant 0 : index
    %7 = vector.load %arg6[%c0_7, %c0_8, %c0_9] : memref<18x18x128xf32, #tpu.memory_space<vmem>>, vector<18x18x128xf32>
    %8 = arith.truncf %7 : vector<18x18x128xf32> to vector<18x18x128xbf16>
    %9 = vector.extract_strided_slice %8 {offsets = [0, 0, 0], sizes = [16, 16, 128], strides = [1, 1, 1]} : vector<18x18x128xbf16> to vector<16x16x128xbf16>
    %10 = vector.shape_cast %9 : vector<16x16x128xbf16> to vector<256x128xbf16>
    %11 = vector.extract_strided_slice %8 {offsets = [0, 1, 0], sizes = [16, 16, 128], strides = [1, 1, 1]} : vector<18x18x128xbf16> to vector<16x16x128xbf16>
    %12 = vector.shape_cast %11 : vector<16x16x128xbf16> to vector<256x128xbf16>
    %13 = vector.extract_strided_slice %8 {offsets = [0, 2, 0], sizes = [16, 16, 128], strides = [1, 1, 1]} : vector<18x18x128xbf16> to vector<16x16x128xbf16>
    %14 = vector.shape_cast %13 : vector<16x16x128xbf16> to vector<256x128xbf16>
    %15 = vector.extract_strided_slice %8 {offsets = [1, 0, 0], sizes = [16, 16, 128], strides = [1, 1, 1]} : vector<18x18x128xbf16> to vector<16x16x128xbf16>
    %16 = vector.shape_cast %15 : vector<16x16x128xbf16> to vector<256x128xbf16>
    %17 = vector.extract_strided_slice %8 {offsets = [1, 1, 0], sizes = [16, 16, 128], strides = [1, 1, 1]} : vector<18x18x128xbf16> to vector<16x16x128xbf16>
    %18 = vector.shape_cast %17 : vector<16x16x128xbf16> to vector<256x128xbf16>
    %19 = vector.extract_strided_slice %8 {offsets = [1, 2, 0], sizes = [16, 16, 128], strides = [1, 1, 1]} : vector<18x18x128xbf16> to vector<16x16x128xbf16>
    %20 = vector.shape_cast %19 : vector<16x16x128xbf16> to vector<256x128xbf16>
    %21 = vector.extract_strided_slice %8 {offsets = [2, 0, 0], sizes = [16, 16, 128], strides = [1, 1, 1]} : vector<18x18x128xbf16> to vector<16x16x128xbf16>
    %22 = vector.shape_cast %21 : vector<16x16x128xbf16> to vector<256x128xbf16>
    %23 = vector.extract_strided_slice %8 {offsets = [2, 1, 0], sizes = [16, 16, 128], strides = [1, 1, 1]} : vector<18x18x128xbf16> to vector<16x16x128xbf16>
    %24 = vector.shape_cast %23 : vector<16x16x128xbf16> to vector<256x128xbf16>
    %25 = vector.extract_strided_slice %8 {offsets = [2, 2, 0], sizes = [16, 16, 128], strides = [1, 1, 1]} : vector<18x18x128xbf16> to vector<16x16x128xbf16>
    %26 = vector.shape_cast %25 : vector<16x16x128xbf16> to vector<256x128xbf16>
    %27 = tpu.concatenate %10, %12, %14, %16, %18, %20, %22, %24, %26 in 1 : vector<256x128xbf16>, vector<256x128xbf16>, vector<256x128xbf16>, vector<256x128xbf16>, vector<256x128xbf16>, vector<256x128xbf16>, vector<256x128xbf16>, vector<256x128xbf16>, vector<256x128xbf16> -> vector<256x1152xbf16>
    %c0_10 = arith.constant 0 : index
    %c0_11 = arith.constant 0 : index
    %28 = vector.load %arg2[%c0_10, %c0_11] : memref<1152x128xbf16, #tpu.memory_space<vmem>>, vector<1152x128xbf16>
    %cst_12 = arith.constant dense<0.000000e+00> : vector<256x128xf32>
    %29 = tpu.matmul %27, %28, %cst_12 {dimension_numbers = #tpu.dot_dimension_numbers<[1], [0], [0], [1], [0, 0, 1, 1], [], []>} : vector<256x1152xbf16>, vector<1152x128xbf16>, vector<256x128xf32> -> vector<256x128xf32>
    %30 = vector.shape_cast %29 : vector<256x128xf32> to vector<16x16x128xf32>
    %31 = arith.truncf %30 : vector<16x16x128xf32> to vector<16x16x128xbf16>
    %c0_13 = arith.constant 0 : index
    %c0_14 = arith.constant 0 : index
    %c0_15 = arith.constant 0 : index
    %c0_16 = arith.constant 0 : index
    %32 = vector.load %arg3[%c0_13, %c0_14, %c0_15, %c0_16] : memref<1x16x16x128xbf16, #tpu.memory_space<vmem>>, vector<1x16x16x128xbf16>
    %33 = vector.shape_cast %32 : vector<1x16x16x128xbf16> to vector<16x16x128xbf16>
    %34 = vector.shape_cast %31 : vector<16x16x128xbf16> to vector<1x16x16x128xbf16>
    tpu.vector_store %arg3[%c0_13, %c0_14, %c0_15, %c0_16], %34 {strides = array<i32>} : memref<1x16x16x128xbf16, #tpu.memory_space<vmem>>, vector<1x16x16x128xbf16>,
    %cst_17 = arith.constant dense<0.000000e+00> : vector<128xf32>
    %35 = vector.multi_reduction <add>, %29, %cst_17 [0] : vector<256x128xf32> to vector<128xf32>
    %36 = vector.shape_cast %35 : vector<128xf32> to vector<1x128xf32>
    %c0_18 = arith.constant 0 : index
    %c0_19 = arith.constant 0 : index
    %c0_20 = arith.constant 0 : index
    %37 = vector.load %arg4[%c0_18, %c0_19, %c0_20] : memref<1x1x128xf32, #tpu.memory_space<vmem>>, vector<1x1x128xf32>
    %38 = vector.shape_cast %37 : vector<1x1x128xf32> to vector<1x128xf32>
    %39 = vector.shape_cast %36 : vector<1x128xf32> to vector<1x1x128xf32>
    tpu.vector_store %arg4[%c0_18, %c0_19, %c0_20], %39 {strides = array<i32>} : memref<1x1x128xf32, #tpu.memory_space<vmem>>, vector<1x1x128xf32>,
    %40 = arith.mulf %29, %29 : vector<256x128xf32>
    %cst_21 = arith.constant dense<0.000000e+00> : vector<128xf32>
    %41 = vector.multi_reduction <add>, %40, %cst_21 [0] : vector<256x128xf32> to vector<128xf32>
    %42 = vector.shape_cast %41 : vector<128xf32> to vector<1x128xf32>
    %c0_22 = arith.constant 0 : index
    %c0_23 = arith.constant 0 : index
    %c0_24 = arith.constant 0 : index
    %43 = vector.load %arg5[%c0_22, %c0_23, %c0_24] : memref<1x1x128xf32, #tpu.memory_space<vmem>>, vector<1x1x128xf32>
    %44 = vector.shape_cast %43 : vector<1x1x128xf32> to vector<1x128xf32>
    %45 = vector.shape_cast %42 : vector<1x128xf32> to vector<1x1x128xf32>
    tpu.vector_store %arg5[%c0_22, %c0_23, %c0_24], %45 {strides = array<i32>} : memref<1x1x128xf32, #tpu.memory_space<vmem>>, vector<1x1x128xf32>,
    return
  }
  func.func @transform_0(%arg0: i32) -> (i32, i32, i32) {
    %c0_i32 = arith.constant 0 : i32
    %c0_i32_0 = arith.constant 0 : i32
    %c0_i32_1 = arith.constant 0 : i32
    return %arg0, %c0_i32, %c0_i32_0 : i32, i32, i32
  }
  func.func @transform_1(%arg0: i32) -> (i32, i32) {
    %c0_i32 = arith.constant 0 : i32
    %c0_i32_0 = arith.constant 0 : i32
    %c0_i32_1 = arith.constant 0 : i32
    return %c0_i32, %c0_i32_0 : i32, i32
  }
  func.func @transform_2(%arg0: i32) -> (i32, i32, i32, i32) {
    %c0_i32 = arith.constant 0 : i32
    %c0_i32_0 = arith.constant 0 : i32
    %c0_i32_1 = arith.constant 0 : i32
    %c0_i32_2 = arith.constant 0 : i32
    return %arg0, %c0_i32, %c0_i32_0, %c0_i32_1 : i32, i32, i32, i32
  }
  func.func @transform_3(%arg0: i32) -> (i32, i32, i32) {
    %c0_i32 = arith.constant 0 : i32
    %c0_i32_0 = arith.constant 0 : i32
    %c0_i32_1 = arith.constant 0 : i32
    return %arg0, %c0_i32, %c0_i32_0 : i32, i32, i32
  }
  func.func @transform_4(%arg0: i32) -> (i32, i32, i32) {
    %c0_i32 = arith.constant 0 : i32
    %c0_i32_0 = arith.constant 0 : i32
    %c0_i32_1 = arith.constant 0 : i32
    return %arg0, %c0_i32, %c0_i32_0 : i32, i32, i32
  }
}

module attributes {stable_mosaic.version = 11 : i64} {
  func.func @_bnrelu_conv2_stats_kernel(%arg0: i32, %arg1: memref<1x16x16x128xbf16, #tpu.memory_space<vmem>>, %arg2: memref<1x1x128xf32, #tpu.memory_space<vmem>>, %arg3: memref<1x1x128xf32, #tpu.memory_space<vmem>>, %arg4: memref<1152x128xbf16, #tpu.memory_space<vmem>>, %arg5: memref<1x128x256xbf16, #tpu.memory_space<vmem>>, %arg6: memref<1x1x128xf32, #tpu.memory_space<vmem>>, %arg7: memref<1x1x128xf32, #tpu.memory_space<vmem>>, %arg8: memref<18x18x128xf32, #tpu.memory_space<vmem>>) attributes {dimension_semantics = [#tpu.dimension_semantics<parallel>], iteration_bounds = array<i64: 2>, scalar_prefetch = 0 : i64, scratch_operands = 1 : i64, tpu.core_type = #tpu.core_type<tc>, window_params = [{transform_indices = @transform_0, window_bounds = array<i64: 1, 16, 16, 128>}, {pipeline_mode = #tpu.pipeline_mode<synchronous>, transform_indices = @transform_1, window_bounds = array<i64: 1, 1, 128>}, {pipeline_mode = #tpu.pipeline_mode<synchronous>, transform_indices = @transform_2, window_bounds = array<i64: 1, 1, 128>}, {pipeline_mode = #tpu.pipeline_mode<synchronous>, transform_indices = @transform_3, window_bounds = array<i64: 1152, 128>}, {transform_indices = @transform_4, window_bounds = array<i64: 1, 128, 256>}, {transform_indices = @transform_5, window_bounds = array<i64: 1, 1, 128>}, {transform_indices = @transform_6, window_bounds = array<i64: 1, 1, 128>}]} {
    %c0 = arith.constant 0 : index
    %c0_0 = arith.constant 0 : index
    %c0_1 = arith.constant 0 : index
    %c0_2 = arith.constant 0 : index
    %0 = vector.load %arg1[%c0, %c0_0, %c0_1, %c0_2] : memref<1x16x16x128xbf16, #tpu.memory_space<vmem>>, vector<1x16x16x128xbf16>
    %1 = vector.shape_cast %0 : vector<1x16x16x128xbf16> to vector<16x16x128xbf16>
    %2 = arith.extf %1 : vector<16x16x128xbf16> to vector<16x16x128xf32>
    %c0_3 = arith.constant 0 : index
    %c0_4 = arith.constant 0 : index
    %c0_5 = arith.constant 0 : index
    %3 = vector.load %arg2[%c0_3, %c0_4, %c0_5] : memref<1x1x128xf32, #tpu.memory_space<vmem>>, vector<1x1x128xf32>
    %4 = vector.broadcast %3 : vector<1x1x128xf32> to vector<16x16x128xf32>
    %5 = arith.mulf %2, %4 : vector<16x16x128xf32>
    %c0_6 = arith.constant 0 : index
    %c0_7 = arith.constant 0 : index
    %c0_8 = arith.constant 0 : index
    %6 = vector.load %arg3[%c0_6, %c0_7, %c0_8] : memref<1x1x128xf32, #tpu.memory_space<vmem>>, vector<1x1x128xf32>
    %7 = vector.broadcast %6 : vector<1x1x128xf32> to vector<16x16x128xf32>
    %8 = arith.addf %5, %7 : vector<16x16x128xf32>
    %cst = arith.constant 0.000000e+00 : f32
    %9 = vector.broadcast %cst : f32 to vector<16x16x128xf32>
    %10 = arith.maximumf %8, %9 : vector<16x16x128xf32>
    %cst_9 = arith.constant 0.000000e+00 : f32
    %11 = vector.broadcast %cst_9 : f32 to vector<18x18x128xf32>
    %c0_10 = arith.constant 0 : index
    %c0_11 = arith.constant 0 : index
    %c0_12 = arith.constant 0 : index
    %12 = vector.load %arg8[%c0_10, %c0_11, %c0_12] : memref<18x18x128xf32, #tpu.memory_space<vmem>>, vector<18x18x128xf32>
    tpu.vector_store %arg8[%c0_10, %c0_11, %c0_12], %11 {strides = array<i32>} : memref<18x18x128xf32, #tpu.memory_space<vmem>>, vector<18x18x128xf32>,
    %c1 = arith.constant 1 : index
    %c1_13 = arith.constant 1 : index
    %c0_14 = arith.constant 0 : index
    %13 = vector.load %arg8[%c1, %c1_13, %c0_14] : memref<18x18x128xf32, #tpu.memory_space<vmem>>, vector<16x16x128xf32>
    tpu.vector_store %arg8[%c1, %c1_13, %c0_14], %10 {strides = array<i32>} : memref<18x18x128xf32, #tpu.memory_space<vmem>>, vector<16x16x128xf32>,
    %c0_15 = arith.constant 0 : index
    %c0_16 = arith.constant 0 : index
    %c0_17 = arith.constant 0 : index
    %14 = vector.load %arg8[%c0_15, %c0_16, %c0_17] : memref<18x18x128xf32, #tpu.memory_space<vmem>>, vector<18x18x128xf32>
    %15 = arith.truncf %14 : vector<18x18x128xf32> to vector<18x18x128xbf16>
    %16 = vector.extract_strided_slice %15 {offsets = [0, 0, 0], sizes = [16, 16, 128], strides = [1, 1, 1]} : vector<18x18x128xbf16> to vector<16x16x128xbf16>
    %17 = vector.shape_cast %16 : vector<16x16x128xbf16> to vector<256x128xbf16>
    %18 = vector.extract_strided_slice %15 {offsets = [0, 1, 0], sizes = [16, 16, 128], strides = [1, 1, 1]} : vector<18x18x128xbf16> to vector<16x16x128xbf16>
    %19 = vector.shape_cast %18 : vector<16x16x128xbf16> to vector<256x128xbf16>
    %20 = vector.extract_strided_slice %15 {offsets = [0, 2, 0], sizes = [16, 16, 128], strides = [1, 1, 1]} : vector<18x18x128xbf16> to vector<16x16x128xbf16>
    %21 = vector.shape_cast %20 : vector<16x16x128xbf16> to vector<256x128xbf16>
    %22 = vector.extract_strided_slice %15 {offsets = [1, 0, 0], sizes = [16, 16, 128], strides = [1, 1, 1]} : vector<18x18x128xbf16> to vector<16x16x128xbf16>
    %23 = vector.shape_cast %22 : vector<16x16x128xbf16> to vector<256x128xbf16>
    %24 = vector.extract_strided_slice %15 {offsets = [1, 1, 0], sizes = [16, 16, 128], strides = [1, 1, 1]} : vector<18x18x128xbf16> to vector<16x16x128xbf16>
    %25 = vector.shape_cast %24 : vector<16x16x128xbf16> to vector<256x128xbf16>
    %26 = vector.extract_strided_slice %15 {offsets = [1, 2, 0], sizes = [16, 16, 128], strides = [1, 1, 1]} : vector<18x18x128xbf16> to vector<16x16x128xbf16>
    %27 = vector.shape_cast %26 : vector<16x16x128xbf16> to vector<256x128xbf16>
    %28 = vector.extract_strided_slice %15 {offsets = [2, 0, 0], sizes = [16, 16, 128], strides = [1, 1, 1]} : vector<18x18x128xbf16> to vector<16x16x128xbf16>
    %29 = vector.shape_cast %28 : vector<16x16x128xbf16> to vector<256x128xbf16>
    %30 = vector.extract_strided_slice %15 {offsets = [2, 1, 0], sizes = [16, 16, 128], strides = [1, 1, 1]} : vector<18x18x128xbf16> to vector<16x16x128xbf16>
    %31 = vector.shape_cast %30 : vector<16x16x128xbf16> to vector<256x128xbf16>
    %32 = vector.extract_strided_slice %15 {offsets = [2, 2, 0], sizes = [16, 16, 128], strides = [1, 1, 1]} : vector<18x18x128xbf16> to vector<16x16x128xbf16>
    %33 = vector.shape_cast %32 : vector<16x16x128xbf16> to vector<256x128xbf16>
    %34 = tpu.concatenate %17, %19, %21, %23, %25, %27, %29, %31, %33 in 1 : vector<256x128xbf16>, vector<256x128xbf16>, vector<256x128xbf16>, vector<256x128xbf16>, vector<256x128xbf16>, vector<256x128xbf16>, vector<256x128xbf16>, vector<256x128xbf16>, vector<256x128xbf16> -> vector<256x1152xbf16>
    %c0_18 = arith.constant 0 : index
    %c0_19 = arith.constant 0 : index
    %35 = vector.load %arg4[%c0_18, %c0_19] : memref<1152x128xbf16, #tpu.memory_space<vmem>>, vector<1152x128xbf16>
    %cst_20 = arith.constant dense<0.000000e+00> : vector<256x128xf32>
    %36 = tpu.matmul %34, %35, %cst_20 {dimension_numbers = #tpu.dot_dimension_numbers<[1], [0], [0], [1], [0, 0, 1, 1], [], []>} : vector<256x1152xbf16>, vector<1152x128xbf16>, vector<256x128xf32> -> vector<256x128xf32>
    %cst_21 = arith.constant dense<0.000000e+00> : vector<128xf32>
    %37 = vector.multi_reduction <add>, %36, %cst_21 [0] : vector<256x128xf32> to vector<128xf32>
    %38 = vector.shape_cast %37 : vector<128xf32> to vector<1x128xf32>
    %c0_22 = arith.constant 0 : index
    %c0_23 = arith.constant 0 : index
    %c0_24 = arith.constant 0 : index
    %39 = vector.load %arg6[%c0_22, %c0_23, %c0_24] : memref<1x1x128xf32, #tpu.memory_space<vmem>>, vector<1x1x128xf32>
    %40 = vector.shape_cast %39 : vector<1x1x128xf32> to vector<1x128xf32>
    %41 = vector.shape_cast %38 : vector<1x128xf32> to vector<1x1x128xf32>
    tpu.vector_store %arg6[%c0_22, %c0_23, %c0_24], %41 {strides = array<i32>} : memref<1x1x128xf32, #tpu.memory_space<vmem>>, vector<1x1x128xf32>,
    %42 = arith.mulf %36, %36 : vector<256x128xf32>
    %cst_25 = arith.constant dense<0.000000e+00> : vector<128xf32>
    %43 = vector.multi_reduction <add>, %42, %cst_25 [0] : vector<256x128xf32> to vector<128xf32>
    %44 = vector.shape_cast %43 : vector<128xf32> to vector<1x128xf32>
    %c0_26 = arith.constant 0 : index
    %c0_27 = arith.constant 0 : index
    %c0_28 = arith.constant 0 : index
    %45 = vector.load %arg7[%c0_26, %c0_27, %c0_28] : memref<1x1x128xf32, #tpu.memory_space<vmem>>, vector<1x1x128xf32>
    %46 = vector.shape_cast %45 : vector<1x1x128xf32> to vector<1x128xf32>
    %47 = vector.shape_cast %44 : vector<1x128xf32> to vector<1x1x128xf32>
    tpu.vector_store %arg7[%c0_26, %c0_27, %c0_28], %47 {strides = array<i32>} : memref<1x1x128xf32, #tpu.memory_space<vmem>>, vector<1x1x128xf32>,
    %48 = tpu.transpose %36, [1, 0] : vector<256x128xf32> -> vector<128x256xf32>
    %49 = arith.truncf %48 : vector<128x256xf32> to vector<128x256xbf16>
    %c0_29 = arith.constant 0 : index
    %c0_30 = arith.constant 0 : index
    %c0_31 = arith.constant 0 : index
    %50 = vector.load %arg5[%c0_29, %c0_30, %c0_31] : memref<1x128x256xbf16, #tpu.memory_space<vmem>>, vector<1x128x256xbf16>
    %51 = vector.shape_cast %50 : vector<1x128x256xbf16> to vector<128x256xbf16>
    %52 = vector.shape_cast %49 : vector<128x256xbf16> to vector<1x128x256xbf16>
    tpu.vector_store %arg5[%c0_29, %c0_30, %c0_31], %52 {strides = array<i32>} : memref<1x128x256xbf16, #tpu.memory_space<vmem>>, vector<1x128x256xbf16>,
    return
  }
  func.func @transform_0(%arg0: i32) -> (i32, i32, i32, i32) {
    %c0_i32 = arith.constant 0 : i32
    %c0_i32_0 = arith.constant 0 : i32
    %c0_i32_1 = arith.constant 0 : i32
    %c0_i32_2 = arith.constant 0 : i32
    return %arg0, %c0_i32, %c0_i32_0, %c0_i32_1 : i32, i32, i32, i32
  }
  func.func @transform_1(%arg0: i32) -> (i32, i32, i32) {
    %c0_i32 = arith.constant 0 : i32
    %c0_i32_0 = arith.constant 0 : i32
    %c0_i32_1 = arith.constant 0 : i32
    %c0_i32_2 = arith.constant 0 : i32
    return %c0_i32, %c0_i32_0, %c0_i32_1 : i32, i32, i32
  }
  func.func @transform_2(%arg0: i32) -> (i32, i32, i32) {
    %c0_i32 = arith.constant 0 : i32
    %c0_i32_0 = arith.constant 0 : i32
    %c0_i32_1 = arith.constant 0 : i32
    %c0_i32_2 = arith.constant 0 : i32
    return %c0_i32, %c0_i32_0, %c0_i32_1 : i32, i32, i32
  }
  func.func @transform_3(%arg0: i32) -> (i32, i32) {
    %c0_i32 = arith.constant 0 : i32
    %c0_i32_0 = arith.constant 0 : i32
    %c0_i32_1 = arith.constant 0 : i32
    return %c0_i32, %c0_i32_0 : i32, i32
  }
  func.func @transform_4(%arg0: i32) -> (i32, i32, i32) {
    %c0_i32 = arith.constant 0 : i32
    %c0_i32_0 = arith.constant 0 : i32
    %c0_i32_1 = arith.constant 0 : i32
    return %arg0, %c0_i32, %c0_i32_0 : i32, i32, i32
  }
  func.func @transform_5(%arg0: i32) -> (i32, i32, i32) {
    %c0_i32 = arith.constant 0 : i32
    %c0_i32_0 = arith.constant 0 : i32
    %c0_i32_1 = arith.constant 0 : i32
    return %arg0, %c0_i32, %c0_i32_0 : i32, i32, i32
  }
  func.func @transform_6(%arg0: i32) -> (i32, i32, i32) {
    %c0_i32 = arith.constant 0 : i32
    %c0_i32_0 = arith.constant 0 : i32
    %c0_i32_1 = arith.constant 0 : i32
    return %arg0, %c0_i32, %c0_i32_0 : i32, i32, i32
  }
}

module attributes {stable_mosaic.version = 11 : i64} {
  func.func @_bn_scale_residual_kernel(%arg0: i32, %arg1: memref<1x128x256xbf16, #tpu.memory_space<vmem>>, %arg2: memref<128x1xf32, #tpu.memory_space<vmem>>, %arg3: memref<128x1xf32, #tpu.memory_space<vmem>>, %arg4: memref<1x128x256xf32, #tpu.memory_space<vmem>>, %arg5: memref<1x128x256xf32, #tpu.memory_space<vmem>>) attributes {dimension_semantics = [#tpu.dimension_semantics<parallel>], iteration_bounds = array<i64: 2>, scalar_prefetch = 0 : i64, scratch_operands = 0 : i64, tpu.core_type = #tpu.core_type<tc>, window_params = [{transform_indices = @transform_0, window_bounds = array<i64: 1, 128, 256>}, {pipeline_mode = #tpu.pipeline_mode<synchronous>, transform_indices = @transform_1, window_bounds = array<i64: 128, 1>}, {pipeline_mode = #tpu.pipeline_mode<synchronous>, transform_indices = @transform_2, window_bounds = array<i64: 128, 1>}, {transform_indices = @transform_3, window_bounds = array<i64: 1, 128, 256>}, {transform_indices = @transform_4, window_bounds = array<i64: 1, 128, 256>}]} {
    %c0 = arith.constant 0 : index
    %c0_0 = arith.constant 0 : index
    %c0_1 = arith.constant 0 : index
    %0 = vector.load %arg1[%c0, %c0_0, %c0_1] : memref<1x128x256xbf16, #tpu.memory_space<vmem>>, vector<1x128x256xbf16>
    %1 = vector.shape_cast %0 : vector<1x128x256xbf16> to vector<128x256xbf16>
    %2 = arith.extf %1 : vector<128x256xbf16> to vector<128x256xf32>
    %c0_2 = arith.constant 0 : index
    %c0_3 = arith.constant 0 : index
    %3 = vector.load %arg2[%c0_2, %c0_3] : memref<128x1xf32, #tpu.memory_space<vmem>>, vector<128x1xf32>
    %4 = vector.broadcast %3 : vector<128x1xf32> to vector<128x256xf32>
    %5 = arith.mulf %2, %4 : vector<128x256xf32>
    %c0_4 = arith.constant 0 : index
    %c0_5 = arith.constant 0 : index
    %6 = vector.load %arg3[%c0_4, %c0_5] : memref<128x1xf32, #tpu.memory_space<vmem>>, vector<128x1xf32>
    %7 = vector.broadcast %6 : vector<128x1xf32> to vector<128x256xf32>
    %8 = arith.addf %5, %7 : vector<128x256xf32>
    %c0_6 = arith.constant 0 : index
    %c0_7 = arith.constant 0 : index
    %c0_8 = arith.constant 0 : index
    %9 = vector.load %arg4[%c0_6, %c0_7, %c0_8] : memref<1x128x256xf32, #tpu.memory_space<vmem>>, vector<1x128x256xf32>
    %10 = vector.shape_cast %9 : vector<1x128x256xf32> to vector<128x256xf32>
    %11 = arith.addf %8, %10 : vector<128x256xf32>
    %c0_9 = arith.constant 0 : index
    %c0_10 = arith.constant 0 : index
    %c0_11 = arith.constant 0 : index
    %12 = vector.load %arg5[%c0_9, %c0_10, %c0_11] : memref<1x128x256xf32, #tpu.memory_space<vmem>>, vector<1x128x256xf32>
    %13 = vector.shape_cast %12 : vector<1x128x256xf32> to vector<128x256xf32>
    %14 = vector.shape_cast %11 : vector<128x256xf32> to vector<1x128x256xf32>
    tpu.vector_store %arg5[%c0_9, %c0_10, %c0_11], %14 {strides = array<i32>} : memref<1x128x256xf32, #tpu.memory_space<vmem>>, vector<1x128x256xf32>,
    return
  }
  func.func @transform_0(%arg0: i32) -> (i32, i32, i32) {
    %c0_i32 = arith.constant 0 : i32
    %c0_i32_0 = arith.constant 0 : i32
    %c0_i32_1 = arith.constant 0 : i32
    return %arg0, %c0_i32, %c0_i32_0 : i32, i32, i32
  }
  func.func @transform_1(%arg0: i32) -> (i32, i32) {
    %c0_i32 = arith.constant 0 : i32
    %c0_i32_0 = arith.constant 0 : i32
    %c0_i32_1 = arith.constant 0 : i32
    return %c0_i32, %c0_i32_0 : i32, i32
  }
  func.func @transform_2(%arg0: i32) -> (i32, i32) {
    %c0_i32 = arith.constant 0 : i32
    %c0_i32_0 = arith.constant 0 : i32
    %c0_i32_1 = arith.constant 0 : i32
    return %c0_i32, %c0_i32_0 : i32, i32
  }
  func.func @transform_3(%arg0: i32) -> (i32, i32, i32) {
    %c0_i32 = arith.constant 0 : i32
    %c0_i32_0 = arith.constant 0 : i32
    %c0_i32_1 = arith.constant 0 : i32
    return %arg0, %c0_i32, %c0_i32_0 : i32, i32, i32
  }
  func.func @transform_4(%arg0: i32) -> (i32, i32, i32) {
    %c0_i32 = arith.constant 0 : i32
    %c0_i32_0 = arith.constant 0 : i32
    %c0_i32_1 = arith.constant 0 : i32
    return %arg0, %c0_i32, %c0_i32_0 : i32, i32, i32
  }
}

</mosaic_0001>

<llo_original>
// kernel: residual_block_forward.5
$region0: #{residual_block_forward.5}
  #allocation0 [shape = 'u32[]', space=smem, size = 0x4, offset = 0x4, fixed_abs, tag = 'smem constant byte address 0x4 - core index']
  #allocation1 [shape = 'u32[144,128]{1,0:T(1,128)}', space=vmem, size = 0x12000, scoped, tag = 'internal scratch']
  %s0 = inlined_call_operand.vmem [shape: bf16[2,128,256], index: 0, kind: input, shape index: {}]
  %s1 = inlined_call_operand.vmem [shape: f32[128,1], index: 1, kind: input, shape index: {}]
  %s2 = inlined_call_operand.vmem [shape: f32[128,1], index: 2, kind: input, shape index: {}]
  %s3 = inlined_call_operand.vmem [shape: f32[2,128,256], index: 3, kind: input, shape index: {}]
  %s4 = inlined_call_operand.vmem [shape: f32[2,128,256], index: 4, kind: output, shape index: {}]
  %s5 = sld [smem:[#allocation0]]
  $region49: #{residual_block_forward.5} parent=0
    _
  %s7 = ssub.s32 1, %s5
  %s8 = scalar_select 0, %s7, %s5
  loop: start=0, step=1, limit=4
  $region2: #{residual_block_forward.5} parent=0 // loop_pre_header
    _
  $region3: #{residual_block_forward.5} parent=0 // loop_header
    %s10 = sphi 0, %s14
    %p11 = scmp.ge.s32.totalorder %s10, 4
    %s20 = sphi 0, %s22
    %s23 = sphi 0, %s20
    %s24 = sphi 0, %s23
    %s40 = sphi 0, %s24
    %s44 = sphi 0, %s44
    %s46 = sphi 0, %s44
    %s47 = sphi 0, %s46
    %s61 = sphi 0, %s47
    %s65 = sphi 0, %s65
    %s67 = sphi 0, %s65
    %s68 = sphi 0, %s67
    %s82 = sphi 0, %s68
    %s88 = sphi 0, %s90
    %s91 = sphi 0, %s88
    %s92 = sphi 0, %s91
    %s108 = sphi 0, %s92
    %s114 = sphi 0, %s116
    %s117 = sphi 0, %s114
    %s118 = sphi 0, %s117
    %s134 = sphi 0, %s118
  $region4: #{residual_block_forward.5} parent=0 // loop_header_branch
    %13 = sbr.rel (%p11) target = $region8
  $region5: #{residual_block_forward.5} parent=0 // loop_body
    %s15 = ssub.s32 %s10, 1
    %s16 = ssub.s32 %s10, 2
    %s17 = sadd.s32 %s10, 1
    %s18 = ssub.s32 %s10, %s17
    %p19 = scmp.eq.s32.totalorder %s18, 0
    %s21 = sadd.s32 %s20, 1
    %s22 = scalar_select %p19, %s20, %s21
    %p25 = pneg %p19
    %p26 = scmp.eq.s32.totalorder %s10, 1
    %p27 = por %p25, %p26
    %p28 = scmp.ne.s32.totalorder %s20, %s23
    %p29 = scmp.eq.s32.totalorder %s10, 0
    %p30 = por %p28, %p29
    %p31 = scmp.ne.s32.totalorder %s20, %s23
    %p32 = scmp.eq.s32.totalorder %s15, 1
    %p33 = por %p31, %p32
    %p34 = scmp.ne.s32.totalorder %s23, %s24
    %p35 = scmp.eq.s32.totalorder %s15, 0
    %p36 = por %p34, %p35
    %p37 = scmp.ne.s32.totalorder %s23, %s24
    %p38 = scmp.eq.s32.totalorder %s16, 1
    %p39 = por %p37, %p38
    %p41 = scmp.ne.s32.totalorder %s24, %s40
    %p42 = scmp.eq.s32.totalorder %s16, 0
    %p43 = por %p41, %p42
    %s45 = sadd.s32 %s44, 1
    %p48 = scmp.eq.s32.totalorder %s10, 1
    %p49 = scmp.ne.s32.totalorder %s44, %s46
    %p50 = scmp.eq.s32.totalorder %s10, 0
    %p51 = por %p49, %p50
    %p52 = scmp.ne.s32.totalorder %s44, %s46
    %p53 = scmp.eq.s32.totalorder %s15, 1
    %p54 = por %p52, %p53
    %p55 = scmp.ne.s32.totalorder %s46, %s47
    %p56 = scmp.eq.s32.totalorder %s15, 0
    %p57 = por %p55, %p56
    %p58 = scmp.ne.s32.totalorder %s46, %s47
    %p59 = scmp.eq.s32.totalorder %s16, 1
    %p60 = por %p58, %p59
    %p62 = scmp.ne.s32.totalorder %s47, %s61
    %p63 = scmp.eq.s32.totalorder %s16, 0
    %p64 = por %p62, %p63
    %s66 = sadd.s32 %s65, 1
    %p69 = scmp.eq.s32.totalorder %s10, 1
    %p70 = scmp.ne.s32.totalorder %s65, %s67
    %p71 = scmp.eq.s32.totalorder %s10, 0
    %p72 = por %p70, %p71
    %p73 = scmp.ne.s32.totalorder %s65, %s67
    %p74 = scmp.eq.s32.totalorder %s15, 1
    %p75 = por %p73, %p74
    %p76 = scmp.ne.s32.totalorder %s67, %s68
    %p77 = scmp.eq.s32.totalorder %s15, 0
    %p78 = por %p76, %p77
    %p79 = scmp.ne.s32.totalorder %s67, %s68
    %p80 = scmp.eq.s32.totalorder %s16, 1
    %p81 = por %p79, %p80
    %p83 = scmp.ne.s32.totalorder %s68, %s82
    %p84 = scmp.eq.s32.totalorder %s16, 0
    %p85 = por %p83, %p84
    %s86 = ssub.s32 %s10, %s17
    %p87 = scmp.eq.s32.totalorder %s86, 0
    %s89 = sadd.s32 %s88, 1
    %s90 = scalar_select %p87, %s88, %s89
    %p93 = pneg %p87
    %p94 = scmp.eq.s32.totalorder %s10, 1
    %p95 = por %p93, %p94
    %p96 = scmp.ne.s32.totalorder %s88, %s91
    %p97 = scmp.eq.s32.totalorder %s10, 0
    %p98 = por %p96, %p97
    %p99 = scmp.ne.s32.totalorder %s88, %s91
    %p100 = scmp.eq.s32.totalorder %s15, 1
    %p101 = por %p99, %p100
    %p102 = scmp.ne.s32.totalorder %s91, %s92
    %p103 = scmp.eq.s32.totalorder %s15, 0
    %p104 = por %p102, %p103
    %p105 = scmp.ne.s32.totalorder %s91, %s92
    %p106 = scmp.eq.s32.totalorder %s16, 1
    %p107 = por %p105, %p106
    %p109 = scmp.ne.s32.totalorder %s92, %s108
    %p110 = scmp.eq.s32.totalorder %s16, 0
    %p111 = por %p109, %p110
    %s112 = ssub.s32 %s10, %s17
    %p113 = scmp.eq.s32.totalorder %s112, 0
    %s115 = sadd.s32 %s114, 1
    %s116 = scalar_select %p113, %s114, %s115
    %p119 = pneg %p113
    %p120 = scmp.eq.s32.totalorder %s10, 1
    %p121 = por %p119, %p120
    %p122 = scmp.ne.s32.totalorder %s114, %s117
    %p123 = scmp.eq.s32.totalorder %s10, 0
    %p124 = por %p122, %p123
    %p125 = scmp.ne.s32.totalorder %s114, %s117
    %p126 = scmp.eq.s32.totalorder %s15, 1
    %p127 = por %p125, %p126
    %p128 = scmp.ne.s32.totalorder %s117, %s118
    %p129 = scmp.eq.s32.totalorder %s15, 0
    %p130 = por %p128, %p129
    %p131 = scmp.ne.s32.totalorder %s117, %s118
    %p132 = scmp.eq.s32.totalorder %s16, 1
    %p133 = por %p131, %p132
    %p135 = scmp.ne.s32.totalorder %s118, %s134
    %p136 = scmp.eq.s32.totalorder %s16, 0
    %p137 = por %p135, %p136
    %p138 = scmp.le.s32.totalorder 1, %s10
    %p139 = scmp.lt.s32.totalorder %s10, 3
    %p140 = pnand %p138, %p139
    %p141 = pneg %p140
    // Predicated region
    $region9: #{residual_block_forward.5} parent=5 // pred_check
      _
    $region10: #{residual_block_forward.5} parent=5 // pred_check_branch
      %143 = sbr.rel (%p140) target = $region12
    $region11: #{residual_block_forward.5} parent=5 // pred_region
      %s144 = ssub.s32 %s10, 1
      // Predicated region
      $region13: #{residual_block_forward.5} parent=11 // pred_check
        %p145 = pneg %p57
      $region14: #{residual_block_forward.5} parent=11 // pred_check_branch
        %147 = sbr.rel (%p145) target = $region16
      $region15: #{residual_block_forward.5} parent=11 // pred_region
        _
      $region16: #{residual_block_forward.5} parent=11 // pred_fallthru
        _
      // Predicated region
      $region17: #{residual_block_forward.5} parent=11 // pred_check
        %p148 = pneg %p78
      $region18: #{residual_block_forward.5} parent=11 // pred_check_branch
        %150 = sbr.rel (%p148) target = $region20
      $region19: #{residual_block_forward.5} parent=11 // pred_region
        _
      $region20: #{residual_block_forward.5} parent=11 // pred_fallthru
        _
    $region12: #{residual_block_forward.5} parent=5 // pred_fallthru
      _
    %p151 = scmp.lt.s32.totalorder %s10, 2
    // Predicated region
    $region21: #{residual_block_forward.5} parent=5 // pred_check
      %p152 = pneg %p151
    $region22: #{residual_block_forward.5} parent=5 // pred_check_branch
      %154 = sbr.rel (%p152) target = $region24
    $region23: #{residual_block_forward.5} parent=5 // pred_region
      // Predicated region
      $region25: #{residual_block_forward.5} parent=23 // pred_check
        %p155 = pneg %p30
      $region26: #{residual_block_forward.5} parent=23 // pred_check_branch
        %157 = sbr.rel (%p155) target = $region28
      $region27: #{residual_block_forward.5} parent=23 // pred_region
        %p158 = scmp.lt.s32.totalorder %s10, 1
        %s159 = scalar_select %p158, %s10, 1
        %s160 = smul.addr %s159, 32
        %s161 = smul.addr %s160, 4
        %s162 = scalar_lea.vmem %s0, %s161
      $region28: #{residual_block_forward.5} parent=23 // pred_fallthru
        _
      // Predicated region
      $region29: #{residual_block_forward.5} parent=23 // pred_check
        %p163 = pneg %p98
      $region30: #{residual_block_forward.5} parent=23 // pred_check_branch
        %165 = sbr.rel (%p163) target = $region32
      $region31: #{residual_block_forward.5} parent=23 // pred_region
        %p166 = scmp.lt.s32.totalorder %s10, 1
        %s167 = scalar_select %p166, %s10, 1
        %s168 = smul.addr %s167, 32
        %s169 = smul.addr %s168, 8
        %s170 = scalar_lea.vmem %s3, %s169
      $region32: #{residual_block_forward.5} parent=23 // pred_fallthru
        _
    $region24: #{residual_block_forward.5} parent=5 // pred_fallthru
      _
    %p171 = scmp.le.s32.totalorder 1, %s10
    %p172 = scmp.lt.s32.totalorder %s10, 3
    %p173 = pnand %p171, %p172
    %p174 = pneg %p173
    // Predicated region
    $region33: #{residual_block_forward.5} parent=5 // pred_check
      _
    $region34: #{residual_block_forward.5} parent=5 // pred_check_branch
      %176 = sbr.rel (%p173) target = $region36
    $region35: #{residual_block_forward.5} parent=5 // pred_region
      %s177 = ssub.s32 %s10, 1
      %p178 = scmp.lt.s32.totalorder %s15, 1
      %s179 = scalar_select %p178, %s15, 1
      %s180 = smul.addr %s179, 32
      %s181 = smul.addr %s180, 4
      %s182 = scalar_lea.vmem %s0, %s181
      %p183 = pneg %p36
      %p184 = pneg %p33
      %p185 = pneg %p57
      %p186 = pneg %p54
      %p187 = pneg %p78
      %p188 = pneg %p75
      %p189 = scmp.lt.s32.totalorder %s15, 1
      %s190 = scalar_select %p189, %s15, 1
      %s191 = smul.addr %s190, 32
      %s192 = smul.addr %s191, 8
      %s193 = scalar_lea.vmem %s3, %s192
      %p194 = pneg %p104
      %p195 = pneg %p101
      %p196 = pneg %p130
      %p197 = pneg %p127
      %p198 = scmp.lt.s32.totalorder %s15, 1
      %s199 = scalar_select %p198, %s15, 1
      %s200 = smul.addr %s199, 32
      %s201 = smul.addr %s200, 8
      %s202 = scalar_lea.vmem %s4, %s201
      %p203 = scmp.lt.s32.totalorder %s15, 1
      %s204 = scalar_select %p203, %s15, 1
      %s205 = smul.addr %s204, 32
      %s206 = smul.addr %s205, 4
      %s207 = scalar_lea.vmem %s0, %s206
      %p208 = scmp.lt.s32.totalorder %s15, 1
      %s209 = scalar_select %p208, %s15, 1
      %s210 = smul.addr %s209, 32
      %s211 = smul.addr %s210, 8
      %s212 = scalar_lea.vmem %s3, %s211
      %p213 = scmp.lt.s32.totalorder %s15, 1
      %s214 = scalar_select %p213, %s15, 1
      %s215 = smul.addr %s214, 32
      %s216 = smul.addr %s215, 8
      %s217 = scalar_lea.vmem %s4, %s216
      %v218 = vld [vmem:[%s207] sm:$0xff]
      %v219 = vld [vmem:[%s207 + $0x8] sm:$0xff]
      %v220 = vld [vmem:[%s207 + $0x10] sm:$0xff]
      %v221 = vld [vmem:[%s207 + $0x18] sm:$0xff]
      %v222 = vld [vmem:[%s207 + $0x20] sm:$0xff]
      %v223 = vld [vmem:[%s207 + $0x28] sm:$0xff]
      %v224 = vld [vmem:[%s207 + $0x30] sm:$0xff]
      %v225 = vld [vmem:[%s207 + $0x38] sm:$0xff]
      %v226 = vld [vmem:[%s207 + $0x40] sm:$0xff]
      %v227 = vld [vmem:[%s207 + $0x48] sm:$0xff]
      %v228 = vld [vmem:[%s207 + $0x50] sm:$0xff]
      %v229 = vld [vmem:[%s207 + $0x58] sm:$0xff]
      %v230 = vld [vmem:[%s207 + $0x60] sm:$0xff]
      %v231 = vld [vmem:[%s207 + $0x68] sm:$0xff]
      %v232 = vld [vmem:[%s207 + $0x70] sm:$0xff]
      %v233 = vld [vmem:[%s207 + $0x78] sm:$0xff]
      %v234 = vunpack.c.l.bf16 %v218
      %v235 = vunpack.c.h.bf16 %v218
      %v236 = vunpack.c.l.bf16 %v219
      %v237 = vunpack.c.h.bf16 %v219
      %v238 = vunpack.c.l.bf16 %v220
      %v239 = vunpack.c.h.bf16 %v220
      %v240 = vunpack.c.l.bf16 %v221
      %v241 = vunpack.c.h.bf16 %v221
      %v242 = vunpack.c.l.bf16 %v222
      %v243 = vunpack.c.h.bf16 %v222
      %v244 = vunpack.c.l.bf16 %v223
      %v245 = vunpack.c.h.bf16 %v223
      %v246 = vunpack.c.l.bf16 %v224
      %v247 = vunpack.c.h.bf16 %v224
      %v248 = vunpack.c.l.bf16 %v225
      %v249 = vunpack.c.h.bf16 %v225
      %v250 = vunpack.c.l.bf16 %v226
      %v251 = vunpack.c.h.bf16 %v226
      %v252 = vunpack.c.l.bf16 %v227
      %v253 = vunpack.c.h.bf16 %v227
      %v254 = vunpack.c.l.bf16 %v228
      %v255 = vunpack.c.h.bf16 %v228
      %v256 = vunpack.c.l.bf16 %v229
      %v257 = vunpack.c.h.bf16 %v229
      %v258 = vunpack.c.l.bf16 %v230
      %v259 = vunpack.c.h.bf16 %v230
      %v260 = vunpack.c.l.bf16 %v231
      %v261 = vunpack.c.h.bf16 %v231
      %v262 = vunpack.c.l.bf16 %v232
      %v263 = vunpack.c.h.bf16 %v232
      %v264 = vunpack.c.l.bf16 %v233
      %v265 = vunpack.c.h.bf16 %v233
      %v266 = vld [vmem:[%s1] sm:$0xff]
      %v267 = vld [vmem:[%s1 + $0x8] sm:$0xff]
      %v268 = vld [vmem:[%s1 + $0x10] sm:$0xff]
      %v269 = vld [vmem:[%s1 + $0x18] sm:$0xff]
      %v270 = vld [vmem:[%s1 + $0x20] sm:$0xff]
      %v271 = vld [vmem:[%s1 + $0x28] sm:$0xff]
      %v272 = vld [vmem:[%s1 + $0x30] sm:$0xff]
      %v273 = vld [vmem:[%s1 + $0x38] sm:$0xff]
      %v274 = vld [vmem:[%s1 + $0x40] sm:$0xff]
      %v275 = vld [vmem:[%s1 + $0x48] sm:$0xff]
      %v276 = vld [vmem:[%s1 + $0x50] sm:$0xff]
      %v277 = vld [vmem:[%s1 + $0x58] sm:$0xff]
      %v278 = vld [vmem:[%s1 + $0x60] sm:$0xff]
      %v279 = vld [vmem:[%s1 + $0x68] sm:$0xff]
      %v280 = vld [vmem:[%s1 + $0x70] sm:$0xff]
      %v281 = vld [vmem:[%s1 + $0x78] sm:$0xff]
      %283 = vset.pattern.permute.xlu0 0
      %284 = vperm.xlu0 %283, %v266
      %v285 = vpop.permute.xlu0 %284
      %288 = vset.pattern.permute.xlu0 0
      %289 = vperm.xlu0 %288, %v267
      %v290 = vpop.permute.xlu0 %289
      %293 = vset.pattern.permute.xlu0 0
      %294 = vperm.xlu0 %293, %v268
      %v295 = vpop.permute.xlu0 %294
      %298 = vset.pattern.permute.xlu0 0
      %299 = vperm.xlu0 %298, %v269
      %v300 = vpop.permute.xlu0 %299
      %303 = vset.pattern.permute.xlu0 0
      %304 = vperm.xlu0 %303, %v270
      %v305 = vpop.permute.xlu0 %304
      %308 = vset.pattern.permute.xlu0 0
      %309 = vperm.xlu0 %308, %v271
      %v310 = vpop.permute.xlu0 %309
      %313 = vset.pattern.permute.xlu0 0
      %314 = vperm.xlu0 %313, %v272
      %v315 = vpop.permute.xlu0 %314
      %318 = vset.pattern.permute.xlu0 0
      %319 = vperm.xlu0 %318, %v273
      %v320 = vpop.permute.xlu0 %319
      %323 = vset.pattern.permute.xlu0 0
      %324 = vperm.xlu0 %323, %v274
      %v325 = vpop.permute.xlu0 %324
      %328 = vset.pattern.permute.xlu0 0
      %329 = vperm.xlu0 %328, %v275
      %v330 = vpop.permute.xlu0 %329
      %333 = vset.pattern.permute.xlu0 0
      %334 = vperm.xlu0 %333, %v276
      %v335 = vpop.permute.xlu0 %334
      %338 = vset.pattern.permute.xlu0 0
      %339 = vperm.xlu0 %338, %v277
      %v340 = vpop.permute.xlu0 %339
      %343 = vset.pattern.permute.xlu0 0
      %344 = vperm.xlu0 %343, %v278
      %v345 = vpop.permute.xlu0 %344
      %348 = vset.pattern.permute.xlu0 0
      %349 = vperm.xlu0 %348, %v279
      %v350 = vpop.permute.xlu0 %349
      %353 = vset.pattern.permute.xlu0 0
      %354 = vperm.xlu0 %353, %v280
      %v355 = vpop.permute.xlu0 %354
      %358 = vset.pattern.permute.xlu0 0
      %359 = vperm.xlu0 %358, %v281
      %v360 = vpop.permute.xlu0 %359
      %v362 = vmul.f32 %v234, %v285
      %v363 = vmul.f32 %v235, %v285
      %v364 = vmul.f32 %v236, %v290
      %v365 = vmul.f32 %v237, %v290
      %v366 = vmul.f32 %v238, %v295
      %v367 = vmul.f32 %v239, %v295
      %v368 = vmul.f32 %v240, %v300
      %v369 = vmul.f32 %v241, %v300
      %v370 = vmul.f32 %v242, %v305
      %v371 = vmul.f32 %v243, %v305
      %v372 = vmul.f32 %v244, %v310
      %v373 = vmul.f32 %v245, %v310
      %v374 = vmul.f32 %v246, %v315
      %v375 = vmul.f32 %v247, %v315
      %v376 = vmul.f32 %v248, %v320
      %v377 = vmul.f32 %v249, %v320
      %v378 = vmul.f32 %v250, %v325
      %v379 = vmul.f32 %v251, %v325
      %v380 = vmul.f32 %v252, %v330
      %v381 = vmul.f32 %v253, %v330
      %v382 = vmul.f32 %v254, %v335
      %v383 = vmul.f32 %v255, %v335
      %v384 = vmul.f32 %v256, %v340
      %v385 = vmul.f32 %v257, %v340
      %v386 = vmul.f32 %v258, %v345
      %v387 = vmul.f32 %v259, %v345
      %v388 = vmul.f32 %v260, %v350
      %v389 = vmul.f32 %v261, %v350
      %v390 = vmul.f32 %v262, %v355
      %v391 = vmul.f32 %v263, %v355
      %v392 = vmul.f32 %v264, %v360
      %v393 = vmul.f32 %v265, %v360
      %v394 = vld [vmem:[%s2] sm:$0xff]
      %v395 = vld [vmem:[%s2 + $0x8] sm:$0xff]
      %v396 = vld [vmem:[%s2 + $0x10] sm:$0xff]
      %v397 = vld [vmem:[%s2 + $0x18] sm:$0xff]
      %v398 = vld [vmem:[%s2 + $0x20] sm:$0xff]
      %v399 = vld [vmem:[%s2 + $0x28] sm:$0xff]
      %v400 = vld [vmem:[%s2 + $0x30] sm:$0xff]
      %v401 = vld [vmem:[%s2 + $0x38] sm:$0xff]
      %v402 = vld [vmem:[%s2 + $0x40] sm:$0xff]
      %v403 = vld [vmem:[%s2 + $0x48] sm:$0xff]
      %v404 = vld [vmem:[%s2 + $0x50] sm:$0xff]
      %v405 = vld [vmem:[%s2 + $0x58] sm:$0xff]
      %v406 = vld [vmem:[%s2 + $0x60] sm:$0xff]
      %v407 = vld [vmem:[%s2 + $0x68] sm:$0xff]
      %v408 = vld [vmem:[%s2 + $0x70] sm:$0xff]
      %v409 = vld [vmem:[%s2 + $0x78] sm:$0xff]
      %411 = vset.pattern.permute.xlu0 0
      %412 = vperm.xlu0 %411, %v394
      %v413 = vpop.permute.xlu0 %412
      %416 = vset.pattern.permute.xlu0 0
      %417 = vperm.xlu0 %416, %v395
      %v418 = vpop.permute.xlu0 %417
      %421 = vset.pattern.permute.xlu0 0
      %422 = vperm.xlu0 %421, %v396
      %v423 = vpop.permute.xlu0 %422
      %426 = vset.pattern.permute.xlu0 0
      %427 = vperm.xlu0 %426, %v397
      %v428 = vpop.permute.xlu0 %427
      %431 = vset.pattern.permute.xlu0 0
      %432 = vperm.xlu0 %431, %v398
      %v433 = vpop.permute.xlu0 %432
      %436 = vset.pattern.permute.xlu0 0
      %437 = vperm.xlu0 %436, %v399
      %v438 = vpop.permute.xlu0 %437
      %441 = vset.pattern.permute.xlu0 0
      %442 = vperm.xlu0 %441, %v400
      %v443 = vpop.permute.xlu0 %442
      %446 = vset.pattern.permute.xlu0 0
      %447 = vperm.xlu0 %446, %v401
      %v448 = vpop.permute.xlu0 %447
      %451 = vset.pattern.permute.xlu0 0
      %452 = vperm.xlu0 %451, %v402
      %v453 = vpop.permute.xlu0 %452
      %456 = vset.pattern.permute.xlu0 0
      %457 = vperm.xlu0 %456, %v403
      %v458 = vpop.permute.xlu0 %457
      %461 = vset.pattern.permute.xlu0 0
      %462 = vperm.xlu0 %461, %v404
      %v463 = vpop.permute.xlu0 %462
      %466 = vset.pattern.permute.xlu0 0
      %467 = vperm.xlu0 %466, %v405
      %v468 = vpop.permute.xlu0 %467
      %471 = vset.pattern.permute.xlu0 0
      %472 = vperm.xlu0 %471, %v406
      %v473 = vpop.permute.xlu0 %472
      %476 = vset.pattern.permute.xlu0 0
      %477 = vperm.xlu0 %476, %v407
      %v478 = vpop.permute.xlu0 %477
      %481 = vset.pattern.permute.xlu0 0
      %482 = vperm.xlu0 %481, %v408
      %v483 = vpop.permute.xlu0 %482
      %486 = vset.pattern.permute.xlu0 0
      %487 = vperm.xlu0 %486, %v409
      %v488 = vpop.permute.xlu0 %487
      %v490 = vadd.f32 %v362, %v413
      %v491 = vadd.f32 %v363, %v413
      %v492 = vadd.f32 %v364, %v418
      %v493 = vadd.f32 %v365, %v418
      %v494 = vadd.f32 %v366, %v423
      %v495 = vadd.f32 %v367, %v423
      %v496 = vadd.f32 %v368, %v428
      %v497 = vadd.f32 %v369, %v428
      %v498 = vadd.f32 %v370, %v433
      %v499 = vadd.f32 %v371, %v433
      %v500 = vadd.f32 %v372, %v438
      %v501 = vadd.f32 %v373, %v438
      %v502 = vadd.f32 %v374, %v443
      %v503 = vadd.f32 %v375, %v443
      %v504 = vadd.f32 %v376, %v448
      %v505 = vadd.f32 %v377, %v448
      %v506 = vadd.f32 %v378, %v453
      %v507 = vadd.f32 %v379, %v453
      %v508 = vadd.f32 %v380, %v458
      %v509 = vadd.f32 %v381, %v458
      %v510 = vadd.f32 %v382, %v463
      %v511 = vadd.f32 %v383, %v463
      %v512 = vadd.f32 %v384, %v468
      %v513 = vadd.f32 %v385, %v468
      %v514 = vadd.f32 %v386, %v473
      %v515 = vadd.f32 %v387, %v473
      %v516 = vadd.f32 %v388, %v478
      %v517 = vadd.f32 %v389, %v478
      %v518 = vadd.f32 %v390, %v483
      %v519 = vadd.f32 %v391, %v483
      %v520 = vadd.f32 %v392, %v488
      %v521 = vadd.f32 %v393, %v488
      %v522 = vld [vmem:[%s212] sm:$0xff]
      %v523 = vld [vmem:[%s212 + $0x8] sm:$0xff]
      %v524 = vld [vmem:[%s212 + $0x10] sm:$0xff]
      %v525 = vld [vmem:[%s212 + $0x18] sm:$0xff]
      %v526 = vld [vmem:[%s212 + $0x20] sm:$0xff]
      %v527 = vld [vmem:[%s212 + $0x28] sm:$0xff]
      %v528 = vld [vmem:[%s212 + $0x30] sm:$0xff]
      %v529 = vld [vmem:[%s212 + $0x38] sm:$0xff]
      %v530 = vld [vmem:[%s212 + $0x40] sm:$0xff]
      %v531 = vld [vmem:[%s212 + $0x48] sm:$0xff]
      %v532 = vld [vmem:[%s212 + $0x50] sm:$0xff]
      %v533 = vld [vmem:[%s212 + $0x58] sm:$0xff]
      %v534 = vld [vmem:[%s212 + $0x60] sm:$0xff]
      %v535 = vld [vmem:[%s212 + $0x68] sm:$0xff]
      %v536 = vld [vmem:[%s212 + $0x70] sm:$0xff]
      %v537 = vld [vmem:[%s212 + $0x78] sm:$0xff]
      %v538 = vld [vmem:[%s212 + $0x80] sm:$0xff]
      %v539 = vld [vmem:[%s212 + $0x88] sm:$0xff]
      %v540 = vld [vmem:[%s212 + $0x90] sm:$0xff]
      %v541 = vld [vmem:[%s212 + $0x98] sm:$0xff]
      %v542 = vld [vmem:[%s212 + $0xa0] sm:$0xff]
      %v543 = vld [vmem:[%s212 + $0xa8] sm:$0xff]
      %v544 = vld [vmem:[%s212 + $0xb0] sm:$0xff]
      %v545 = vld [vmem:[%s212 + $0xb8] sm:$0xff]
      %v546 = vld [vmem:[%s212 + $0xc0] sm:$0xff]
      %v547 = vld [vmem:[%s212 + $0xc8] sm:$0xff]
      %v548 = vld [vmem:[%s212 + $0xd0] sm:$0xff]
      %v549 = vld [vmem:[%s212 + $0xd8] sm:$0xff]
      %v550 = vld [vmem:[%s212 + $0xe0] sm:$0xff]
      %v551 = vld [vmem:[%s212 + $0xe8] sm:$0xff]
      %v552 = vld [vmem:[%s212 + $0xf0] sm:$0xff]
      %v553 = vld [vmem:[%s212 + $0xf8] sm:$0xff]
      %v554 = vadd.f32 %v490, %v522
      %v555 = vadd.f32 %v491, %v523
      %v556 = vadd.f32 %v492, %v524
      %v557 = vadd.f32 %v493, %v525
      %v558 = vadd.f32 %v494, %v526
      %v559 = vadd.f32 %v495, %v527
      %v560 = vadd.f32 %v496, %v528
      %v561 = vadd.f32 %v497, %v529
      %v562 = vadd.f32 %v498, %v530
      %v563 = vadd.f32 %v499, %v531
      %v564 = vadd.f32 %v500, %v532
      %v565 = vadd.f32 %v501, %v533
      %v566 = vadd.f32 %v502, %v534
      %v567 = vadd.f32 %v503, %v535
      %v568 = vadd.f32 %v504, %v536
      %v569 = vadd.f32 %v505, %v537
      %v570 = vadd.f32 %v506, %v538
      %v571 = vadd.f32 %v507, %v539
      %v572 = vadd.f32 %v508, %v540
      %v573 = vadd.f32 %v509, %v541
      %v574 = vadd.f32 %v510, %v542
      %v575 = vadd.f32 %v511, %v543
      %v576 = vadd.f32 %v512, %v544
      %v577 = vadd.f32 %v513, %v545
      %v578 = vadd.f32 %v514, %v546
      %v579 = vadd.f32 %v515, %v547
      %v580 = vadd.f32 %v516, %v548
      %v581 = vadd.f32 %v517, %v549
      %v582 = vadd.f32 %v518, %v550
      %v583 = vadd.f32 %v519, %v551
      %v584 = vadd.f32 %v520, %v552
      %v585 = vadd.f32 %v521, %v553
      %586 = vst [vmem:[%s217] sm:$0xff] %v554
      %587 = vst [vmem:[%s217 + $0x8] sm:$0xff] %v555
      %588 = vst [vmem:[%s217 + $0x10] sm:$0xff] %v556
      %589 = vst [vmem:[%s217 + $0x18] sm:$0xff] %v557
      %590 = vst [vmem:[%s217 + $0x20] sm:$0xff] %v558
      %591 = vst [vmem:[%s217 + $0x28] sm:$0xff] %v559
      %592 = vst [vmem:[%s217 + $0x30] sm:$0xff] %v560
      %593 = vst [vmem:[%s217 + $0x38] sm:$0xff] %v561
      %594 = vst [vmem:[%s217 + $0x40] sm:$0xff] %v562
      %595 = vst [vmem:[%s217 + $0x48] sm:$0xff] %v563
      %596 = vst [vmem:[%s217 + $0x50] sm:$0xff] %v564
      %597 = vst [vmem:[%s217 + $0x58] sm:$0xff] %v565
      %598 = vst [vmem:[%s217 + $0x60] sm:$0xff] %v566
      %599 = vst [vmem:[%s217 + $0x68] sm:$0xff] %v567
      %600 = vst [vmem:[%s217 + $0x70] sm:$0xff] %v568
      %601 = vst [vmem:[%s217 + $0x78] sm:$0xff] %v569
      %602 = vst [vmem:[%s217 + $0x80] sm:$0xff] %v570
      %603 = vst [vmem:[%s217 + $0x88] sm:$0xff] %v571
      %604 = vst [vmem:[%s217 + $0x90] sm:$0xff] %v572
      %605 = vst [vmem:[%s217 + $0x98] sm:$0xff] %v573
      %606 = vst [vmem:[%s217 + $0xa0] sm:$0xff] %v574
      %607 = vst [vmem:[%s217 + $0xa8] sm:$0xff] %v575
      %608 = vst [vmem:[%s217 + $0xb0] sm:$0xff] %v576
      %609 = vst [vmem:[%s217 + $0xb8] sm:$0xff] %v577
      %610 = vst [vmem:[%s217 + $0xc0] sm:$0xff] %v578
      %611 = vst [vmem:[%s217 + $0xc8] sm:$0xff] %v579
      %612 = vst [vmem:[%s217 + $0xd0] sm:$0xff] %v580
      %613 = vst [vmem:[%s217 + $0xd8] sm:$0xff] %v581
      %614 = vst [vmem:[%s217 + $0xe0] sm:$0xff] %v582
      %615 = vst [vmem:[%s217 + $0xe8] sm:$0xff] %v583
      %616 = vst [vmem:[%s217 + $0xf0] sm:$0xff] %v584
      %617 = vst [vmem:[%s217 + $0xf8] sm:$0xff] %v585
      %p618 = scmp.lt.s32.totalorder %s15, 1
      %s619 = scalar_select %p618, %s15, 1
      %s620 = smul.addr %s619, 32
      %s621 = smul.addr %s620, 8
      %s622 = scalar_lea.vmem %s4, %s621
      // Predicated region
      $region37: #{residual_block_forward.5} parent=35 // pred_check
        %p623 = pneg %p127
      $region38: #{residual_block_forward.5} parent=35 // pred_check_branch
        %625 = sbr.rel (%p623) target = $region40
      $region39: #{residual_block_forward.5} parent=35 // pred_region
        _
      $region40: #{residual_block_forward.5} parent=35 // pred_fallthru
        _
    $region36: #{residual_block_forward.5} parent=5 // pred_fallthru
      _
    %p626 = scmp.le.s32.totalorder 2, %s10
    // Predicated region
    $region41: #{residual_block_forward.5} parent=5 // pred_check
      %p627 = pneg %p626
    $region42: #{residual_block_forward.5} parent=5 // pred_check_branch
      %629 = sbr.rel (%p627) target = $region44
    $region43: #{residual_block_forward.5} parent=5 // pred_region
      %s630 = ssub.s32 %s10, 2
      // Predicated region
      $region45: #{residual_block_forward.5} parent=43 // pred_check
        %p631 = pneg %p133
      $region46: #{residual_block_forward.5} parent=43 // pred_check_branch
        %633 = sbr.rel (%p631) target = $region48
      $region47: #{residual_block_forward.5} parent=43 // pred_region
        %p634 = scmp.lt.s32.totalorder %s16, 1
        %s635 = scalar_select %p634, %s16, 1
        %s636 = smul.addr %s635, 32
        %s637 = smul.addr %s636, 8
        %s638 = scalar_lea.vmem %s4, %s637
      $region48: #{residual_block_forward.5} parent=43 // pred_fallthru
        _
    $region44: #{residual_block_forward.5} parent=5 // pred_fallthru
      _
  $region6: #{residual_block_forward.5} parent=0 // loop_footer
    %s14 = sadd.s32 1, %s10
  $region7: #{residual_block_forward.5} parent=0 // loop_footer_branch
    %9 = sbr.rel target = $region3
  $region8: #{residual_block_forward.5} parent=0 // loop_exit
    _

// kernel: residual_block_forward.3
$region0: #{residual_block_forward.3}
  #allocation0 [shape = 'u32[]', space=smem, size = 0x4, offset = 0x4, fixed_abs, tag = 'smem constant byte address 0x4 - core index']
  #allocation1 [shape = 'u32[144,128]{1,0:T(1,128)}', space=vmem, size = 0x12000, scoped, tag = 'internal scratch']
  #allocation2 [shape = 'f32[18,18,128]{2,1,0:T(8,128)}', space=vmem, size = 0x36000, scoped, tag = 'scratch operand']
  %s0 = inlined_call_operand.vmem [shape: f32[2,128,256], index: 0, kind: input, shape index: {}]
  %s1 = inlined_call_operand.vmem [shape: bf16[1152,128], index: 1, kind: input, shape index: {}]
  %s2 = inlined_call_operand.vmem [shape: bf16[2,16,16,128], index: 2, kind: output, shape index: {0}]
  %s3 = inlined_call_operand.vmem [shape: f32[2,1,128], index: 3, kind: output, shape index: {1}]
  %s4 = inlined_call_operand.vmem [shape: f32[2,1,128], index: 4, kind: output, shape index: {2}]
  %5 = xla_tuple %s2, %s3, %s4
  %s6 = sld [smem:[#allocation0]]
  $region57: #{residual_block_forward.3} parent=0
    _
  %s8 = ssub.s32 1, %s6
  %s9 = scalar_select 0, %s8, %s6
  loop: start=0, step=1, limit=4
  $region2: #{residual_block_forward.3} parent=0 // loop_pre_header
    _
  $region3: #{residual_block_forward.3} parent=0 // loop_header
    %s11 = sphi 0, %s15
    %p12 = scmp.ge.s32.totalorder %s11, 4
    %s21 = sphi 0, %s23
    %s24 = sphi 0, %s21
    %s25 = sphi 0, %s24
    %s41 = sphi 0, %s25
    %s45 = sphi 0, %s45
    %s47 = sphi 0, %s45
    %s48 = sphi 0, %s47
    %s62 = sphi 0, %s48
    %s68 = sphi 0, %s70
    %s71 = sphi 0, %s68
    %s72 = sphi 0, %s71
    %s88 = sphi 0, %s72
    %s94 = sphi 0, %s96
    %s97 = sphi 0, %s94
    %s98 = sphi 0, %s97
    %s114 = sphi 0, %s98
    %s120 = sphi 0, %s122
    %s123 = sphi 0, %s120
    %s124 = sphi 0, %s123
    %s140 = sphi 0, %s124
  $region4: #{residual_block_forward.3} parent=0 // loop_header_branch
    %14 = sbr.rel (%p12) target = $region8
  $region5: #{residual_block_forward.3} parent=0 // loop_body
    %s16 = ssub.s32 %s11, 1
    %s17 = ssub.s32 %s11, 2
    %s18 = sadd.s32 %s11, 1
    %s19 = ssub.s32 %s11, %s18
    %p20 = scmp.eq.s32.totalorder %s19, 0
    %s22 = sadd.s32 %s21, 1
    %s23 = scalar_select %p20, %s21, %s22
    %p26 = pneg %p20
    %p27 = scmp.eq.s32.totalorder %s11, 1
    %p28 = por %p26, %p27
    %p29 = scmp.ne.s32.totalorder %s21, %s24
    %p30 = scmp.eq.s32.totalorder %s11, 0
    %p31 = por %p29, %p30
    %p32 = scmp.ne.s32.totalorder %s21, %s24
    %p33 = scmp.eq.s32.totalorder %s16, 1
    %p34 = por %p32, %p33
    %p35 = scmp.ne.s32.totalorder %s24, %s25
    %p36 = scmp.eq.s32.totalorder %s16, 0
    %p37 = por %p35, %p36
    %p38 = scmp.ne.s32.totalorder %s24, %s25
    %p39 = scmp.eq.s32.totalorder %s17, 1
    %p40 = por %p38, %p39
    %p42 = scmp.ne.s32.totalorder %s25, %s41
    %p43 = scmp.eq.s32.totalorder %s17, 0
    %p44 = por %p42, %p43
    %s46 = sadd.s32 %s45, 1
    %p49 = scmp.eq.s32.totalorder %s11, 1
    %p50 = scmp.ne.s32.totalorder %s45, %s47
    %p51 = scmp.eq.s32.totalorder %s11, 0
    %p52 = por %p50, %p51
    %p53 = scmp.ne.s32.totalorder %s45, %s47
    %p54 = scmp.eq.s32.totalorder %s16, 1
    %p55 = por %p53, %p54
    %p56 = scmp.ne.s32.totalorder %s47, %s48
    %p57 = scmp.eq.s32.totalorder %s16, 0
    %p58 = por %p56, %p57
    %p59 = scmp.ne.s32.totalorder %s47, %s48
    %p60 = scmp.eq.s32.totalorder %s17, 1
    %p61 = por %p59, %p60
    %p63 = scmp.ne.s32.totalorder %s48, %s62
    %p64 = scmp.eq.s32.totalorder %s17, 0
    %p65 = por %p63, %p64
    %s66 = ssub.s32 %s11, %s18
    %p67 = scmp.eq.s32.totalorder %s66, 0
    %s69 = sadd.s32 %s68, 1
    %s70 = scalar_select %p67, %s68, %s69
    %p73 = pneg %p67
    %p74 = scmp.eq.s32.totalorder %s11, 1
    %p75 = por %p73, %p74
    %p76 = scmp.ne.s32.totalorder %s68, %s71
    %p77 = scmp.eq.s32.totalorder %s11, 0
    %p78 = por %p76, %p77
    %p79 = scmp.ne.s32.totalorder %s68, %s71
    %p80 = scmp.eq.s32.totalorder %s16, 1
    %p81 = por %p79, %p80
    %p82 = scmp.ne.s32.totalorder %s71, %s72
    %p83 = scmp.eq.s32.totalorder %s16, 0
    %p84 = por %p82, %p83
    %p85 = scmp.ne.s32.totalorder %s71, %s72
    %p86 = scmp.eq.s32.totalorder %s17, 1
    %p87 = por %p85, %p86
    %p89 = scmp.ne.s32.totalorder %s72, %s88
    %p90 = scmp.eq.s32.totalorder %s17, 0
    %p91 = por %p89, %p90
    %s92 = ssub.s32 %s11, %s18
    %p93 = scmp.eq.s32.totalorder %s92, 0
    %s95 = sadd.s32 %s94, 1
    %s96 = scalar_select %p93, %s94, %s95
    %p99 = pneg %p93
    %p100 = scmp.eq.s32.totalorder %s11, 1
    %p101 = por %p99, %p100
    %p102 = scmp.ne.s32.totalorder %s94, %s97
    %p103 = scmp.eq.s32.totalorder %s11, 0
    %p104 = por %p102, %p103
    %p105 = scmp.ne.s32.totalorder %s94, %s97
    %p106 = scmp.eq.s32.totalorder %s16, 1
    %p107 = por %p105, %p106
    %p108 = scmp.ne.s32.totalorder %s97, %s98
    %p109 = scmp.eq.s32.totalorder %s16, 0
    %p110 = por %p108, %p109
    %p111 = scmp.ne.s32.totalorder %s97, %s98
    %p112 = scmp.eq.s32.totalorder %s17, 1
    %p113 = por %p111, %p112
    %p115 = scmp.ne.s32.totalorder %s98, %s114
    %p116 = scmp.eq.s32.totalorder %s17, 0
    %p117 = por %p115, %p116
    %s118 = ssub.s32 %s11, %s18
    %p119 = scmp.eq.s32.totalorder %s118, 0
    %s121 = sadd.s32 %s120, 1
    %s122 = scalar_select %p119, %s120, %s121
    %p125 = pneg %p119
    %p126 = scmp.eq.s32.totalorder %s11, 1
    %p127 = por %p125, %p126
    %p128 = scmp.ne.s32.totalorder %s120, %s123
    %p129 = scmp.eq.s32.totalorder %s11, 0
    %p130 = por %p128, %p129
    %p131 = scmp.ne.s32.totalorder %s120, %s123
    %p132 = scmp.eq.s32.totalorder %s16, 1
    %p133 = por %p131, %p132
    %p134 = scmp.ne.s32.totalorder %s123, %s124
    %p135 = scmp.eq.s32.totalorder %s16, 0
    %p136 = por %p134, %p135
    %p137 = scmp.ne.s32.totalorder %s123, %s124
    %p138 = scmp.eq.s32.totalorder %s17, 1
    %p139 = por %p137, %p138
    %p141 = scmp.ne.s32.totalorder %s124, %s140
    %p142 = scmp.eq.s32.totalorder %s17, 0
    %p143 = por %p141, %p142
    %p144 = scmp.le.s32.totalorder 1, %s11
    %p145 = scmp.lt.s32.totalorder %s11, 3
    %p146 = pnand %p144, %p145
    %p147 = pneg %p146
    // Predicated region
    $region9: #{residual_block_forward.3} parent=5 // pred_check
      _
    $region10: #{residual_block_forward.3} parent=5 // pred_check_branch
      %149 = sbr.rel (%p146) target = $region12
    $region11: #{residual_block_forward.3} parent=5 // pred_region
      %s150 = ssub.s32 %s11, 1
      // Predicated region
      $region13: #{residual_block_forward.3} parent=11 // pred_check
        %p151 = pneg %p58
      $region14: #{residual_block_forward.3} parent=11 // pred_check_branch
        %153 = sbr.rel (%p151) target = $region16
      $region15: #{residual_block_forward.3} parent=11 // pred_region
        _
      $region16: #{residual_block_forward.3} parent=11 // pred_fallthru
        _
    $region12: #{residual_block_forward.3} parent=5 // pred_fallthru
      _
    %p154 = scmp.lt.s32.totalorder %s11, 2
    // Predicated region
    $region17: #{residual_block_forward.3} parent=5 // pred_check
      %p155 = pneg %p154
    $region18: #{residual_block_forward.3} parent=5 // pred_check_branch
      %157 = sbr.rel (%p155) target = $region20
    $region19: #{residual_block_forward.3} parent=5 // pred_region
      // Predicated region
      $region21: #{residual_block_forward.3} parent=19 // pred_check
        %p158 = pneg %p31
      $region22: #{residual_block_forward.3} parent=19 // pred_check_branch
        %160 = sbr.rel (%p158) target = $region24
      $region23: #{residual_block_forward.3} parent=19 // pred_region
        %p161 = scmp.lt.s32.totalorder %s11, 1
        %s162 = scalar_select %p161, %s11, 1
        %s163 = smul.addr %s162, 32
        %s164 = smul.addr %s163, 8
        %s165 = scalar_lea.vmem %s0, %s164
      $region24: #{residual_block_forward.3} parent=19 // pred_fallthru
        _
    $region20: #{residual_block_forward.3} parent=5 // pred_fallthru
      _
    %p166 = scmp.le.s32.totalorder 1, %s11
    %p167 = scmp.lt.s32.totalorder %s11, 3
    %p168 = pnand %p166, %p167
    %p169 = pneg %p168
    // Predicated region
    $region25: #{residual_block_forward.3} parent=5 // pred_check
      _
    $region26: #{residual_block_forward.3} parent=5 // pred_check_branch
      %171 = sbr.rel (%p168) target = $region28
    $region27: #{residual_block_forward.3} parent=5 // pred_region
      %s172 = ssub.s32 %s11, 1
      %p173 = scmp.lt.s32.totalorder %s16, 1
      %s174 = scalar_select %p173, %s16, 1
      %s175 = smul.addr %s174, 32
      %s176 = smul.addr %s175, 8
      %s177 = scalar_lea.vmem %s0, %s176
      %p178 = pneg %p37
      %p179 = pneg %p34
      %p180 = pneg %p58
      %p181 = pneg %p55
      %p182 = pneg %p84
      %p183 = pneg %p81
      %p184 = scmp.lt.s32.totalorder %s16, 1
      %s185 = scalar_select %p184, %s16, 1
      %s186 = smul.addr %s185, 32
      %s187 = smul.addr %s186, 4
      %s188 = scalar_lea.vmem %s2, %s187
      %p189 = pneg %p110
      %p190 = pneg %p107
      %p191 = scmp.lt.s32.totalorder %s16, 1
      %s192 = scalar_select %p191, %s16, 1
      %s193 = scalar_lea.vmem %s3, %s192
      %p194 = pneg %p136
      %p195 = pneg %p133
      %p196 = scmp.lt.s32.totalorder %s16, 1
      %s197 = scalar_select %p196, %s16, 1
      %s198 = scalar_lea.vmem %s4, %s197
      %p199 = scmp.lt.s32.totalorder %s16, 1
      %s200 = scalar_select %p199, %s16, 1
      %s201 = smul.addr %s200, 32
      %s202 = smul.addr %s201, 8
      %s203 = scalar_lea.vmem %s0, %s202
      %p204 = scmp.lt.s32.totalorder %s16, 1
      %s205 = scalar_select %p204, %s16, 1
      %s206 = smul.addr %s205, 32
      %s207 = smul.addr %s206, 4
      %s208 = scalar_lea.vmem %s2, %s207
      %p209 = scmp.lt.s32.totalorder %s16, 1
      %s210 = scalar_select %p209, %s16, 1
      %s211 = scalar_lea.vmem %s3, %s210
      %p212 = scmp.lt.s32.totalorder %s16, 1
      %s213 = scalar_select %p212, %s16, 1
      %s214 = scalar_lea.vmem %s4, %s213
      %v216 = vld [vmem:[%s203] sm:$0xff]
      %v217 = vld [vmem:[%s203 + $0x8] sm:$0xff]
      %v218 = vld [vmem:[%s203 + $0x10] sm:$0xff]
      %v219 = vld [vmem:[%s203 + $0x18] sm:$0xff]
      %v220 = vld [vmem:[%s203 + $0x20] sm:$0xff]
      %v221 = vld [vmem:[%s203 + $0x28] sm:$0xff]
      %v222 = vld [vmem:[%s203 + $0x30] sm:$0xff]
      %v223 = vld [vmem:[%s203 + $0x38] sm:$0xff]
      %v224 = vld [vmem:[%s203 + $0x40] sm:$0xff]
      %v225 = vld [vmem:[%s203 + $0x48] sm:$0xff]
      %v226 = vld [vmem:[%s203 + $0x50] sm:$0xff]
      %v227 = vld [vmem:[%s203 + $0x58] sm:$0xff]
      %v228 = vld [vmem:[%s203 + $0x60] sm:$0xff]
      %v229 = vld [vmem:[%s203 + $0x68] sm:$0xff]
      %v230 = vld [vmem:[%s203 + $0x70] sm:$0xff]
      %v231 = vld [vmem:[%s203 + $0x78] sm:$0xff]
      %v232 = vld [vmem:[%s203 + $0x80] sm:$0xff]
      %v233 = vld [vmem:[%s203 + $0x88] sm:$0xff]
      %v234 = vld [vmem:[%s203 + $0x90] sm:$0xff]
      %v235 = vld [vmem:[%s203 + $0x98] sm:$0xff]
      %v236 = vld [vmem:[%s203 + $0xa0] sm:$0xff]
      %v237 = vld [vmem:[%s203 + $0xa8] sm:$0xff]
      %v238 = vld [vmem:[%s203 + $0xb0] sm:$0xff]
      %v239 = vld [vmem:[%s203 + $0xb8] sm:$0xff]
      %v240 = vld [vmem:[%s203 + $0xc0] sm:$0xff]
      %v241 = vld [vmem:[%s203 + $0xc8] sm:$0xff]
      %v242 = vld [vmem:[%s203 + $0xd0] sm:$0xff]
      %v243 = vld [vmem:[%s203 + $0xd8] sm:$0xff]
      %v244 = vld [vmem:[%s203 + $0xe0] sm:$0xff]
      %v245 = vld [vmem:[%s203 + $0xe8] sm:$0xff]
      %v246 = vld [vmem:[%s203 + $0xf0] sm:$0xff]
      %v247 = vld [vmem:[%s203 + $0xf8] sm:$0xff]
      %248 = vxpose.xlu0.b32.start [1/16] %v216, 128
      %249 = vxpose.xlu0.b32.cont [2/16] %v218, 128
      %250 = vxpose.xlu0.b32.cont [3/16] %v220, 128
      %251 = vxpose.xlu0.b32.cont [4/16] %v222, 128
      %252 = vxpose.xlu0.b32.cont [5/16] %v224, 128
      %253 = vxpose.xlu0.b32.cont [6/16] %v226, 128
      %254 = vxpose.xlu0.b32.cont [7/16] %v228, 128
      %255 = vxpose.xlu0.b32.cont [8/16] %v230, 128
      %256 = vxpose.xlu0.b32.cont [9/16] %v232, 128
      %257 = vxpose.xlu0.b32.cont [10/16] %v234, 128
      %258 = vxpose.xlu0.b32.cont [11/16] %v236, 128
      %259 = vxpose.xlu0.b32.cont [12/16] %v238, 128
      %260 = vxpose.xlu0.b32.cont [13/16] %v240, 128
      %261 = vxpose.xlu0.b32.cont [14/16] %v242, 128
      %262 = vxpose.xlu0.b32.cont [15/16] %v244, 128
      %263 = vxpose.xlu0.b32.end [16/16] %v246, 128
      %v264 = vpop.trf.xlu0
      %v265 = vpop.trf.xlu0
      %v266 = vpop.trf.xlu0
      %v267 = vpop.trf.xlu0
      %v268 = vpop.trf.xlu0
      %v269 = vpop.trf.xlu0
      %v270 = vpop.trf.xlu0
      %v271 = vpop.trf.xlu0
      %v272 = vpop.trf.xlu0
      %v273 = vpop.trf.xlu0
      %v274 = vpop.trf.xlu0
      %v275 = vpop.trf.xlu0
      %v276 = vpop.trf.xlu0
      %v277 = vpop.trf.xlu0
      %v278 = vpop.trf.xlu0
      %v279 = vpop.trf.xlu0
      %280 = vxpose.xlu0.b32.start [1/16] %v217, 128
      %281 = vxpose.xlu0.b32.cont [2/16] %v219, 128
      %282 = vxpose.xlu0.b32.cont [3/16] %v221, 128
      %283 = vxpose.xlu0.b32.cont [4/16] %v223, 128
      %284 = vxpose.xlu0.b32.cont [5/16] %v225, 128
      %285 = vxpose.xlu0.b32.cont [6/16] %v227, 128
      %286 = vxpose.xlu0.b32.cont [7/16] %v229, 128
      %287 = vxpose.xlu0.b32.cont [8/16] %v231, 128
      %288 = vxpose.xlu0.b32.cont [9/16] %v233, 128
      %289 = vxpose.xlu0.b32.cont [10/16] %v235, 128
      %290 = vxpose.xlu0.b32.cont [11/16] %v237, 128
      %291 = vxpose.xlu0.b32.cont [12/16] %v239, 128
      %292 = vxpose.xlu0.b32.cont [13/16] %v241, 128
      %293 = vxpose.xlu0.b32.cont [14/16] %v243, 128
      %294 = vxpose.xlu0.b32.cont [15/16] %v245, 128
      %295 = vxpose.xlu0.b32.end [16/16] %v247, 128
      %v296 = vpop.trf.xlu0
      %v297 = vpop.trf.xlu0
      %v298 = vpop.trf.xlu0
      %v299 = vpop.trf.xlu0
      %v300 = vpop.trf.xlu0
      %v301 = vpop.trf.xlu0
      %v302 = vpop.trf.xlu0
      %v303 = vpop.trf.xlu0
      %v304 = vpop.trf.xlu0
      %v305 = vpop.trf.xlu0
      %v306 = vpop.trf.xlu0
      %v307 = vpop.trf.xlu0
      %v308 = vpop.trf.xlu0
      %v309 = vpop.trf.xlu0
      %v310 = vpop.trf.xlu0
      %v311 = vpop.trf.xlu0
      %312 = vst [vmem:[#allocation2] sm:$0xff] 0.0
      %313 = vst [vmem:[#allocation2 + $0x8] sm:$0xff] 0.0
      %314 = vst [vmem:[#allocation2 + $0x10] sm:$0x3] 0.0
      %315 = vst [vmem:[#allocation2 + $0x18] sm:$0xff] 0.0
      %316 = vst [vmem:[#allocation2 + $0x20] sm:$0xff] 0.0
      %317 = vst [vmem:[#allocation2 + $0x28] sm:$0x3] 0.0
      %318 = vst [vmem:[#allocation2 + $0x30] sm:$0xff] 0.0
      %319 = vst [vmem:[#allocation2 + $0x38] sm:$0xff] 0.0
      %320 = vst [vmem:[#allocation2 + $0x40] sm:$0x3] 0.0
      %321 = vst [vmem:[#allocation2 + $0x48] sm:$0xff] 0.0
      %322 = vst [vmem:[#allocation2 + $0x50] sm:$0xff] 0.0
      %323 = vst [vmem:[#allocation2 + $0x58] sm:$0x3] 0.0
      %324 = vst [vmem:[#allocation2 + $0x60] sm:$0xff] 0.0
      %325 = vst [vmem:[#allocation2 + $0x68] sm:$0xff] 0.0
      %326 = vst [vmem:[#allocation2 + $0x70] sm:$0x3] 0.0
      %327 = vst [vmem:[#allocation2 + $0x78] sm:$0xff] 0.0
      %328 = vst [vmem:[#allocation2 + $0x80] sm:$0xff] 0.0
      %329 = vst [vmem:[#allocation2 + $0x88] sm:$0x3] 0.0
      %330 = vst [vmem:[#allocation2 + $0x90] sm:$0xff] 0.0
      %331 = vst [vmem:[#allocation2 + $0x98] sm:$0xff] 0.0
      %332 = vst [vmem:[#allocation2 + $0xa0] sm:$0x3] 0.0
      %333 = vst [vmem:[#allocation2 + $0xa8] sm:$0xff] 0.0
      %334 = vst [vmem:[#allocation2 + $0xb0] sm:$0xff] 0.0
      %335 = vst [vmem:[#allocation2 + $0xb8] sm:$0x3] 0.0
      %336 = vst [vmem:[#allocation2 + $0xc0] sm:$0xff] 0.0
      %337 = vst [vmem:[#allocation2 + $0xc8] sm:$0xff] 0.0
      %338 = vst [vmem:[#allocation2 + $0xd0] sm:$0x3] 0.0
      %339 = vst [vmem:[#allocation2 + $0xd8] sm:$0xff] 0.0
      %340 = vst [vmem:[#allocation2 + $0xe0] sm:$0xff] 0.0
      %341 = vst [vmem:[#allocation2 + $0xe8] sm:$0x3] 0.0
      %342 = vst [vmem:[#allocation2 + $0xf0] sm:$0xff] 0.0
      %343 = vst [vmem:[#allocation2 + $0xf8] sm:$0xff] 0.0
      %344 = vst [vmem:[#allocation2 + $0x100] sm:$0x3] 0.0
      %345 = vst [vmem:[#allocation2 + $0x108] sm:$0xff] 0.0
      %346 = vst [vmem:[#allocation2 + $0x110] sm:$0xff] 0.0
      %347 = vst [vmem:[#allocation2 + $0x118] sm:$0x3] 0.0
      %348 = vst [vmem:[#allocation2 + $0x120] sm:$0xff] 0.0
      %349 = vst [vmem:[#allocation2 + $0x128] sm:$0xff] 0.0
      %350 = vst [vmem:[#allocation2 + $0x130] sm:$0x3] 0.0
      %351 = vst [vmem:[#allocation2 + $0x138] sm:$0xff] 0.0
      %352 = vst [vmem:[#allocation2 + $0x140] sm:$0xff] 0.0
      %353 = vst [vmem:[#allocation2 + $0x148] sm:$0x3] 0.0
      %354 = vst [vmem:[#allocation2 + $0x150] sm:$0xff] 0.0
      %355 = vst [vmem:[#allocation2 + $0x158] sm:$0xff] 0.0
      %356 = vst [vmem:[#allocation2 + $0x160] sm:$0x3] 0.0
      %357 = vst [vmem:[#allocation2 + $0x168] sm:$0xff] 0.0
      %358 = vst [vmem:[#allocation2 + $0x170] sm:$0xff] 0.0
      %359 = vst [vmem:[#allocation2 + $0x178] sm:$0x3] 0.0
      %360 = vst [vmem:[#allocation2 + $0x180] sm:$0xff] 0.0
      %361 = vst [vmem:[#allocation2 + $0x188] sm:$0xff] 0.0
      %362 = vst [vmem:[#allocation2 + $0x190] sm:$0x3] 0.0
      %363 = vst [vmem:[#allocation2 + $0x198] sm:$0xff] 0.0
      %364 = vst [vmem:[#allocation2 + $0x1a0] sm:$0xff] 0.0
      %365 = vst [vmem:[#allocation2 + $0x1a8] sm:$0x3] 0.0
      %s366 = scalar_lea.vmem [#allocation2], 24
      %367 = vst [vmem:[%s366 + $0x1] sm:$0xff] %v264
      %368 = vst [vmem:[%s366 + $0x9] sm:$0xff] %v265
      %369 = vst [vmem:[%s366 + $0x19] sm:$0xff] %v266
      %370 = vst [vmem:[%s366 + $0x21] sm:$0xff] %v267
      %371 = vst [vmem:[%s366 + $0x31] sm:$0xff] %v268
      %372 = vst [vmem:[%s366 + $0x39] sm:$0xff] %v269
      %373 = vst [vmem:[%s366 + $0x49] sm:$0xff] %v270
      %374 = vst [vmem:[%s366 + $0x51] sm:$0xff] %v271
      %375 = vst [vmem:[%s366 + $0x61] sm:$0xff] %v272
      %376 = vst [vmem:[%s366 + $0x69] sm:$0xff] %v273
      %377 = vst [vmem:[%s366 + $0x79] sm:$0xff] %v274
      %378 = vst [vmem:[%s366 + $0x81] sm:$0xff] %v275
      %379 = vst [vmem:[%s366 + $0x91] sm:$0xff] %v276
      %380 = vst [vmem:[%s366 + $0x99] sm:$0xff] %v277
      %381 = vst [vmem:[%s366 + $0xa9] sm:$0xff] %v278
      %382 = vst [vmem:[%s366 + $0xb1] sm:$0xff] %v279
      %383 = vst [vmem:[%s366 + $0xc1] sm:$0xff] %v296
      %384 = vst [vmem:[%s366 + $0xc9] sm:$0xff] %v297
      %385 = vst [vmem:[%s366 + $0xd9] sm:$0xff] %v298
      %386 = vst [vmem:[%s366 + $0xe1] sm:$0xff] %v299
      %387 = vst [vmem:[%s366 + $0xf1] sm:$0xff] %v300
      %388 = vst [vmem:[%s366 + $0xf9] sm:$0xff] %v301
      %389 = vst [vmem:[%s366 + $0x109] sm:$0xff] %v302
      %390 = vst [vmem:[%s366 + $0x111] sm:$0xff] %v303
      %391 = vst [vmem:[%s366 + $0x121] sm:$0xff] %v304
      %392 = vst [vmem:[%s366 + $0x129] sm:$0xff] %v305
      %393 = vst [vmem:[%s366 + $0x139] sm:$0xff] %v306
      %394 = vst [vmem:[%s366 + $0x141] sm:$0xff] %v307
      %395 = vst [vmem:[%s366 + $0x151] sm:$0xff] %v308
      %396 = vst [vmem:[%s366 + $0x159] sm:$0xff] %v309
      %397 = vst [vmem:[%s366 + $0x169] sm:$0xff] %v310
      %398 = vst [vmem:[%s366 + $0x171] sm:$0xff] %v311
      %v399 = vld [vmem:[#allocation2] sm:$0xff]
      %v400 = vld [vmem:[#allocation2 + $0x8] sm:$0xff]
      %v401 = vld [vmem:[#allocation2 + $0x10] sm:$0x3]
      %v402 = vld [vmem:[#allocation2 + $0x18] sm:$0xff]
      %v403 = vld [vmem:[#allocation2 + $0x20] sm:$0xff]
      %v404 = vld [vmem:[#allocation2 + $0x28] sm:$0x3]
      %v405 = vld [vmem:[#allocation2 + $0x30] sm:$0xff]
      %v406 = vld [vmem:[#allocation2 + $0x38] sm:$0xff]
      %v407 = vld [vmem:[#allocation2 + $0x40] sm:$0x3]
      %v408 = vld [vmem:[#allocation2 + $0x48] sm:$0xff]
      %v409 = vld [vmem:[#allocation2 + $0x50] sm:$0xff]
      %v410 = vld [vmem:[#allocation2 + $0x58] sm:$0x3]
      %v411 = vld [vmem:[#allocation2 + $0x60] sm:$0xff]
      %v412 = vld [vmem:[#allocation2 + $0x68] sm:$0xff]
      %v413 = vld [vmem:[#allocation2 + $0x70] sm:$0x3]
      %v414 = vld [vmem:[#allocation2 + $0x78] sm:$0xff]
      %v415 = vld [vmem:[#allocation2 + $0x80] sm:$0xff]
      %v416 = vld [vmem:[#allocation2 + $0x88] sm:$0x3]
      %v417 = vld [vmem:[#allocation2 + $0x90] sm:$0xff]
      %v418 = vld [vmem:[#allocation2 + $0x98] sm:$0xff]
      %v419 = vld [vmem:[#allocation2 + $0xa0] sm:$0x3]
      %v420 = vld [vmem:[#allocation2 + $0xa8] sm:$0xff]
      %v421 = vld [vmem:[#allocation2 + $0xb0] sm:$0xff]
      %v422 = vld [vmem:[#allocation2 + $0xb8] sm:$0x3]
      %v423 = vld [vmem:[#allocation2 + $0xc0] sm:$0xff]
      %v424 = vld [vmem:[#allocation2 + $0xc8] sm:$0xff]
      %v425 = vld [vmem:[#allocation2 + $0xd0] sm:$0x3]
      %v426 = vld [vmem:[#allocation2 + $0xd8] sm:$0xff]
      %v427 = vld [vmem:[#allocation2 + $0xe0] sm:$0xff]
      %v428 = vld [vmem:[#allocation2 + $0xe8] sm:$0x3]
      %v429 = vld [vmem:[#allocation2 + $0xf0] sm:$0xff]
      %v430 = vld [vmem:[#allocation2 + $0xf8] sm:$0xff]
      %v431 = vld [vmem:[#allocation2 + $0x100] sm:$0x3]
      %v432 = vld [vmem:[#allocation2 + $0x108] sm:$0xff]
      %v433 = vld [vmem:[#allocation2 + $0x110] sm:$0xff]
      %v434 = vld [vmem:[#allocation2 + $0x118] sm:$0x3]
      %v435 = vld [vmem:[#allocation2 + $0x120] sm:$0xff]
      %v436 = vld [vmem:[#allocation2 + $0x128] sm:$0xff]
      %v437 = vld [vmem:[#allocation2 + $0x130] sm:$0x3]
      %v438 = vld [vmem:[#allocation2 + $0x138] sm:$0xff]
      %v439 = vld [vmem:[#allocation2 + $0x140] sm:$0xff]
      %v440 = vld [vmem:[#allocation2 + $0x148] sm:$0x3]
      %v441 = vld [vmem:[#allocation2 + $0x150] sm:$0xff]
      %v442 = vld [vmem:[#allocation2 + $0x158] sm:$0xff]
      %v443 = vld [vmem:[#allocation2 + $0x160] sm:$0x3]
      %v444 = vld [vmem:[#allocation2 + $0x168] sm:$0xff]
      %v445 = vld [vmem:[#allocation2 + $0x170] sm:$0xff]
      %v446 = vld [vmem:[#allocation2 + $0x178] sm:$0x3]
      %v447 = vld [vmem:[#allocation2 + $0x180] sm:$0xff]
      %v448 = vld [vmem:[#allocation2 + $0x188] sm:$0xff]
      %v449 = vld [vmem:[#allocation2 + $0x190] sm:$0x3]
      %v450 = vld [vmem:[#allocation2 + $0x198] sm:$0xff]
      %v451 = vld [vmem:[#allocation2 + $0x1a0] sm:$0xff]
      %v452 = vld [vmem:[#allocation2 + $0x1a8] sm:$0x3]
      %v453 = vpack.c.bf16 %v400, %v399
      %v454 = vpack.c.bf16 %v401, %v401
      %v455 = vpack.c.bf16 %v403, %v402
      %v456 = vpack.c.bf16 %v404, %v404
      %v457 = vpack.c.bf16 %v406, %v405
      %v458 = vpack.c.bf16 %v407, %v407
      %v459 = vpack.c.bf16 %v409, %v408
      %v460 = vpack.c.bf16 %v410, %v410
      %v461 = vpack.c.bf16 %v412, %v411
      %v462 = vpack.c.bf16 %v413, %v413
      %v463 = vpack.c.bf16 %v415, %v414
      %v464 = vpack.c.bf16 %v416, %v416
      %v465 = vpack.c.bf16 %v418, %v417
      %v466 = vpack.c.bf16 %v419, %v419
      %v467 = vpack.c.bf16 %v421, %v420
      %v468 = vpack.c.bf16 %v422, %v422
      %v469 = vpack.c.bf16 %v424, %v423
      %v470 = vpack.c.bf16 %v425, %v425
      %v471 = vpack.c.bf16 %v427, %v426
      %v472 = vpack.c.bf16 %v428, %v428
      %v473 = vpack.c.bf16 %v430, %v429
      %v474 = vpack.c.bf16 %v431, %v431
      %v475 = vpack.c.bf16 %v433, %v432
      %v476 = vpack.c.bf16 %v434, %v434
      %v477 = vpack.c.bf16 %v436, %v435
      %v478 = vpack.c.bf16 %v437, %v437
      %v479 = vpack.c.bf16 %v439, %v438
      %v480 = vpack.c.bf16 %v440, %v440
      %v481 = vpack.c.bf16 %v442, %v441
      %v482 = vpack.c.bf16 %v443, %v443
      %v483 = vpack.c.bf16 %v445, %v444
      %v484 = vpack.c.bf16 %v446, %v446
      %v485 = vpack.c.bf16 %v448, %v447
      %v486 = vpack.c.bf16 %v449, %v449
      %v487 = vpack.c.bf16 %v451, %v450
      %v488 = vpack.c.bf16 %v452, %v452
      %vm489 = vsmask.f32 7424
      %v491 = vshrl.u32 %v453, 16
      %v493 = vshll.u32 %v453, 16
      %v495 = vrot.slane %v493, 1
      %v496 = vor.u32 %v491, %v495
      %v498 = vshll.u32 %v454, 16
      %v500 = vrot.slane %v498, 1
      %v501 = vsel %vm489, %v496, %v500
      %v503 = vshrl.u32 %v455, 16
      %v505 = vshll.u32 %v455, 16
      %v507 = vrot.slane %v505, 1
      %v508 = vor.u32 %v503, %v507
      %v510 = vshll.u32 %v456, 16
      %v512 = vrot.slane %v510, 1
      %v513 = vsel %vm489, %v508, %v512
      %v515 = vshrl.u32 %v457, 16
      %v517 = vshll.u32 %v457, 16
      %v519 = vrot.slane %v517, 1
      %v520 = vor.u32 %v515, %v519
      %v522 = vshll.u32 %v458, 16
      %v524 = vrot.slane %v522, 1
      %v525 = vsel %vm489, %v520, %v524
      %v527 = vshrl.u32 %v459, 16
      %v529 = vshll.u32 %v459, 16
      %v531 = vrot.slane %v529, 1
      %v532 = vor.u32 %v527, %v531
      %v534 = vshll.u32 %v460, 16
      %v536 = vrot.slane %v534, 1
      %v537 = vsel %vm489, %v532, %v536
      %v539 = vshrl.u32 %v461, 16
      %v541 = vshll.u32 %v461, 16
      %v543 = vrot.slane %v541, 1
      %v544 = vor.u32 %v539, %v543
      %v546 = vshll.u32 %v462, 16
      %v548 = vrot.slane %v546, 1
      %v549 = vsel %vm489, %v544, %v548
      %v551 = vshrl.u32 %v463, 16
      %v553 = vshll.u32 %v463, 16
      %v555 = vrot.slane %v553, 1
      %v556 = vor.u32 %v551, %v555
      %v558 = vshll.u32 %v464, 16
      %v560 = vrot.slane %v558, 1
      %v561 = vsel %vm489, %v556, %v560
      %v563 = vshrl.u32 %v465, 16
      %v565 = vshll.u32 %v465, 16
      %v567 = vrot.slane %v565, 1
      %v568 = vor.u32 %v563, %v567
      %v570 = vshll.u32 %v466, 16
      %v572 = vrot.slane %v570, 1
      %v573 = vsel %vm489, %v568, %v572
      %v575 = vshrl.u32 %v467, 16
      %v577 = vshll.u32 %v467, 16
      %v579 = vrot.slane %v577, 1
      %v580 = vor.u32 %v575, %v579
      %v582 = vshll.u32 %v468, 16
      %v584 = vrot.slane %v582, 1
      %v585 = vsel %vm489, %v580, %v584
      %v587 = vshrl.u32 %v469, 16
      %v589 = vshll.u32 %v469, 16
      %v591 = vrot.slane %v589, 1
      %v592 = vor.u32 %v587, %v591
      %v594 = vshll.u32 %v470, 16
      %v596 = vrot.slane %v594, 1
      %v597 = vsel %vm489, %v592, %v596
      %v599 = vshrl.u32 %v471, 16
      %v601 = vshll.u32 %v471, 16
      %v603 = vrot.slane %v601, 1
      %v604 = vor.u32 %v599, %v603
      %v606 = vshll.u32 %v472, 16
      %v608 = vrot.slane %v606, 1
      %v609 = vsel %vm489, %v604, %v608
      %v611 = vshrl.u32 %v473, 16
      %v613 = vshll.u32 %v473, 16
      %v615 = vrot.slane %v613, 1
      %v616 = vor.u32 %v611, %v615
      %v618 = vshll.u32 %v474, 16
      %v620 = vrot.slane %v618, 1
      %v621 = vsel %vm489, %v616, %v620
      %v623 = vshrl.u32 %v475, 16
      %v625 = vshll.u32 %v475, 16
      %v627 = vrot.slane %v625, 1
      %v628 = vor.u32 %v623, %v627
      %v630 = vshll.u32 %v476, 16
      %v632 = vrot.slane %v630, 1
      %v633 = vsel %vm489, %v628, %v632
      %v635 = vshrl.u32 %v477, 16
      %v637 = vshll.u32 %v477, 16
      %v639 = vrot.slane %v637, 1
      %v640 = vor.u32 %v635, %v639
      %v642 = vshll.u32 %v478, 16
      %v644 = vrot.slane %v642, 1
      %v645 = vsel %vm489, %v640, %v644
      %v647 = vshrl.u32 %v479, 16
      %v649 = vshll.u32 %v479, 16
      %v651 = vrot.slane %v649, 1
      %v652 = vor.u32 %v647, %v651
      %v654 = vshll.u32 %v480, 16
      %v656 = vrot.slane %v654, 1
      %v657 = vsel %vm489, %v652, %v656
      %v659 = vshrl.u32 %v481, 16
      %v661 = vshll.u32 %v481, 16
      %v663 = vrot.slane %v661, 1
      %v664 = vor.u32 %v659, %v663
      %v666 = vshll.u32 %v482, 16
      %v668 = vrot.slane %v666, 1
      %v669 = vsel %vm489, %v664, %v668
      %v671 = vshrl.u32 %v483, 16
      %v673 = vshll.u32 %v483, 16
      %v675 = vrot.slane %v673, 1
      %v676 = vor.u32 %v671, %v675
      %v678 = vshll.u32 %v484, 16
      %v680 = vrot.slane %v678, 1
      %v681 = vsel %vm489, %v676, %v680
      %vm730 = vcmask 1046528
      %v731 = vrot.slane %v453, 1
      %v732 = vrot.slane %v454, 1
      %v733 = vsel %vm730, %v731, %v732
      %v734 = vrot.slane %v455, 1
      %v735 = vrot.slane %v456, 1
      %v736 = vsel %vm730, %v734, %v735
      %v737 = vrot.slane %v457, 1
      %v738 = vrot.slane %v458, 1
      %v739 = vsel %vm730, %v737, %v738
      %v740 = vrot.slane %v459, 1
      %v741 = vrot.slane %v460, 1
      %v742 = vsel %vm730, %v740, %v741
      %v743 = vrot.slane %v461, 1
      %v744 = vrot.slane %v462, 1
      %v745 = vsel %vm730, %v743, %v744
      %v746 = vrot.slane %v463, 1
      %v747 = vrot.slane %v464, 1
      %v748 = vsel %vm730, %v746, %v747
      %v749 = vrot.slane %v465, 1
      %v750 = vrot.slane %v466, 1
      %v751 = vsel %vm730, %v749, %v750
      %v752 = vrot.slane %v467, 1
      %v753 = vrot.slane %v468, 1
      %v754 = vsel %vm730, %v752, %v753
      %v755 = vrot.slane %v469, 1
      %v756 = vrot.slane %v470, 1
      %v757 = vsel %vm730, %v755, %v756
      %v758 = vrot.slane %v471, 1
      %v759 = vrot.slane %v472, 1
      %v760 = vsel %vm730, %v758, %v759
      %v761 = vrot.slane %v473, 1
      %v762 = vrot.slane %v474, 1
      %v763 = vsel %vm730, %v761, %v762
      %v764 = vrot.slane %v475, 1
      %v765 = vrot.slane %v476, 1
      %v766 = vsel %vm730, %v764, %v765
      %v767 = vrot.slane %v477, 1
      %v768 = vrot.slane %v478, 1
      %v769 = vsel %vm730, %v767, %v768
      %v770 = vrot.slane %v479, 1
      %v771 = vrot.slane %v480, 1
      %v772 = vsel %vm730, %v770, %v771
      %v773 = vrot.slane %v481, 1
      %v774 = vrot.slane %v482, 1
      %v775 = vsel %vm730, %v773, %v774
      %v776 = vrot.slane %v483, 1
      %v777 = vrot.slane %v484, 1
      %v778 = vsel %vm730, %v776, %v777
      %v796 = vshrl.u32 %v485, 16
      %v798 = vshll.u32 %v485, 16
      %v800 = vrot.slane %v798, 1
      %v801 = vor.u32 %v796, %v800
      %v803 = vshll.u32 %v486, 16
      %v805 = vrot.slane %v803, 1
      %v806 = vsel %vm489, %v801, %v805
      %v810 = vrot.slane %v485, 1
      %v811 = vrot.slane %v486, 1
      %v812 = vsel %vm730, %v810, %v811
      %v815 = vshrl.u32 %v487, 16
      %v817 = vshll.u32 %v487, 16
      %v819 = vrot.slane %v817, 1
      %v820 = vor.u32 %v815, %v819
      %v822 = vshll.u32 %v488, 16
      %v824 = vrot.slane %v822, 1
      %v825 = vsel %vm489, %v820, %v824
      %v829 = vrot.slane %v487, 1
      %v830 = vrot.slane %v488, 1
      %v831 = vsel %vm730, %v829, %v830
      %v833 = vld [vmem:[%s1] sm:$0xf]
      %v834 = vld [vmem:[%s1 + $0x4] sm:$0xf]
      %v835 = vld [vmem:[%s1 + $0x8] sm:$0xf]
      %v836 = vld [vmem:[%s1 + $0xc] sm:$0xf]
      %v837 = vld [vmem:[%s1 + $0x10] sm:$0xf]
      %v838 = vld [vmem:[%s1 + $0x14] sm:$0xf]
      %v839 = vld [vmem:[%s1 + $0x18] sm:$0xf]
      %v840 = vld [vmem:[%s1 + $0x1c] sm:$0xf]
      %v841 = vld [vmem:[%s1 + $0x20] sm:$0xf]
      %v842 = vld [vmem:[%s1 + $0x24] sm:$0xf]
      %v843 = vld [vmem:[%s1 + $0x28] sm:$0xf]
      %v844 = vld [vmem:[%s1 + $0x2c] sm:$0xf]
      %v845 = vld [vmem:[%s1 + $0x30] sm:$0xf]
      %v846 = vld [vmem:[%s1 + $0x34] sm:$0xf]
      %v847 = vld [vmem:[%s1 + $0x38] sm:$0xf]
      %v848 = vld [vmem:[%s1 + $0x3c] sm:$0xf]
      %v849 = vld [vmem:[%s1 + $0x40] sm:$0xf]
      %v850 = vld [vmem:[%s1 + $0x44] sm:$0xf]
      %v851 = vld [vmem:[%s1 + $0x48] sm:$0xf]
      %v852 = vld [vmem:[%s1 + $0x4c] sm:$0xf]
      %v853 = vld [vmem:[%s1 + $0x50] sm:$0xf]
      %v854 = vld [vmem:[%s1 + $0x54] sm:$0xf]
      %v855 = vld [vmem:[%s1 + $0x58] sm:$0xf]
      %v856 = vld [vmem:[%s1 + $0x5c] sm:$0xf]
      %v857 = vld [vmem:[%s1 + $0x60] sm:$0xf]
      %v858 = vld [vmem:[%s1 + $0x64] sm:$0xf]
      %v859 = vld [vmem:[%s1 + $0x68] sm:$0xf]
      %v860 = vld [vmem:[%s1 + $0x6c] sm:$0xf]
      %v861 = vld [vmem:[%s1 + $0x70] sm:$0xf]
      %v862 = vld [vmem:[%s1 + $0x74] sm:$0xf]
      %v863 = vld [vmem:[%s1 + $0x78] sm:$0xf]
      %v864 = vld [vmem:[%s1 + $0x7c] sm:$0xf]
      %v865 = vld [vmem:[%s1 + $0x80] sm:$0xf]
      %v866 = vld [vmem:[%s1 + $0x84] sm:$0xf]
      %v867 = vld [vmem:[%s1 + $0x88] sm:$0xf]
      %v868 = vld [vmem:[%s1 + $0x8c] sm:$0xf]
      %v869 = vld [vmem:[%s1 + $0x90] sm:$0xf]
      %v870 = vld [vmem:[%s1 + $0x94] sm:$0xf]
      %v871 = vld [vmem:[%s1 + $0x98] sm:$0xf]
      %v872 = vld [vmem:[%s1 + $0x9c] sm:$0xf]
      %v873 = vld [vmem:[%s1 + $0xa0] sm:$0xf]
      %v874 = vld [vmem:[%s1 + $0xa4] sm:$0xf]
      %v875 = vld [vmem:[%s1 + $0xa8] sm:$0xf]
      %v876 = vld [vmem:[%s1 + $0xac] sm:$0xf]
      %v877 = vld [vmem:[%s1 + $0xb0] sm:$0xf]
      %v878 = vld [vmem:[%s1 + $0xb4] sm:$0xf]
      %v879 = vld [vmem:[%s1 + $0xb8] sm:$0xf]
      %v880 = vld [vmem:[%s1 + $0xbc] sm:$0xf]
      %v881 = vld [vmem:[%s1 + $0xc0] sm:$0xf]
      %v882 = vld [vmem:[%s1 + $0xc4] sm:$0xf]
      %v883 = vld [vmem:[%s1 + $0xc8] sm:$0xf]
      %v884 = vld [vmem:[%s1 + $0xcc] sm:$0xf]
      %v885 = vld [vmem:[%s1 + $0xd0] sm:$0xf]
      %v886 = vld [vmem:[%s1 + $0xd4] sm:$0xf]
      %v887 = vld [vmem:[%s1 + $0xd8] sm:$0xf]
      %v888 = vld [vmem:[%s1 + $0xdc] sm:$0xf]
      %v889 = vld [vmem:[%s1 + $0xe0] sm:$0xf]
      %v890 = vld [vmem:[%s1 + $0xe4] sm:$0xf]
      %v891 = vld [vmem:[%s1 + $0xe8] sm:$0xf]
      %v892 = vld [vmem:[%s1 + $0xec] sm:$0xf]
      %v893 = vld [vmem:[%s1 + $0xf0] sm:$0xf]
      %v894 = vld [vmem:[%s1 + $0xf4] sm:$0xf]
      %v895 = vld [vmem:[%s1 + $0xf8] sm:$0xf]
      %v896 = vld [vmem:[%s1 + $0xfc] sm:$0xf]
      %v897 = vld [vmem:[%s1 + $0x100] sm:$0xf]
      %v898 = vld [vmem:[%s1 + $0x104] sm:$0xf]
      %v899 = vld [vmem:[%s1 + $0x108] sm:$0xf]
      %v900 = vld [vmem:[%s1 + $0x10c] sm:$0xf]
      %v901 = vld [vmem:[%s1 + $0x110] sm:$0xf]
      %v902 = vld [vmem:[%s1 + $0x114] sm:$0xf]
      %v903 = vld [vmem:[%s1 + $0x118] sm:$0xf]
      %v904 = vld [vmem:[%s1 + $0x11c] sm:$0xf]
      %v905 = vld [vmem:[%s1 + $0x120] sm:$0xf]
      %v906 = vld [vmem:[%s1 + $0x124] sm:$0xf]
      %v907 = vld [vmem:[%s1 + $0x128] sm:$0xf]
      %v908 = vld [vmem:[%s1 + $0x12c] sm:$0xf]
      %v909 = vld [vmem:[%s1 + $0x130] sm:$0xf]
      %v910 = vld [vmem:[%s1 + $0x134] sm:$0xf]
      %v911 = vld [vmem:[%s1 + $0x138] sm:$0xf]
      %v912 = vld [vmem:[%s1 + $0x13c] sm:$0xf]
      %v913 = vld [vmem:[%s1 + $0x140] sm:$0xf]
      %v914 = vld [vmem:[%s1 + $0x144] sm:$0xf]
      %v915 = vld [vmem:[%s1 + $0x148] sm:$0xf]
      %v916 = vld [vmem:[%s1 + $0x14c] sm:$0xf]
      %v917 = vld [vmem:[%s1 + $0x150] sm:$0xf]
      %v918 = vld [vmem:[%s1 + $0x154] sm:$0xf]
      %v919 = vld [vmem:[%s1 + $0x158] sm:$0xf]
      %v920 = vld [vmem:[%s1 + $0x15c] sm:$0xf]
      %v921 = vld [vmem:[%s1 + $0x160] sm:$0xf]
      %v922 = vld [vmem:[%s1 + $0x164] sm:$0xf]
      %v923 = vld [vmem:[%s1 + $0x168] sm:$0xf]
      %v924 = vld [vmem:[%s1 + $0x16c] sm:$0xf]
      %v925 = vld [vmem:[%s1 + $0x170] sm:$0xf]
      %v926 = vld [vmem:[%s1 + $0x174] sm:$0xf]
      %v927 = vld [vmem:[%s1 + $0x178] sm:$0xf]
      %v928 = vld [vmem:[%s1 + $0x17c] sm:$0xf]
      %v929 = vld [vmem:[%s1 + $0x180] sm:$0xf]
      %v930 = vld [vmem:[%s1 + $0x184] sm:$0xf]
      %v931 = vld [vmem:[%s1 + $0x188] sm:$0xf]
      %v932 = vld [vmem:[%s1 + $0x18c] sm:$0xf]
      %v933 = vld [vmem:[%s1 + $0x190] sm:$0xf]
      %v934 = vld [vmem:[%s1 + $0x194] sm:$0xf]
      %v935 = vld [vmem:[%s1 + $0x198] sm:$0xf]
      %v936 = vld [vmem:[%s1 + $0x19c] sm:$0xf]
      %v937 = vld [vmem:[%s1 + $0x1a0] sm:$0xf]
      %v938 = vld [vmem:[%s1 + $0x1a4] sm:$0xf]
      %v939 = vld [vmem:[%s1 + $0x1a8] sm:$0xf]
      %v940 = vld [vmem:[%s1 + $0x1ac] sm:$0xf]
      %v941 = vld [vmem:[%s1 + $0x1b0] sm:$0xf]
      %v942 = vld [vmem:[%s1 + $0x1b4] sm:$0xf]
      %v943 = vld [vmem:[%s1 + $0x1b8] sm:$0xf]
      %v944 = vld [vmem:[%s1 + $0x1bc] sm:$0xf]
      %v945 = vld [vmem:[%s1 + $0x1c0] sm:$0xf]
      %v946 = vld [vmem:[%s1 + $0x1c4] sm:$0xf]
      %v947 = vld [vmem:[%s1 + $0x1c8] sm:$0xf]
      %v948 = vld [vmem:[%s1 + $0x1cc] sm:$0xf]
      %v949 = vld [vmem:[%s1 + $0x1d0] sm:$0xf]
      %v950 = vld [vmem:[%s1 + $0x1d4] sm:$0xf]
      %v951 = vld [vmem:[%s1 + $0x1d8] sm:$0xf]
      %v952 = vld [vmem:[%s1 + $0x1dc] sm:$0xf]
      %v953 = vld [vmem:[%s1 + $0x1e0] sm:$0xf]
      %v954 = vld [vmem:[%s1 + $0x1e4] sm:$0xf]
      %v955 = vld [vmem:[%s1 + $0x1e8] sm:$0xf]
      %v956 = vld [vmem:[%s1 + $0x1ec] sm:$0xf]
      %v957 = vld [vmem:[%s1 + $0x1f0] sm:$0xf]
      %v958 = vld [vmem:[%s1 + $0x1f4] sm:$0xf]
      %v959 = vld [vmem:[%s1 + $0x1f8] sm:$0xf]
      %v960 = vld [vmem:[%s1 + $0x1fc] sm:$0xf]
      %v961 = vld [vmem:[%s1 + $0x200] sm:$0xf]
      %v962 = vld [vmem:[%s1 + $0x204] sm:$0xf]
      %v963 = vld [vmem:[%s1 + $0x208] sm:$0xf]
      %v964 = vld [vmem:[%s1 + $0x20c] sm:$0xf]
      %v965 = vld [vmem:[%s1 + $0x210] sm:$0xf]
      %v966 = vld [vmem:[%s1 + $0x214] sm:$0xf]
      %v967 = vld [vmem:[%s1 + $0x218] sm:$0xf]
      %v968 = vld [vmem:[%s1 + $0x21c] sm:$0xf]
      %v969 = vld [vmem:[%s1 + $0x220] sm:$0xf]
      %v970 = vld [vmem:[%s1 + $0x224] sm:$0xf]
      %v971 = vld [vmem:[%s1 + $0x228] sm:$0xf]
      %v972 = vld [vmem:[%s1 + $0x22c] sm:$0xf]
      %v973 = vld [vmem:[%s1 + $0x230] sm:$0xf]
      %v974 = vld [vmem:[%s1 + $0x234] sm:$0xf]
      %v975 = vld [vmem:[%s1 + $0x238] sm:$0xf]
      %v976 = vld [vmem:[%s1 + $0x23c] sm:$0xf]
      %v1121 = vunpack.c.l.b16 %v833
      %v1122 = vunpack.c.l.b16 %v834
      %v1123 = vunpack.c.l.b16 %v835
      %v1124 = vunpack.c.l.b16 %v836
      %v1125 = vunpack.c.l.b16 %v837
      %v1126 = vunpack.c.l.b16 %v838
      %v1127 = vunpack.c.l.b16 %v839
      %v1128 = vunpack.c.l.b16 %v840
      %v1129 = vunpack.c.l.b16 %v841
      %v1130 = vunpack.c.l.b16 %v842
      %v1131 = vunpack.c.l.b16 %v843
      %v1132 = vunpack.c.l.b16 %v844
      %v1133 = vunpack.c.l.b16 %v845
      %v1134 = vunpack.c.l.b16 %v846
      %v1135 = vunpack.c.l.b16 %v847
      %v1136 = vunpack.c.l.b16 %v848
      %v1137 = vunpack.c.l.b16 %v849
      %v1138 = vunpack.c.l.b16 %v850
      %v1139 = vunpack.c.l.b16 %v851
      %v1140 = vunpack.c.l.b16 %v852
      %v1141 = vunpack.c.l.b16 %v853
      %v1142 = vunpack.c.l.b16 %v854
      %v1143 = vunpack.c.l.b16 %v855
      %v1144 = vunpack.c.l.b16 %v856
      %v1145 = vunpack.c.l.b16 %v857
      %v1146 = vunpack.c.l.b16 %v858
      %v1147 = vunpack.c.l.b16 %v859
      %v1148 = vunpack.c.l.b16 %v860
      %v1149 = vunpack.c.l.b16 %v861
      %v1150 = vunpack.c.l.b16 %v862
      %v1151 = vunpack.c.l.b16 %v863
      %v1152 = vunpack.c.l.b16 %v864
      %v1153 = vunpack.c.l.b16 %v865
      %v1154 = vunpack.c.l.b16 %v866
      %v1155 = vunpack.c.l.b16 %v867
      %v1156 = vunpack.c.l.b16 %v868
      %v1157 = vunpack.c.l.b16 %v869
      %v1158 = vunpack.c.l.b16 %v870
      %v1159 = vunpack.c.l.b16 %v871
      %v1160 = vunpack.c.l.b16 %v872
      %v1161 = vunpack.c.l.b16 %v873
      %v1162 = vunpack.c.l.b16 %v874
      %v1163 = vunpack.c.l.b16 %v875
      %v1164 = vunpack.c.l.b16 %v876
      %v1165 = vunpack.c.l.b16 %v877
      %v1166 = vunpack.c.l.b16 %v878
      %v1167 = vunpack.c.l.b16 %v879
      %v1168 = vunpack.c.l.b16 %v880
      %v1169 = vunpack.c.l.b16 %v881
      %v1170 = vunpack.c.l.b16 %v882
      %v1171 = vunpack.c.l.b16 %v883
      %v1172 = vunpack.c.l.b16 %v884
      %v1173 = vunpack.c.l.b16 %v885
      %v1174 = vunpack.c.l.b16 %v886
      %v1175 = vunpack.c.l.b16 %v887
      %v1176 = vunpack.c.l.b16 %v888
      %v1177 = vunpack.c.l.b16 %v889
      %v1178 = vunpack.c.l.b16 %v890
      %v1179 = vunpack.c.l.b16 %v891
      %v1180 = vunpack.c.l.b16 %v892
      %v1181 = vunpack.c.l.b16 %v893
      %v1182 = vunpack.c.l.b16 %v894
      %v1183 = vunpack.c.l.b16 %v895
      %v1184 = vunpack.c.l.b16 %v896
      %v1185 = vunpack.c.l.b16 %v897
      %v1186 = vunpack.c.l.b16 %v898
      %v1187 = vunpack.c.l.b16 %v899
      %v1188 = vunpack.c.l.b16 %v900
      %v1189 = vunpack.c.l.b16 %v901
      %v1190 = vunpack.c.l.b16 %v902
      %v1191 = vunpack.c.l.b16 %v903
      %v1192 = vunpack.c.l.b16 %v904
      %v1193 = vunpack.c.l.b16 %v905
      %v1194 = vunpack.c.l.b16 %v906
      %v1195 = vunpack.c.l.b16 %v907
      %v1196 = vunpack.c.l.b16 %v908
      %v1197 = vunpack.c.l.b16 %v909
      %v1198 = vunpack.c.l.b16 %v910
      %v1199 = vunpack.c.l.b16 %v911
      %v1200 = vunpack.c.l.b16 %v912
      %v1201 = vunpack.c.l.b16 %v913
      %v1202 = vunpack.c.l.b16 %v914
      %v1203 = vunpack.c.l.b16 %v915
      %v1204 = vunpack.c.l.b16 %v916
      %v1205 = vunpack.c.l.b16 %v917
      %v1206 = vunpack.c.l.b16 %v918
      %v1207 = vunpack.c.l.b16 %v919
      %v1208 = vunpack.c.l.b16 %v920
      %v1209 = vunpack.c.l.b16 %v921
      %v1210 = vunpack.c.l.b16 %v922
      %v1211 = vunpack.c.l.b16 %v923
      %v1212 = vunpack.c.l.b16 %v924
      %v1213 = vunpack.c.l.b16 %v925
      %v1214 = vunpack.c.l.b16 %v926
      %v1215 = vunpack.c.l.b16 %v927
      %v1216 = vunpack.c.l.b16 %v928
      %v1217 = vunpack.c.l.b16 %v929
      %v1218 = vunpack.c.l.b16 %v930
      %v1219 = vunpack.c.l.b16 %v931
      %v1220 = vunpack.c.l.b16 %v932
      %v1221 = vunpack.c.l.b16 %v933
      %v1222 = vunpack.c.l.b16 %v934
      %v1223 = vunpack.c.l.b16 %v935
      %v1224 = vunpack.c.l.b16 %v936
      %v1225 = vunpack.c.l.b16 %v937
      %v1226 = vunpack.c.l.b16 %v938
      %v1227 = vunpack.c.l.b16 %v939
      %v1228 = vunpack.c.l.b16 %v940
      %v1229 = vunpack.c.l.b16 %v941
      %v1230 = vunpack.c.l.b16 %v942
      %v1231 = vunpack.c.l.b16 %v943
      %v1232 = vunpack.c.l.b16 %v944
      %v1233 = vunpack.c.l.b16 %v945
      %v1234 = vunpack.c.l.b16 %v946
      %v1235 = vunpack.c.l.b16 %v947
      %v1236 = vunpack.c.l.b16 %v948
      %v1237 = vunpack.c.l.b16 %v949
      %v1238 = vunpack.c.l.b16 %v950
      %v1239 = vunpack.c.l.b16 %v951
      %v1240 = vunpack.c.l.b16 %v952
      %v1241 = vunpack.c.l.b16 %v953
      %v1242 = vunpack.c.l.b16 %v954
      %v1243 = vunpack.c.l.b16 %v955
      %v1244 = vunpack.c.l.b16 %v956
      %v1245 = vunpack.c.l.b16 %v957
      %v1246 = vunpack.c.l.b16 %v958
      %v1247 = vunpack.c.l.b16 %v959
      %v1248 = vunpack.c.l.b16 %v960
      %v1249 = vunpack.c.l.b16 %v961
      %v1250 = vunpack.c.l.b16 %v962
      %v1251 = vunpack.c.l.b16 %v963
      %v1252 = vunpack.c.l.b16 %v964
      %v1253 = vunpack.c.l.b16 %v965
      %v1254 = vunpack.c.l.b16 %v966
      %v1255 = vunpack.c.l.b16 %v967
      %v1256 = vunpack.c.l.b16 %v968
      %v1257 = vunpack.c.l.b16 %v969
      %v1258 = vunpack.c.l.b16 %v970
      %v1259 = vunpack.c.l.b16 %v971
      %v1260 = vunpack.c.l.b16 %v972
      %v1261 = vunpack.c.l.b16 %v973
      %v1262 = vunpack.c.l.b16 %v974
      %v1263 = vunpack.c.l.b16 %v975
      %v1264 = vunpack.c.l.b16 %v976
      %v1265 = vpack.c.b16 %v1122, %v1121
      %v1266 = vpack.c.b16 %v1124, %v1123
      %v1267 = vpack.c.b16 %v1126, %v1125
      %v1268 = vpack.c.b16 %v1128, %v1127
      %v1269 = vpack.c.b16 %v1130, %v1129
      %v1270 = vpack.c.b16 %v1132, %v1131
      %v1271 = vpack.c.b16 %v1134, %v1133
      %v1272 = vpack.c.b16 %v1136, %v1135
      %v1273 = vpack.c.b16 %v1138, %v1137
      %v1274 = vpack.c.b16 %v1140, %v1139
      %v1275 = vpack.c.b16 %v1142, %v1141
      %v1276 = vpack.c.b16 %v1144, %v1143
      %v1277 = vpack.c.b16 %v1146, %v1145
      %v1278 = vpack.c.b16 %v1148, %v1147
      %v1279 = vpack.c.b16 %v1150, %v1149
      %v1280 = vpack.c.b16 %v1152, %v1151
      %v1281 = vpack.c.b16 %v1154, %v1153
      %v1282 = vpack.c.b16 %v1156, %v1155
      %v1283 = vpack.c.b16 %v1158, %v1157
      %v1284 = vpack.c.b16 %v1160, %v1159
      %v1285 = vpack.c.b16 %v1162, %v1161
      %v1286 = vpack.c.b16 %v1164, %v1163
      %v1287 = vpack.c.b16 %v1166, %v1165
      %v1288 = vpack.c.b16 %v1168, %v1167
      %v1289 = vpack.c.b16 %v1170, %v1169
      %v1290 = vpack.c.b16 %v1172, %v1171
      %v1291 = vpack.c.b16 %v1174, %v1173
      %v1292 = vpack.c.b16 %v1176, %v1175
      %v1293 = vpack.c.b16 %v1178, %v1177
      %v1294 = vpack.c.b16 %v1180, %v1179
      %v1295 = vpack.c.b16 %v1182, %v1181
      %v1296 = vpack.c.b16 %v1184, %v1183
      %v1297 = vpack.c.b16 %v1186, %v1185
      %v1298 = vpack.c.b16 %v1188, %v1187
      %v1299 = vpack.c.b16 %v1190, %v1189
      %v1300 = vpack.c.b16 %v1192, %v1191
      %v1301 = vpack.c.b16 %v1194, %v1193
      %v1302 = vpack.c.b16 %v1196, %v1195
      %v1303 = vpack.c.b16 %v1198, %v1197
      %v1304 = vpack.c.b16 %v1200, %v1199
      %v1305 = vpack.c.b16 %v1202, %v1201
      %v1306 = vpack.c.b16 %v1204, %v1203
      %v1307 = vpack.c.b16 %v1206, %v1205
      %v1308 = vpack.c.b16 %v1208, %v1207
      %v1309 = vpack.c.b16 %v1210, %v1209
      %v1310 = vpack.c.b16 %v1212, %v1211
      %v1311 = vpack.c.b16 %v1214, %v1213
      %v1312 = vpack.c.b16 %v1216, %v1215
      %v1313 = vpack.c.b16 %v1218, %v1217
      %v1314 = vpack.c.b16 %v1220, %v1219
      %v1315 = vpack.c.b16 %v1222, %v1221
      %v1316 = vpack.c.b16 %v1224, %v1223
      %v1317 = vpack.c.b16 %v1226, %v1225
      %v1318 = vpack.c.b16 %v1228, %v1227
      %v1319 = vpack.c.b16 %v1230, %v1229
      %v1320 = vpack.c.b16 %v1232, %v1231
      %v1321 = vpack.c.b16 %v1234, %v1233
      %v1322 = vpack.c.b16 %v1236, %v1235
      %v1323 = vpack.c.b16 %v1238, %v1237
      %v1324 = vpack.c.b16 %v1240, %v1239
      %v1325 = vpack.c.b16 %v1242, %v1241
      %v1326 = vpack.c.b16 %v1244, %v1243
      %v1327 = vpack.c.b16 %v1246, %v1245
      %v1328 = vpack.c.b16 %v1248, %v1247
      %v1329 = vpack.c.b16 %v1250, %v1249
      %v1330 = vpack.c.b16 %v1252, %v1251
      %v1331 = vpack.c.b16 %v1254, %v1253
      %v1332 = vpack.c.b16 %v1256, %v1255
      %v1333 = vpack.c.b16 %v1258, %v1257
      %v1334 = vpack.c.b16 %v1260, %v1259
      %v1335 = vpack.c.b16 %v1262, %v1261
      %v1336 = vpack.c.b16 %v1264, %v1263
      %1409 = vmatprep.subr.bf16.mxu0 0
      %1410 = vmatpush1.bf16.msra.mxu0 %v1265
      %1411 = vmatprep.subr.bf16.mxu0 0
      %1412 = vmatpush1.bf16.msra.mxu0 %v1266
      %1413 = vmatprep.subr.bf16.mxu0 0
      %1414 = vmatpush1.bf16.msra.mxu0 %v1267
      %1415 = vmatprep.subr.bf16.mxu0 0
      %1416 = vmatpush1.bf16.msra.mxu0 %v1268
      %1417 = vmatprep.subr.bf16.mxu0 0
      %1418 = vmatpush1.bf16.msra.mxu0 %v1269
      %1419 = vmatprep.subr.bf16.mxu0 0
      %1420 = vmatpush1.bf16.msra.mxu0 %v1270
      %1421 = vmatprep.subr.bf16.mxu0 0
      %1422 = vmatpush1.bf16.msra.mxu0 %v1271
      %1423 = vmatprep.subr.bf16.mxu0 0
      %1424 = vmatpush1.bf16.msra.mxu0 %v1272
      %1425 = vmatprep.subr.bf16.mxu0 0
      %1426 = vmatpush1.bf16.msra.mxu0 %v1273
      %1427 = vmatprep.subr.bf16.mxu0 0
      %1428 = vmatpush1.bf16.msra.mxu0 %v1274
      %1429 = vmatprep.subr.bf16.mxu0 0
      %1430 = vmatpush1.bf16.msra.mxu0 %v1275
      %1431 = vmatprep.subr.bf16.mxu0 0
      %1432 = vmatpush1.bf16.msra.mxu0 %v1276
      %1433 = vmatprep.subr.bf16.mxu0 0
      %1434 = vmatpush1.bf16.msra.mxu0 %v1277
      %1435 = vmatprep.subr.bf16.mxu0 0
      %1436 = vmatpush1.bf16.msra.mxu0 %v1278
      %1437 = vmatprep.subr.bf16.mxu0 0
      %1438 = vmatpush1.bf16.msra.mxu0 %v1279
      %1439 = vmatprep.subr.bf16.mxu0 0
      %1440 = vmatpush1.bf16.msra.mxu0 %v1280
      %1441 = vmatprep.mubr.bf16.mxu0 %v501
      %1442 = vmatmul.mubr.bf16.gmra.mrb[0].mxu0 %v453
      %v1443 = vpop.f32.mrb[0].mxu0
      %v1444 = vadd.f32 0.0, %v1443
      %v1445 = vpop.f32.mrb[0].mxu0
      %v1446 = vpop.f32.mrb[0].mxu0
      %v1447 = vadd.f32 0.0, %v1446
      %v1448 = vpop.f32.mrb[0].mxu0
      %1449 = vmatprep.mubr.bf16.mxu0 %v513
      %1450 = vmatmul.mubr.bf16.gmra.mrb[0].mxu0 %v455
      %v1451 = vpop.f32.mrb[0].mxu0
      %v1452 = vadd.f32 0.0, %v1451
      %v1453 = vpop.f32.mrb[0].mxu0
      %v1454 = vpop.f32.mrb[0].mxu0
      %v1455 = vadd.f32 0.0, %v1454
      %v1456 = vpop.f32.mrb[0].mxu0
      %1457 = vmatprep.mubr.bf16.mxu0 %v525
      %1458 = vmatmul.mubr.bf16.gmra.mrb[0].mxu0 %v457
      %v1459 = vpop.f32.mrb[0].mxu0
      %v1460 = vadd.f32 0.0, %v1459
      %v1461 = vpop.f32.mrb[0].mxu0
      %v1462 = vpop.f32.mrb[0].mxu0
      %v1463 = vadd.f32 0.0, %v1462
      %v1464 = vpop.f32.mrb[0].mxu0
      %1465 = vmatprep.mubr.bf16.mxu0 %v537
      %1466 = vmatmul.mubr.bf16.gmra.mrb[0].mxu0 %v459
      %v1467 = vpop.f32.mrb[0].mxu0
      %v1468 = vadd.f32 0.0, %v1467
      %v1469 = vpop.f32.mrb[0].mxu0
      %v1470 = vpop.f32.mrb[0].mxu0
      %v1471 = vadd.f32 0.0, %v1470
      %v1472 = vpop.f32.mrb[0].mxu0
      %1473 = vmatprep.mubr.bf16.mxu0 %v549
      %1474 = vmatmul.mubr.bf16.gmra.mrb[0].mxu0 %v461
      %v1475 = vpop.f32.mrb[0].mxu0
      %v1476 = vadd.f32 0.0, %v1475
      %v1477 = vpop.f32.mrb[0].mxu0
      %v1478 = vpop.f32.mrb[0].mxu0
      %v1479 = vadd.f32 0.0, %v1478
      %v1480 = vpop.f32.mrb[0].mxu0
      %1481 = vmatprep.mubr.bf16.mxu0 %v561
      %1482 = vmatmul.mubr.bf16.gmra.mrb[0].mxu0 %v463
      %v1483 = vpop.f32.mrb[0].mxu0
      %v1484 = vadd.f32 0.0, %v1483
      %v1485 = vpop.f32.mrb[0].mxu0
      %v1486 = vpop.f32.mrb[0].mxu0
      %v1487 = vadd.f32 0.0, %v1486
      %v1488 = vpop.f32.mrb[0].mxu0
      %1489 = vmatprep.mubr.bf16.mxu0 %v573
      %1490 = vmatmul.mubr.bf16.gmra.mrb[0].mxu0 %v465
      %v1491 = vpop.f32.mrb[0].mxu0
      %v1492 = vadd.f32 0.0, %v1491
      %v1493 = vpop.f32.mrb[0].mxu0
      %v1494 = vpop.f32.mrb[0].mxu0
      %v1495 = vadd.f32 0.0, %v1494
      %v1496 = vpop.f32.mrb[0].mxu0
      %1497 = vmatprep.mubr.bf16.mxu0 %v585
      %1498 = vmatmul.mubr.bf16.gmra.mrb[0].mxu0 %v467
      %v1499 = vpop.f32.mrb[0].mxu0
      %v1500 = vadd.f32 0.0, %v1499
      %v1501 = vpop.f32.mrb[0].mxu0
      %v1502 = vpop.f32.mrb[0].mxu0
      %v1503 = vadd.f32 0.0, %v1502
      %v1504 = vpop.f32.mrb[0].mxu0
      %1505 = vmatprep.mubr.bf16.mxu0 %v597
      %1506 = vmatmul.mubr.bf16.gmra.mrb[0].mxu0 %v469
      %v1507 = vpop.f32.mrb[0].mxu0
      %v1508 = vadd.f32 0.0, %v1507
      %v1509 = vpop.f32.mrb[0].mxu0
      %v1510 = vpop.f32.mrb[0].mxu0
      %v1511 = vadd.f32 0.0, %v1510
      %v1512 = vpop.f32.mrb[0].mxu0
      %1513 = vmatprep.mubr.bf16.mxu0 %v609
      %1514 = vmatmul.mubr.bf16.gmra.mrb[0].mxu0 %v471
      %v1515 = vpop.f32.mrb[0].mxu0
      %v1516 = vadd.f32 0.0, %v1515
      %v1517 = vpop.f32.mrb[0].mxu0
      %v1518 = vpop.f32.mrb[0].mxu0
      %v1519 = vadd.f32 0.0, %v1518
      %v1520 = vpop.f32.mrb[0].mxu0
      %1521 = vmatprep.mubr.bf16.mxu0 %v621
      %1522 = vmatmul.mubr.bf16.gmra.mrb[0].mxu0 %v473
      %v1523 = vpop.f32.mrb[0].mxu0
      %v1524 = vadd.f32 0.0, %v1523
      %v1525 = vpop.f32.mrb[0].mxu0
      %v1526 = vpop.f32.mrb[0].mxu0
      %v1527 = vadd.f32 0.0, %v1526
      %v1528 = vpop.f32.mrb[0].mxu0
      %1529 = vmatprep.mubr.bf16.mxu0 %v633
      %1530 = vmatmul.mubr.bf16.gmra.mrb[0].mxu0 %v475
      %v1531 = vpop.f32.mrb[0].mxu0
      %v1532 = vadd.f32 0.0, %v1531
      %v1533 = vpop.f32.mrb[0].mxu0
      %v1534 = vpop.f32.mrb[0].mxu0
      %v1535 = vadd.f32 0.0, %v1534
      %v1536 = vpop.f32.mrb[0].mxu0
      %1537 = vmatprep.mubr.bf16.mxu0 %v645
      %1538 = vmatmul.mubr.bf16.gmra.mrb[0].mxu0 %v477
      %v1539 = vpop.f32.mrb[0].mxu0
      %v1540 = vadd.f32 0.0, %v1539
      %v1541 = vpop.f32.mrb[0].mxu0
      %v1542 = vpop.f32.mrb[0].mxu0
      %v1543 = vadd.f32 0.0, %v1542
      %v1544 = vpop.f32.mrb[0].mxu0
      %1545 = vmatprep.mubr.bf16.mxu0 %v657
      %1546 = vmatmul.mubr.bf16.gmra.mrb[0].mxu0 %v479
      %v1547 = vpop.f32.mrb[0].mxu0
      %v1548 = vadd.f32 0.0, %v1547
      %v1549 = vpop.f32.mrb[0].mxu0
      %v1550 = vpop.f32.mrb[0].mxu0
      %v1551 = vadd.f32 0.0, %v1550
      %v1552 = vpop.f32.mrb[0].mxu0
      %1553 = vmatprep.mubr.bf16.mxu0 %v669
      %1554 = vmatmul.mubr.bf16.gmra.mrb[0].mxu0 %v481
      %v1555 = vpop.f32.mrb[0].mxu0
      %v1556 = vadd.f32 0.0, %v1555
      %v1557 = vpop.f32.mrb[0].mxu0
      %v1558 = vpop.f32.mrb[0].mxu0
      %v1559 = vadd.f32 0.0, %v1558
      %v1560 = vpop.f32.mrb[0].mxu0
      %1561 = vmatprep.mubr.bf16.mxu0 %v681
      %1562 = vmatmul.mubr.bf16.gmra.mrb[0].mxu0 %v483
      %v1563 = vpop.f32.mrb[0].mxu0
      %v1564 = vadd.f32 0.0, %v1563
      %v1565 = vpop.f32.mrb[0].mxu0
      %v1566 = vpop.f32.mrb[0].mxu0
      %v1567 = vadd.f32 0.0, %v1566
      %v1568 = vpop.f32.mrb[0].mxu0
      %1569 = vdwg.mxu0
      %1570 = vmatprep.subr.bf16.mxu0 0
      %1571 = vmatpush1.bf16.msra.mxu0 %v1281
      %1572 = vmatprep.subr.bf16.mxu0 0
      %1573 = vmatpush1.bf16.msra.mxu0 %v1282
      %1574 = vmatprep.subr.bf16.mxu0 0
      %1575 = vmatpush1.bf16.msra.mxu0 %v1283
      %1576 = vmatprep.subr.bf16.mxu0 0
      %1577 = vmatpush1.bf16.msra.mxu0 %v1284
      %1578 = vmatprep.subr.bf16.mxu0 0
      %1579 = vmatpush1.bf16.msra.mxu0 %v1285
      %1580 = vmatprep.subr.bf16.mxu0 0
      %1581 = vmatpush1.bf16.msra.mxu0 %v1286
      %1582 = vmatprep.subr.bf16.mxu0 0
      %1583 = vmatpush1.bf16.msra.mxu0 %v1287
      %1584 = vmatprep.subr.bf16.mxu0 0
      %1585 = vmatpush1.bf16.msra.mxu0 %v1288
      %1586 = vmatprep.subr.bf16.mxu0 0
      %1587 = vmatpush1.bf16.msra.mxu0 %v1289
      %1588 = vmatprep.subr.bf16.mxu0 0
      %1589 = vmatpush1.bf16.msra.mxu0 %v1290
      %1590 = vmatprep.subr.bf16.mxu0 0
      %1591 = vmatpush1.bf16.msra.mxu0 %v1291
      %1592 = vmatprep.subr.bf16.mxu0 0
      %1593 = vmatpush1.bf16.msra.mxu0 %v1292
      %1594 = vmatprep.subr.bf16.mxu0 0
      %1595 = vmatpush1.bf16.msra.mxu0 %v1293
      %1596 = vmatprep.subr.bf16.mxu0 0
      %1597 = vmatpush1.bf16.msra.mxu0 %v1294
      %1598 = vmatprep.subr.bf16.mxu0 0
      %1599 = vmatpush1.bf16.msra.mxu0 %v1295
      %1600 = vmatprep.subr.bf16.mxu0 0
      %1601 = vmatpush1.bf16.msra.mxu0 %v1296
      %1602 = vmatprep.mubr.bf16.mxu0 %v455
      %1603 = vmatmul.mubr.bf16.gmra.mrb[0].mxu0 %v733
      %v1604 = vpop.f32.mrb[0].mxu0
      %v1605 = vadd.f32 %v1444, %v1604
      %v1606 = vpop.f32.mrb[0].mxu0
      %v1607 = vpop.f32.mrb[0].mxu0
      %v1608 = vadd.f32 %v1447, %v1607
      %v1609 = vpop.f32.mrb[0].mxu0
      %1610 = vmatprep.mubr.bf16.mxu0 %v457
      %1611 = vmatmul.mubr.bf16.gmra.mrb[0].mxu0 %v736
      %v1612 = vpop.f32.mrb[0].mxu0
      %v1613 = vadd.f32 %v1452, %v1612
      %v1614 = vpop.f32.mrb[0].mxu0
      %v1615 = vpop.f32.mrb[0].mxu0
      %v1616 = vadd.f32 %v1455, %v1615
      %v1617 = vpop.f32.mrb[0].mxu0
      %1618 = vmatprep.mubr.bf16.mxu0 %v459
      %1619 = vmatmul.mubr.bf16.gmra.mrb[0].mxu0 %v739
      %v1620 = vpop.f32.mrb[0].mxu0
      %v1621 = vadd.f32 %v1460, %v1620
      %v1622 = vpop.f32.mrb[0].mxu0
      %v1623 = vpop.f32.mrb[0].mxu0
      %v1624 = vadd.f32 %v1463, %v1623
      %v1625 = vpop.f32.mrb[0].mxu0
      %1626 = vmatprep.mubr.bf16.mxu0 %v461
      %1627 = vmatmul.mubr.bf16.gmra.mrb[0].mxu0 %v742
      %v1628 = vpop.f32.mrb[0].mxu0
      %v1629 = vadd.f32 %v1468, %v1628
      %v1630 = vpop.f32.mrb[0].mxu0
      %v1631 = vpop.f32.mrb[0].mxu0
      %v1632 = vadd.f32 %v1471, %v1631
      %v1633 = vpop.f32.mrb[0].mxu0
      %1634 = vmatprep.mubr.bf16.mxu0 %v463
      %1635 = vmatmul.mubr.bf16.gmra.mrb[0].mxu0 %v745
      %v1636 = vpop.f32.mrb[0].mxu0
      %v1637 = vadd.f32 %v1476, %v1636
      %v1638 = vpop.f32.mrb[0].mxu0
      %v1639 = vpop.f32.mrb[0].mxu0
      %v1640 = vadd.f32 %v1479, %v1639
      %v1641 = vpop.f32.mrb[0].mxu0
      %1642 = vmatprep.mubr.bf16.mxu0 %v465
      %1643 = vmatmul.mubr.bf16.gmra.mrb[0].mxu0 %v748
      %v1644 = vpop.f32.mrb[0].mxu0
      %v1645 = vadd.f32 %v1484, %v1644
      %v1646 = vpop.f32.mrb[0].mxu0
      %v1647 = vpop.f32.mrb[0].mxu0
      %v1648 = vadd.f32 %v1487, %v1647
      %v1649 = vpop.f32.mrb[0].mxu0
      %1650 = vmatprep.mubr.bf16.mxu0 %v467
      %1651 = vmatmul.mubr.bf16.gmra.mrb[0].mxu0 %v751
      %v1652 = vpop.f32.mrb[0].mxu0
      %v1653 = vadd.f32 %v1492, %v1652
      %v1654 = vpop.f32.mrb[0].mxu0
      %v1655 = vpop.f32.mrb[0].mxu0
      %v1656 = vadd.f32 %v1495, %v1655
      %v1657 = vpop.f32.mrb[0].mxu0
      %1658 = vmatprep.mubr.bf16.mxu0 %v469
      %1659 = vmatmul.mubr.bf16.gmra.mrb[0].mxu0 %v754
      %v1660 = vpop.f32.mrb[0].mxu0
      %v1661 = vadd.f32 %v1500, %v1660
      %v1662 = vpop.f32.mrb[0].mxu0
      %v1663 = vpop.f32.mrb[0].mxu0
      %v1664 = vadd.f32 %v1503, %v1663
      %v1665 = vpop.f32.mrb[0].mxu0
      %1666 = vmatprep.mubr.bf16.mxu0 %v471
      %1667 = vmatmul.mubr.bf16.gmra.mrb[0].mxu0 %v757
      %v1668 = vpop.f32.mrb[0].mxu0
      %v1669 = vadd.f32 %v1508, %v1668
      %v1670 = vpop.f32.mrb[0].mxu0
      %v1671 = vpop.f32.mrb[0].mxu0
      %v1672 = vadd.f32 %v1511, %v1671
      %v1673 = vpop.f32.mrb[0].mxu0
      %1674 = vmatprep.mubr.bf16.mxu0 %v473
      %1675 = vmatmul.mubr.bf16.gmra.mrb[0].mxu0 %v760
      %v1676 = vpop.f32.mrb[0].mxu0
      %v1677 = vadd.f32 %v1516, %v1676
      %v1678 = vpop.f32.mrb[0].mxu0
      %v1679 = vpop.f32.mrb[0].mxu0
      %v1680 = vadd.f32 %v1519, %v1679
      %v1681 = vpop.f32.mrb[0].mxu0
      %1682 = vmatprep.mubr.bf16.mxu0 %v475
      %1683 = vmatmul.mubr.bf16.gmra.mrb[0].mxu0 %v763
      %v1684 = vpop.f32.mrb[0].mxu0
      %v1685 = vadd.f32 %v1524, %v1684
      %v1686 = vpop.f32.mrb[0].mxu0
      %v1687 = vpop.f32.mrb[0].mxu0
      %v1688 = vadd.f32 %v1527, %v1687
      %v1689 = vpop.f32.mrb[0].mxu0
      %1690 = vmatprep.mubr.bf16.mxu0 %v477
      %1691 = vmatmul.mubr.bf16.gmra.mrb[0].mxu0 %v766
      %v1692 = vpop.f32.mrb[0].mxu0
      %v1693 = vadd.f32 %v1532, %v1692
      %v1694 = vpop.f32.mrb[0].mxu0
      %v1695 = vpop.f32.mrb[0].mxu0
      %v1696 = vadd.f32 %v1535, %v1695
      %v1697 = vpop.f32.mrb[0].mxu0
      %1698 = vmatprep.mubr.bf16.mxu0 %v479
      %1699 = vmatmul.mubr.bf16.gmra.mrb[0].mxu0 %v769
      %v1700 = vpop.f32.mrb[0].mxu0
      %v1701 = vadd.f32 %v1540, %v1700
      %v1702 = vpop.f32.mrb[0].mxu0
      %v1703 = vpop.f32.mrb[0].mxu0
      %v1704 = vadd.f32 %v1543, %v1703
      %v1705 = vpop.f32.mrb[0].mxu0
      %1706 = vmatprep.mubr.bf16.mxu0 %v481
      %1707 = vmatmul.mubr.bf16.gmra.mrb[0].mxu0 %v772
      %v1708 = vpop.f32.mrb[0].mxu0
      %v1709 = vadd.f32 %v1548, %v1708
      %v1710 = vpop.f32.mrb[0].mxu0
      %v1711 = vpop.f32.mrb[0].mxu0
      %v1712 = vadd.f32 %v1551, %v1711
      %v1713 = vpop.f32.mrb[0].mxu0
      %1714 = vmatprep.mubr.bf16.mxu0 %v483
      %1715 = vmatmul.mubr.bf16.gmra.mrb[0].mxu0 %v775
      %v1716 = vpop.f32.mrb[0].mxu0
      %v1717 = vadd.f32 %v1556, %v1716
      %v1718 = vpop.f32.mrb[0].mxu0
      %v1719 = vpop.f32.mrb[0].mxu0
      %v1720 = vadd.f32 %v1559, %v1719
      %v1721 = vpop.f32.mrb[0].mxu0
      %1722 = vmatprep.mubr.bf16.mxu0 %v485
      %1723 = vmatmul.mubr.bf16.gmra.mrb[0].mxu0 %v778
      %v1724 = vpop.f32.mrb[0].mxu0
      %v1725 = vadd.f32 %v1564, %v1724
      %v1726 = vpop.f32.mrb[0].mxu0
      %v1727 = vpop.f32.mrb[0].mxu0
      %v1728 = vadd.f32 %v1567, %v1727
      %v1729 = vpop.f32.mrb[0].mxu0
      %1730 = vdwg.mxu0
      %1731 = vmatprep.subr.bf16.mxu0 0
      %1732 = vmatpush1.bf16.msra.mxu0 %v1297
      %1733 = vmatprep.subr.bf16.mxu0 0
      %1734 = vmatpush1.bf16.msra.mxu0 %v1298
      %1735 = vmatprep.subr.bf16.mxu0 0
      %1736 = vmatpush1.bf16.msra.mxu0 %v1299
      %1737 = vmatprep.subr.bf16.mxu0 0
      %1738 = vmatpush1.bf16.msra.mxu0 %v1300
      %1739 = vmatprep.subr.bf16.mxu0 0
      %1740 = vmatpush1.bf16.msra.mxu0 %v1301
      %1741 = vmatprep.subr.bf16.mxu0 0
      %1742 = vmatpush1.bf16.msra.mxu0 %v1302
      %1743 = vmatprep.subr.bf16.mxu0 0
      %1744 = vmatpush1.bf16.msra.mxu0 %v1303
      %1745 = vmatprep.subr.bf16.mxu0 0
      %1746 = vmatpush1.bf16.msra.mxu0 %v1304
      %1747 = vmatprep.subr.bf16.mxu0 0
      %1748 = vmatpush1.bf16.msra.mxu0 %v1305
      %1749 = vmatprep.subr.bf16.mxu0 0
      %1750 = vmatpush1.bf16.msra.mxu0 %v1306
      %1751 = vmatprep.subr.bf16.mxu0 0
      %1752 = vmatpush1.bf16.msra.mxu0 %v1307
      %1753 = vmatprep.subr.bf16.mxu0 0
      %1754 = vmatpush1.bf16.msra.mxu0 %v1308
      %1755 = vmatprep.subr.bf16.mxu0 0
      %1756 = vmatpush1.bf16.msra.mxu0 %v1309
      %1757 = vmatprep.subr.bf16.mxu0 0
      %1758 = vmatpush1.bf16.msra.mxu0 %v1310
      %1759 = vmatprep.subr.bf16.mxu0 0
      %1760 = vmatpush1.bf16.msra.mxu0 %v1311
      %1761 = vmatprep.subr.bf16.mxu0 0
      %1762 = vmatpush1.bf16.msra.mxu0 %v1312
      %1763 = vmatprep.mubr.bf16.mxu0 %v736
      %1764 = vmatmul.mubr.bf16.gmra.mrb[0].mxu0 %v513
      %v1765 = vpop.f32.mrb[0].mxu0
      %v1766 = vadd.f32 %v1605, %v1765
      %v1767 = vpop.f32.mrb[0].mxu0
      %v1768 = vpop.f32.mrb[0].mxu0
      %v1769 = vadd.f32 %v1608, %v1768
      %v1770 = vpop.f32.mrb[0].mxu0
      %1771 = vmatprep.mubr.bf16.mxu0 %v739
      %1772 = vmatmul.mubr.bf16.gmra.mrb[0].mxu0 %v525
      %v1773 = vpop.f32.mrb[0].mxu0
      %v1774 = vadd.f32 %v1613, %v1773
      %v1775 = vpop.f32.mrb[0].mxu0
      %v1776 = vpop.f32.mrb[0].mxu0
      %v1777 = vadd.f32 %v1616, %v1776
      %v1778 = vpop.f32.mrb[0].mxu0
      %1779 = vmatprep.mubr.bf16.mxu0 %v742
      %1780 = vmatmul.mubr.bf16.gmra.mrb[0].mxu0 %v537
      %v1781 = vpop.f32.mrb[0].mxu0
      %v1782 = vadd.f32 %v1621, %v1781
      %v1783 = vpop.f32.mrb[0].mxu0
      %v1784 = vpop.f32.mrb[0].mxu0
      %v1785 = vadd.f32 %v1624, %v1784
      %v1786 = vpop.f32.mrb[0].mxu0
      %1787 = vmatprep.mubr.bf16.mxu0 %v745
      %1788 = vmatmul.mubr.bf16.gmra.mrb[0].mxu0 %v549
      %v1789 = vpop.f32.mrb[0].mxu0
      %v1790 = vadd.f32 %v1629, %v1789
      %v1791 = vpop.f32.mrb[0].mxu0
      %v1792 = vpop.f32.mrb[0].mxu0
      %v1793 = vadd.f32 %v1632, %v1792
      %v1794 = vpop.f32.mrb[0].mxu0
      %1795 = vmatprep.mubr.bf16.mxu0 %v748
      %1796 = vmatmul.mubr.bf16.gmra.mrb[0].mxu0 %v561
      %v1797 = vpop.f32.mrb[0].mxu0
      %v1798 = vadd.f32 %v1637, %v1797
      %v1799 = vpop.f32.mrb[0].mxu0
      %v1800 = vpop.f32.mrb[0].mxu0
      %v1801 = vadd.f32 %v1640, %v1800
      %v1802 = vpop.f32.mrb[0].mxu0
      %1803 = vmatprep.mubr.bf16.mxu0 %v751
      %1804 = vmatmul.mubr.bf16.gmra.mrb[0].mxu0 %v573
      %v1805 = vpop.f32.mrb[0].mxu0
      %v1806 = vadd.f32 %v1645, %v1805
      %v1807 = vpop.f32.mrb[0].mxu0
      %v1808 = vpop.f32.mrb[0].mxu0
      %v1809 = vadd.f32 %v1648, %v1808
      %v1810 = vpop.f32.mrb[0].mxu0
      %1811 = vmatprep.mubr.bf16.mxu0 %v754
      %1812 = vmatmul.mubr.bf16.gmra.mrb[0].mxu0 %v585
      %v1813 = vpop.f32.mrb[0].mxu0
      %v1814 = vadd.f32 %v1653, %v1813
      %v1815 = vpop.f32.mrb[0].mxu0
      %v1816 = vpop.f32.mrb[0].mxu0
      %v1817 = vadd.f32 %v1656, %v1816
      %v1818 = vpop.f32.mrb[0].mxu0
      %1819 = vmatprep.mubr.bf16.mxu0 %v757
      %1820 = vmatmul.mubr.bf16.gmra.mrb[0].mxu0 %v597
      %v1821 = vpop.f32.mrb[0].mxu0
      %v1822 = vadd.f32 %v1661, %v1821
      %v1823 = vpop.f32.mrb[0].mxu0
      %v1824 = vpop.f32.mrb[0].mxu0
      %v1825 = vadd.f32 %v1664, %v1824
      %v1826 = vpop.f32.mrb[0].mxu0
      %1827 = vmatprep.mubr.bf16.mxu0 %v760
      %1828 = vmatmul.mubr.bf16.gmra.mrb[0].mxu0 %v609
      %v1829 = vpop.f32.mrb[0].mxu0
      %v1830 = vadd.f32 %v1669, %v1829
      %v1831 = vpop.f32.mrb[0].mxu0
      %v1832 = vpop.f32.mrb[0].mxu0
      %v1833 = vadd.f32 %v1672, %v1832
      %v1834 = vpop.f32.mrb[0].mxu0
      %1835 = vmatprep.mubr.bf16.mxu0 %v763
      %1836 = vmatmul.mubr.bf16.gmra.mrb[0].mxu0 %v621
      %v1837 = vpop.f32.mrb[0].mxu0
      %v1838 = vadd.f32 %v1677, %v1837
      %v1839 = vpop.f32.mrb[0].mxu0
      %v1840 = vpop.f32.mrb[0].mxu0
      %v1841 = vadd.f32 %v1680, %v1840
      %v1842 = vpop.f32.mrb[0].mxu0
      %1843 = vmatprep.mubr.bf16.mxu0 %v766
      %1844 = vmatmul.mubr.bf16.gmra.mrb[0].mxu0 %v633
      %v1845 = vpop.f32.mrb[0].mxu0
      %v1846 = vadd.f32 %v1685, %v1845
      %v1847 = vpop.f32.mrb[0].mxu0
      %v1848 = vpop.f32.mrb[0].mxu0
      %v1849 = vadd.f32 %v1688, %v1848
      %v1850 = vpop.f32.mrb[0].mxu0
      %1851 = vmatprep.mubr.bf16.mxu0 %v769
      %1852 = vmatmul.mubr.bf16.gmra.mrb[0].mxu0 %v645
      %v1853 = vpop.f32.mrb[0].mxu0
      %v1854 = vadd.f32 %v1693, %v1853
      %v1855 = vpop.f32.mrb[0].mxu0
      %v1856 = vpop.f32.mrb[0].mxu0
      %v1857 = vadd.f32 %v1696, %v1856
      %v1858 = vpop.f32.mrb[0].mxu0
      %1859 = vmatprep.mubr.bf16.mxu0 %v772
      %1860 = vmatmul.mubr.bf16.gmra.mrb[0].mxu0 %v657
      %v1861 = vpop.f32.mrb[0].mxu0
      %v1862 = vadd.f32 %v1701, %v1861
      %v1863 = vpop.f32.mrb[0].mxu0
      %v1864 = vpop.f32.mrb[0].mxu0
      %v1865 = vadd.f32 %v1704, %v1864
      %v1866 = vpop.f32.mrb[0].mxu0
      %1867 = vmatprep.mubr.bf16.mxu0 %v775
      %1868 = vmatmul.mubr.bf16.gmra.mrb[0].mxu0 %v669
      %v1869 = vpop.f32.mrb[0].mxu0
      %v1870 = vadd.f32 %v1709, %v1869
      %v1871 = vpop.f32.mrb[0].mxu0
      %v1872 = vpop.f32.mrb[0].mxu0
      %v1873 = vadd.f32 %v1712, %v1872
      %v1874 = vpop.f32.mrb[0].mxu0
      %1875 = vmatprep.mubr.bf16.mxu0 %v778
      %1876 = vmatmul.mubr.bf16.gmra.mrb[0].mxu0 %v681
      %v1877 = vpop.f32.mrb[0].mxu0
      %v1878 = vadd.f32 %v1717, %v1877
      %v1879 = vpop.f32.mrb[0].mxu0
      %v1880 = vpop.f32.mrb[0].mxu0
      %v1881 = vadd.f32 %v1720, %v1880
      %v1882 = vpop.f32.mrb[0].mxu0
      %1883 = vmatprep.mubr.bf16.mxu0 %v812
      %1884 = vmatmul.mubr.bf16.gmra.mrb[0].mxu0 %v806
      %v1885 = vpop.f32.mrb[0].mxu0
      %v1886 = vadd.f32 %v1725, %v1885
      %v1887 = vpop.f32.mrb[0].mxu0
      %v1888 = vpop.f32.mrb[0].mxu0
      %v1889 = vadd.f32 %v1728, %v1888
      %v1890 = vpop.f32.mrb[0].mxu0
      %1891 = vdwg.mxu0
      %1892 = vmatprep.subr.bf16.mxu0 0
      %1893 = vmatpush1.bf16.msra.mxu0 %v1313
      %1894 = vmatprep.subr.bf16.mxu0 0
      %1895 = vmatpush1.bf16.msra.mxu0 %v1314
      %1896 = vmatprep.subr.bf16.mxu0 0
      %1897 = vmatpush1.bf16.msra.mxu0 %v1315
      %1898 = vmatprep.subr.bf16.mxu0 0
      %1899 = vmatpush1.bf16.msra.mxu0 %v1316
      %1900 = vmatprep.subr.bf16.mxu0 0
      %1901 = vmatpush1.bf16.msra.mxu0 %v1317
      %1902 = vmatprep.subr.bf16.mxu0 0
      %1903 = vmatpush1.bf16.msra.mxu0 %v1318
      %1904 = vmatprep.subr.bf16.mxu0 0
      %1905 = vmatpush1.bf16.msra.mxu0 %v1319
      %1906 = vmatprep.subr.bf16.mxu0 0
      %1907 = vmatpush1.bf16.msra.mxu0 %v1320
      %1908 = vmatprep.subr.bf16.mxu0 0
      %1909 = vmatpush1.bf16.msra.mxu0 %v1321
      %1910 = vmatprep.subr.bf16.mxu0 0
      %1911 = vmatpush1.bf16.msra.mxu0 %v1322
      %1912 = vmatprep.subr.bf16.mxu0 0
      %1913 = vmatpush1.bf16.msra.mxu0 %v1323
      %1914 = vmatprep.subr.bf16.mxu0 0
      %1915 = vmatpush1.bf16.msra.mxu0 %v1324
      %1916 = vmatprep.subr.bf16.mxu0 0
      %1917 = vmatpush1.bf16.msra.mxu0 %v1325
      %1918 = vmatprep.subr.bf16.mxu0 0
      %1919 = vmatpush1.bf16.msra.mxu0 %v1326
      %1920 = vmatprep.subr.bf16.mxu0 0
      %1921 = vmatpush1.bf16.msra.mxu0 %v1327
      %1922 = vmatprep.subr.bf16.mxu0 0
      %1923 = vmatpush1.bf16.msra.mxu0 %v1328
      %1924 = vmatprep.mubr.bf16.mxu0 %v525
      %1925 = vmatmul.mubr.bf16.gmra.mrb[0].mxu0 %v457
      %v1926 = vpop.f32.mrb[0].mxu0
      %v1927 = vadd.f32 %v1766, %v1926
      %v1928 = vpop.f32.mrb[0].mxu0
      %v1929 = vpop.f32.mrb[0].mxu0
      %v1930 = vadd.f32 %v1769, %v1929
      %v1931 = vpop.f32.mrb[0].mxu0
      %1932 = vmatprep.mubr.bf16.mxu0 %v537
      %1933 = vmatmul.mubr.bf16.gmra.mrb[0].mxu0 %v459
      %v1934 = vpop.f32.mrb[0].mxu0
      %v1935 = vadd.f32 %v1774, %v1934
      %v1936 = vpop.f32.mrb[0].mxu0
      %v1937 = vpop.f32.mrb[0].mxu0
      %v1938 = vadd.f32 %v1777, %v1937
      %v1939 = vpop.f32.mrb[0].mxu0
      %1940 = vmatprep.mubr.bf16.mxu0 %v549
      %1941 = vmatmul.mubr.bf16.gmra.mrb[0].mxu0 %v461
      %v1942 = vpop.f32.mrb[0].mxu0
      %v1943 = vadd.f32 %v1782, %v1942
      %v1944 = vpop.f32.mrb[0].mxu0
      %v1945 = vpop.f32.mrb[0].mxu0
      %v1946 = vadd.f32 %v1785, %v1945
      %v1947 = vpop.f32.mrb[0].mxu0
      %1948 = vmatprep.mubr.bf16.mxu0 %v561
      %1949 = vmatmul.mubr.bf16.gmra.mrb[0].mxu0 %v463
      %v1950 = vpop.f32.mrb[0].mxu0
      %v1951 = vadd.f32 %v1790, %v1950
      %v1952 = vpop.f32.mrb[0].mxu0
      %v1953 = vpop.f32.mrb[0].mxu0
      %v1954 = vadd.f32 %v1793, %v1953
      %v1955 = vpop.f32.mrb[0].mxu0
      %1956 = vmatprep.mubr.bf16.mxu0 %v573
      %1957 = vmatmul.mubr.bf16.gmra.mrb[0].mxu0 %v465
      %v1958 = vpop.f32.mrb[0].mxu0
      %v1959 = vadd.f32 %v1798, %v1958
      %v1960 = vpop.f32.mrb[0].mxu0
      %v1961 = vpop.f32.mrb[0].mxu0
      %v1962 = vadd.f32 %v1801, %v1961
      %v1963 = vpop.f32.mrb[0].mxu0
      %1964 = vmatprep.mubr.bf16.mxu0 %v585
      %1965 = vmatmul.mubr.bf16.gmra.mrb[0].mxu0 %v467
      %v1966 = vpop.f32.mrb[0].mxu0
      %v1967 = vadd.f32 %v1806, %v1966
      %v1968 = vpop.f32.mrb[0].mxu0
      %v1969 = vpop.f32.mrb[0].mxu0
      %v1970 = vadd.f32 %v1809, %v1969
      %v1971 = vpop.f32.mrb[0].mxu0
      %1972 = vmatprep.mubr.bf16.mxu0 %v597
      %1973 = vmatmul.mubr.bf16.gmra.mrb[0].mxu0 %v469
      %v1974 = vpop.f32.mrb[0].mxu0
      %v1975 = vadd.f32 %v1814, %v1974
      %v1976 = vpop.f32.mrb[0].mxu0
      %v1977 = vpop.f32.mrb[0].mxu0
      %v1978 = vadd.f32 %v1817, %v1977
      %v1979 = vpop.f32.mrb[0].mxu0
      %1980 = vmatprep.mubr.bf16.mxu0 %v609
      %1981 = vmatmul.mubr.bf16.gmra.mrb[0].mxu0 %v471
      %v1982 = vpop.f32.mrb[0].mxu0
      %v1983 = vadd.f32 %v1822, %v1982
      %v1984 = vpop.f32.mrb[0].mxu0
      %v1985 = vpop.f32.mrb[0].mxu0
      %v1986 = vadd.f32 %v1825, %v1985
      %v1987 = vpop.f32.mrb[0].mxu0
      %1988 = vmatprep.mubr.bf16.mxu0 %v621
      %1989 = vmatmul.mubr.bf16.gmra.mrb[0].mxu0 %v473
      %v1990 = vpop.f32.mrb[0].mxu0
      %v1991 = vadd.f32 %v1830, %v1990
      %v1992 = vpop.f32.mrb[0].mxu0
      %v1993 = vpop.f32.mrb[0].mxu0
      %v1994 = vadd.f32 %v1833, %v1993
      %v1995 = vpop.f32.mrb[0].mxu0
      %1996 = vmatprep.mubr.bf16.mxu0 %v633
      %1997 = vmatmul.mubr.bf16.gmra.mrb[0].mxu0 %v475
      %v1998 = vpop.f32.mrb[0].mxu0
      %v1999 = vadd.f32 %v1838, %v1998
      %v2000 = vpop.f32.mrb[0].mxu0
      %v2001 = vpop.f32.mrb[0].mxu0
      %v2002 = vadd.f32 %v1841, %v2001
      %v2003 = vpop.f32.mrb[0].mxu0
      %2004 = vmatprep.mubr.bf16.mxu0 %v645
      %2005 = vmatmul.mubr.bf16.gmra.mrb[0].mxu0 %v477
      %v2006 = vpop.f32.mrb[0].mxu0
      %v2007 = vadd.f32 %v1846, %v2006
      %v2008 = vpop.f32.mrb[0].mxu0
      %v2009 = vpop.f32.mrb[0].mxu0
      %v2010 = vadd.f32 %v1849, %v2009
      %v2011 = vpop.f32.mrb[0].mxu0
      %2012 = vmatprep.mubr.bf16.mxu0 %v657
      %2013 = vmatmul.mubr.bf16.gmra.mrb[0].mxu0 %v479
      %v2014 = vpop.f32.mrb[0].mxu0
      %v2015 = vadd.f32 %v1854, %v2014
      %v2016 = vpop.f32.mrb[0].mxu0
      %v2017 = vpop.f32.mrb[0].mxu0
      %v2018 = vadd.f32 %v1857, %v2017
      %v2019 = vpop.f32.mrb[0].mxu0
      %2020 = vmatprep.mubr.bf16.mxu0 %v669
      %2021 = vmatmul.mubr.bf16.gmra.mrb[0].mxu0 %v481
      %v2022 = vpop.f32.mrb[0].mxu0
      %v2023 = vadd.f32 %v1862, %v2022
      %v2024 = vpop.f32.mrb[0].mxu0
      %v2025 = vpop.f32.mrb[0].mxu0
      %v2026 = vadd.f32 %v1865, %v2025
      %v2027 = vpop.f32.mrb[0].mxu0
      %2028 = vmatprep.mubr.bf16.mxu0 %v681
      %2029 = vmatmul.mubr.bf16.gmra.mrb[0].mxu0 %v483
      %v2030 = vpop.f32.mrb[0].mxu0
      %v2031 = vadd.f32 %v1870, %v2030
      %v2032 = vpop.f32.mrb[0].mxu0
      %v2033 = vpop.f32.mrb[0].mxu0
      %v2034 = vadd.f32 %v1873, %v2033
      %v2035 = vpop.f32.mrb[0].mxu0
      %2036 = vmatprep.mubr.bf16.mxu0 %v806
      %2037 = vmatmul.mubr.bf16.gmra.mrb[0].mxu0 %v485
      %v2038 = vpop.f32.mrb[0].mxu0
      %v2039 = vadd.f32 %v1878, %v2038
      %v2040 = vpop.f32.mrb[0].mxu0
      %v2041 = vpop.f32.mrb[0].mxu0
      %v2042 = vadd.f32 %v1881, %v2041
      %v2043 = vpop.f32.mrb[0].mxu0
      %2044 = vmatprep.mubr.bf16.mxu0 %v825
      %2045 = vmatmul.mubr.bf16.gmra.mrb[0].mxu0 %v487
      %v2046 = vpop.f32.mrb[0].mxu0
      %v2047 = vadd.f32 %v1886, %v2046
      %v2048 = vpop.f32.mrb[0].mxu0
      %v2049 = vpop.f32.mrb[0].mxu0
      %v2050 = vadd.f32 %v1889, %v2049
      %v2051 = vpop.f32.mrb[0].mxu0
      %2052 = vdwg.mxu0
      %2053 = vmatprep.subr.bf16.mxu0 0
      %2054 = vmatpush1.bf16.msra.mxu0 %v1329
      %2055 = vmatprep.subr.bf16.mxu0 0
      %2056 = vmatpush1.bf16.msra.mxu0 %v1330
      %2057 = vmatprep.subr.bf16.mxu0 0
      %2058 = vmatpush1.bf16.msra.mxu0 %v1331
      %2059 = vmatprep.subr.bf16.mxu0 0
      %2060 = vmatpush1.bf16.msra.mxu0 %v1332
      %2061 = vmatprep.subr.bf16.mxu0 0
      %2062 = vmatpush1.bf16.msra.mxu0 %v1333
      %2063 = vmatprep.subr.bf16.mxu0 0
      %2064 = vmatpush1.bf16.msra.mxu0 %v1334
      %2065 = vmatprep.subr.bf16.mxu0 0
      %2066 = vmatpush1.bf16.msra.mxu0 %v1335
      %2067 = vmatprep.subr.bf16.mxu0 0
      %2068 = vmatpush1.bf16.msra.mxu0 %v1336
      %2069 = vmatprep.subr.bf16.mxu0 0
      %2070 = vmatpush1.bf16.msra.mxu0 0
      %2071 = vmatprep.subr.bf16.mxu0 0
      %2072 = vmatpush1.bf16.msra.mxu0 0
      %2073 = vmatprep.subr.bf16.mxu0 0
      %2074 = vmatpush1.bf16.msra.mxu0 0
      %2075 = vmatprep.subr.bf16.mxu0 0
      %2076 = vmatpush1.bf16.msra.mxu0 0
      %2077 = vmatprep.subr.bf16.mxu0 0
      %2078 = vmatpush1.bf16.msra.mxu0 0
      %2079 = vmatprep.subr.bf16.mxu0 0
      %2080 = vmatpush1.bf16.msra.mxu0 0
      %2081 = vmatprep.subr.bf16.mxu0 0
      %2082 = vmatpush1.bf16.msra.mxu0 0
      %2083 = vmatprep.subr.bf16.mxu0 0
      %2084 = vmatpush1.bf16.msra.mxu0 0
      %2085 = vmatprep.mubr.bf16.mxu0 0
      %2086 = vmatmul.mubr.bf16.gmra.mrb[0].mxu0 %v739
      %v2087 = vpop.f32.mrb[0].mxu0
      %v2088 = vadd.f32 %v1927, %v2087
      %v2089 = vpop.f32.mrb[0].mxu0
      %v2090 = vpop.f32.mrb[0].mxu0
      %v2091 = vadd.f32 %v1930, %v2090
      %v2092 = vpop.f32.mrb[0].mxu0
      %2093 = vmatprep.mubr.bf16.mxu0 0
      %2094 = vmatmul.mubr.bf16.gmra.mrb[0].mxu0 %v742
      %v2095 = vpop.f32.mrb[0].mxu0
      %v2096 = vadd.f32 %v1935, %v2095
      %v2097 = vpop.f32.mrb[0].mxu0
      %v2098 = vpop.f32.mrb[0].mxu0
      %v2099 = vadd.f32 %v1938, %v2098
      %v2100 = vpop.f32.mrb[0].mxu0
      %2101 = vmatprep.mubr.bf16.mxu0 0
      %2102 = vmatmul.mubr.bf16.gmra.mrb[0].mxu0 %v745
      %v2103 = vpop.f32.mrb[0].mxu0
      %v2104 = vadd.f32 %v1943, %v2103
      %v2105 = vpop.f32.mrb[0].mxu0
      %v2106 = vpop.f32.mrb[0].mxu0
      %v2107 = vadd.f32 %v1946, %v2106
      %v2108 = vpop.f32.mrb[0].mxu0
      %2109 = vmatprep.mubr.bf16.mxu0 0
      %2110 = vmatmul.mubr.bf16.gmra.mrb[0].mxu0 %v748
      %v2111 = vpop.f32.mrb[0].mxu0
      %v2112 = vadd.f32 %v1951, %v2111
      %v2113 = vpop.f32.mrb[0].mxu0
      %v2114 = vpop.f32.mrb[0].mxu0
      %v2115 = vadd.f32 %v1954, %v2114
      %v2116 = vpop.f32.mrb[0].mxu0
      %2117 = vmatprep.mubr.bf16.mxu0 0
      %2118 = vmatmul.mubr.bf16.gmra.mrb[0].mxu0 %v751
      %v2119 = vpop.f32.mrb[0].mxu0
      %v2120 = vadd.f32 %v1959, %v2119
      %v2121 = vpop.f32.mrb[0].mxu0
      %v2122 = vpop.f32.mrb[0].mxu0
      %v2123 = vadd.f32 %v1962, %v2122
      %v2124 = vpop.f32.mrb[0].mxu0
      %2125 = vmatprep.mubr.bf16.mxu0 0
      %2126 = vmatmul.mubr.bf16.gmra.mrb[0].mxu0 %v754
      %v2127 = vpop.f32.mrb[0].mxu0
      %v2128 = vadd.f32 %v1967, %v2127
      %v2129 = vpop.f32.mrb[0].mxu0
      %v2130 = vpop.f32.mrb[0].mxu0
      %v2131 = vadd.f32 %v1970, %v2130
      %v2132 = vpop.f32.mrb[0].mxu0
      %2133 = vmatprep.mubr.bf16.mxu0 0
      %2134 = vmatmul.mubr.bf16.gmra.mrb[0].mxu0 %v757
      %v2135 = vpop.f32.mrb[0].mxu0
      %v2136 = vadd.f32 %v1975, %v2135
      %v2137 = vpop.f32.mrb[0].mxu0
      %v2138 = vpop.f32.mrb[0].mxu0
      %v2139 = vadd.f32 %v1978, %v2138
      %v2140 = vpop.f32.mrb[0].mxu0
      %2141 = vmatprep.mubr.bf16.mxu0 0
      %2142 = vmatmul.mubr.bf16.gmra.mrb[0].mxu0 %v760
      %v2143 = vpop.f32.mrb[0].mxu0
      %v2144 = vadd.f32 %v1983, %v2143
      %v2145 = vpop.f32.mrb[0].mxu0
      %v2146 = vpop.f32.mrb[0].mxu0
      %v2147 = vadd.f32 %v1986, %v2146
      %v2148 = vpop.f32.mrb[0].mxu0
      %2149 = vmatprep.mubr.bf16.mxu0 0
      %2150 = vmatmul.mubr.bf16.gmra.mrb[0].mxu0 %v763
      %v2151 = vpop.f32.mrb[0].mxu0
      %v2152 = vadd.f32 %v1991, %v2151
      %v2153 = vpop.f32.mrb[0].mxu0
      %v2154 = vpop.f32.mrb[0].mxu0
      %v2155 = vadd.f32 %v1994, %v2154
      %v2156 = vpop.f32.mrb[0].mxu0
      %2157 = vmatprep.mubr.bf16.mxu0 0
      %2158 = vmatmul.mubr.bf16.gmra.mrb[0].mxu0 %v766
      %v2159 = vpop.f32.mrb[0].mxu0
      %v2160 = vadd.f32 %v1999, %v2159
      %v2161 = vpop.f32.mrb[0].mxu0
      %v2162 = vpop.f32.mrb[0].mxu0
      %v2163 = vadd.f32 %v2002, %v2162
      %v2164 = vpop.f32.mrb[0].mxu0
      %2165 = vmatprep.mubr.bf16.mxu0 0
      %2166 = vmatmul.mubr.bf16.gmra.mrb[0].mxu0 %v769
      %v2167 = vpop.f32.mrb[0].mxu0
      %v2168 = vadd.f32 %v2007, %v2167
      %v2169 = vpop.f32.mrb[0].mxu0
      %v2170 = vpop.f32.mrb[0].mxu0
      %v2171 = vadd.f32 %v2010, %v2170
      %v2172 = vpop.f32.mrb[0].mxu0
      %2173 = vmatprep.mubr.bf16.mxu0 0
      %2174 = vmatmul.mubr.bf16.gmra.mrb[0].mxu0 %v772
      %v2175 = vpop.f32.mrb[0].mxu0
      %v2176 = vadd.f32 %v2015, %v2175
      %v2177 = vpop.f32.mrb[0].mxu0
      %v2178 = vpop.f32.mrb[0].mxu0
      %v2179 = vadd.f32 %v2018, %v2178
      %v2180 = vpop.f32.mrb[0].mxu0
      %2181 = vmatprep.mubr.bf16.mxu0 0
      %2182 = vmatmul.mubr.bf16.gmra.mrb[0].mxu0 %v775
      %v2183 = vpop.f32.mrb[0].mxu0
      %v2184 = vadd.f32 %v2023, %v2183
      %v2185 = vpop.f32.mrb[0].mxu0
      %v2186 = vpop.f32.mrb[0].mxu0
      %v2187 = vadd.f32 %v2026, %v2186
      %v2188 = vpop.f32.mrb[0].mxu0
      %2189 = vmatprep.mubr.bf16.mxu0 0
      %2190 = vmatmul.mubr.bf16.gmra.mrb[0].mxu0 %v778
      %v2191 = vpop.f32.mrb[0].mxu0
      %v2192 = vadd.f32 %v2031, %v2191
      %v2193 = vpop.f32.mrb[0].mxu0
      %v2194 = vpop.f32.mrb[0].mxu0
      %v2195 = vadd.f32 %v2034, %v2194
      %v2196 = vpop.f32.mrb[0].mxu0
      %2197 = vmatprep.mubr.bf16.mxu0 0
      %2198 = vmatmul.mubr.bf16.gmra.mrb[0].mxu0 %v812
      %v2199 = vpop.f32.mrb[0].mxu0
      %v2200 = vadd.f32 %v2039, %v2199
      %v2201 = vpop.f32.mrb[0].mxu0
      %v2202 = vpop.f32.mrb[0].mxu0
      %v2203 = vadd.f32 %v2042, %v2202
      %v2204 = vpop.f32.mrb[0].mxu0
      %2205 = vmatprep.mubr.bf16.mxu0 0
      %2206 = vmatmul.mubr.bf16.gmra.mrb[0].mxu0 %v831
      %v2207 = vpop.f32.mrb[0].mxu0
      %v2208 = vadd.f32 %v2047, %v2207
      %v2209 = vpop.f32.mrb[0].mxu0
      %v2210 = vpop.f32.mrb[0].mxu0
      %v2211 = vadd.f32 %v2050, %v2210
      %v2212 = vpop.f32.mrb[0].mxu0
      %2213 = vdwg.mxu0
      %v2214 = vpack.c.bf16 %v2091, %v2088
      %v2215 = vpack.c.bf16 %v2099, %v2096
      %v2216 = vpack.c.bf16 %v2107, %v2104
      %v2217 = vpack.c.bf16 %v2115, %v2112
      %v2218 = vpack.c.bf16 %v2123, %v2120
      %v2219 = vpack.c.bf16 %v2131, %v2128
      %v2220 = vpack.c.bf16 %v2139, %v2136
      %v2221 = vpack.c.bf16 %v2147, %v2144
      %v2222 = vpack.c.bf16 %v2155, %v2152
      %v2223 = vpack.c.bf16 %v2163, %v2160
      %v2224 = vpack.c.bf16 %v2171, %v2168
      %v2225 = vpack.c.bf16 %v2179, %v2176
      %v2226 = vpack.c.bf16 %v2187, %v2184
      %v2227 = vpack.c.bf16 %v2195, %v2192
      %v2228 = vpack.c.bf16 %v2203, %v2200
      %v2229 = vpack.c.bf16 %v2211, %v2208
      %v2246 = vunpack.c.l.b16 %v2214
      %v2247 = vunpack.c.h.b16 %v2214
      %v2248 = vunpack.c.l.b16 %v2215
      %v2249 = vunpack.c.h.b16 %v2215
      %v2250 = vunpack.c.l.b16 %v2216
      %v2251 = vunpack.c.h.b16 %v2216
      %v2252 = vunpack.c.l.b16 %v2217
      %v2253 = vunpack.c.h.b16 %v2217
      %v2254 = vunpack.c.l.b16 %v2218
      %v2255 = vunpack.c.h.b16 %v2218
      %v2256 = vunpack.c.l.b16 %v2219
      %v2257 = vunpack.c.h.b16 %v2219
      %v2258 = vunpack.c.l.b16 %v2220
      %v2259 = vunpack.c.h.b16 %v2220
      %v2260 = vunpack.c.l.b16 %v2221
      %v2261 = vunpack.c.h.b16 %v2221
      %v2262 = vunpack.c.l.b16 %v2222
      %v2263 = vunpack.c.h.b16 %v2222
      %v2264 = vunpack.c.l.b16 %v2223
      %v2265 = vunpack.c.h.b16 %v2223
      %v2266 = vunpack.c.l.b16 %v2224
      %v2267 = vunpack.c.h.b16 %v2224
      %v2268 = vunpack.c.l.b16 %v2225
      %v2269 = vunpack.c.h.b16 %v2225
      %v2270 = vunpack.c.l.b16 %v2226
      %v2271 = vunpack.c.h.b16 %v2226
      %v2272 = vunpack.c.l.b16 %v2227
      %v2273 = vunpack.c.h.b16 %v2227
      %v2274 = vunpack.c.l.b16 %v2228
      %v2275 = vunpack.c.h.b16 %v2228
      %v2276 = vunpack.c.l.b16 %v2229
      %v2277 = vunpack.c.h.b16 %v2229
      %v2278 = vpack.c.b16 %v2246, %v2246
      %v2279 = vpack.c.b16 %v2247, %v2247
      %v2280 = vpack.c.b16 %v2248, %v2248
      %v2281 = vpack.c.b16 %v2249, %v2249
      %v2282 = vpack.c.b16 %v2250, %v2250
      %v2283 = vpack.c.b16 %v2251, %v2251
      %v2284 = vpack.c.b16 %v2252, %v2252
      %v2285 = vpack.c.b16 %v2253, %v2253
      %v2286 = vpack.c.b16 %v2254, %v2254
      %v2287 = vpack.c.b16 %v2255, %v2255
      %v2288 = vpack.c.b16 %v2256, %v2256
      %v2289 = vpack.c.b16 %v2257, %v2257
      %v2290 = vpack.c.b16 %v2258, %v2258
      %v2291 = vpack.c.b16 %v2259, %v2259
      %v2292 = vpack.c.b16 %v2260, %v2260
      %v2293 = vpack.c.b16 %v2261, %v2261
      %v2294 = vpack.c.b16 %v2262, %v2262
      %v2295 = vpack.c.b16 %v2263, %v2263
      %v2296 = vpack.c.b16 %v2264, %v2264
      %v2297 = vpack.c.b16 %v2265, %v2265
      %v2298 = vpack.c.b16 %v2266, %v2266
      %v2299 = vpack.c.b16 %v2267, %v2267
      %v2300 = vpack.c.b16 %v2268, %v2268
      %v2301 = vpack.c.b16 %v2269, %v2269
      %v2302 = vpack.c.b16 %v2270, %v2270
      %v2303 = vpack.c.b16 %v2271, %v2271
      %v2304 = vpack.c.b16 %v2272, %v2272
      %v2305 = vpack.c.b16 %v2273, %v2273
      %v2306 = vpack.c.b16 %v2274, %v2274
      %v2307 = vpack.c.b16 %v2275, %v2275
      %v2308 = vpack.c.b16 %v2276, %v2276
      %v2309 = vpack.c.b16 %v2277, %v2277
      %2342 = vst [vmem:[%s208] sm:$0xf] %v2278
      %2343 = vst [vmem:[%s208 + $0x4] sm:$0xf] %v2279
      %2344 = vst [vmem:[%s208 + $0x8] sm:$0xf] %v2280
      %2345 = vst [vmem:[%s208 + $0xc] sm:$0xf] %v2281
      %2346 = vst [vmem:[%s208 + $0x10] sm:$0xf] %v2282
      %2347 = vst [vmem:[%s208 + $0x14] sm:$0xf] %v2283
      %2348 = vst [vmem:[%s208 + $0x18] sm:$0xf] %v2284
      %2349 = vst [vmem:[%s208 + $0x1c] sm:$0xf] %v2285
      %2350 = vst [vmem:[%s208 + $0x20] sm:$0xf] %v2286
      %2351 = vst [vmem:[%s208 + $0x24] sm:$0xf] %v2287
      %2352 = vst [vmem:[%s208 + $0x28] sm:$0xf] %v2288
      %2353 = vst [vmem:[%s208 + $0x2c] sm:$0xf] %v2289
      %2354 = vst [vmem:[%s208 + $0x30] sm:$0xf] %v2290
      %2355 = vst [vmem:[%s208 + $0x34] sm:$0xf] %v2291
      %2356 = vst [vmem:[%s208 + $0x38] sm:$0xf] %v2292
      %2357 = vst [vmem:[%s208 + $0x3c] sm:$0xf] %v2293
      %2358 = vst [vmem:[%s208 + $0x40] sm:$0xf] %v2294
      %2359 = vst [vmem:[%s208 + $0x44] sm:$0xf] %v2295
      %2360 = vst [vmem:[%s208 + $0x48] sm:$0xf] %v2296
      %2361 = vst [vmem:[%s208 + $0x4c] sm:$0xf] %v2297
      %2362 = vst [vmem:[%s208 + $0x50] sm:$0xf] %v2298
      %2363 = vst [vmem:[%s208 + $0x54] sm:$0xf] %v2299
      %2364 = vst [vmem:[%s208 + $0x58] sm:$0xf] %v2300
      %2365 = vst [vmem:[%s208 + $0x5c] sm:$0xf] %v2301
      %2366 = vst [vmem:[%s208 + $0x60] sm:$0xf] %v2302
      %2367 = vst [vmem:[%s208 + $0x64] sm:$0xf] %v2303
      %2368 = vst [vmem:[%s208 + $0x68] sm:$0xf] %v2304
      %2369 = vst [vmem:[%s208 + $0x6c] sm:$0xf] %v2305
      %2370 = vst [vmem:[%s208 + $0x70] sm:$0xf] %v2306
      %2371 = vst [vmem:[%s208 + $0x74] sm:$0xf] %v2307
      %2372 = vst [vmem:[%s208 + $0x78] sm:$0xf] %v2308
      %2373 = vst [vmem:[%s208 + $0x7c] sm:$0xf] %v2309
      %v2374 = vadd.f32 %v2088, %v2091
      %v2375 = vadd.f32 %v2374, %v2096
      %v2376 = vadd.f32 %v2375, %v2099
      %v2377 = vadd.f32 %v2376, %v2104
      %v2378 = vadd.f32 %v2377, %v2107
      %v2379 = vadd.f32 %v2378, %v2112
      %v2380 = vadd.f32 %v2379, %v2115
      %v2381 = vadd.f32 %v2380, %v2120
      %v2382 = vadd.f32 %v2381, %v2123
      %v2383 = vadd.f32 %v2382, %v2128
      %v2384 = vadd.f32 %v2383, %v2131
      %v2385 = vadd.f32 %v2384, %v2136
      %v2386 = vadd.f32 %v2385, %v2139
      %v2387 = vadd.f32 %v2386, %v2144
      %v2388 = vadd.f32 %v2387, %v2147
      %v2389 = vadd.f32 %v2388, %v2152
      %v2390 = vadd.f32 %v2389, %v2155
      %v2391 = vadd.f32 %v2390, %v2160
      %v2392 = vadd.f32 %v2391, %v2163
      %v2393 = vadd.f32 %v2392, %v2168
      %v2394 = vadd.f32 %v2393, %v2171
      %v2395 = vadd.f32 %v2394, %v2176
      %v2396 = vadd.f32 %v2395, %v2179
      %v2397 = vadd.f32 %v2396, %v2184
      %v2398 = vadd.f32 %v2397, %v2187
      %v2399 = vadd.f32 %v2398, %v2192
      %v2400 = vadd.f32 %v2399, %v2195
      %v2401 = vadd.f32 %v2400, %v2200
      %v2402 = vadd.f32 %v2401, %v2203
      %v2403 = vadd.f32 %v2402, %v2208
      %v2404 = vadd.f32 %v2403, %v2211
      %v2405 = vrot.slane %v2404, 4
      %v2406 = vadd.f32 %v2404, %v2405
      %v2407 = vrot.slane %v2406, 2
      %v2408 = vadd.f32 %v2406, %v2407
      %v2409 = vrot.slane %v2408, 1
      %v2410 = vadd.f32 %v2408, %v2409
      %2411 = vst [vmem:[%s211] sm:$0x1] %v2410
      %v2412 = vmul.f32 %v2088, %v2088
      %v2413 = vmul.f32 %v2091, %v2091
      %v2414 = vmul.f32 %v2096, %v2096
      %v2415 = vmul.f32 %v2099, %v2099
      %v2416 = vmul.f32 %v2104, %v2104
      %v2417 = vmul.f32 %v2107, %v2107
      %v2418 = vmul.f32 %v2112, %v2112
      %v2419 = vmul.f32 %v2115, %v2115
      %v2420 = vmul.f32 %v2120, %v2120
      %v2421 = vmul.f32 %v2123, %v2123
      %v2422 = vmul.f32 %v2128, %v2128
      %v2423 = vmul.f32 %v2131, %v2131
      %v2424 = vmul.f32 %v2136, %v2136
      %v2425 = vmul.f32 %v2139, %v2139
      %v2426 = vmul.f32 %v2144, %v2144
      %v2427 = vmul.f32 %v2147, %v2147
      %v2428 = vmul.f32 %v2152, %v2152
      %v2429 = vmul.f32 %v2155, %v2155
      %v2430 = vmul.f32 %v2160, %v2160
      %v2431 = vmul.f32 %v2163, %v2163
      %v2432 = vmul.f32 %v2168, %v2168
      %v2433 = vmul.f32 %v2171, %v2171
      %v2434 = vmul.f32 %v2176, %v2176
      %v2435 = vmul.f32 %v2179, %v2179
      %v2436 = vmul.f32 %v2184, %v2184
      %v2437 = vmul.f32 %v2187, %v2187
      %v2438 = vmul.f32 %v2192, %v2192
      %v2439 = vmul.f32 %v2195, %v2195
      %v2440 = vmul.f32 %v2200, %v2200
      %v2441 = vmul.f32 %v2203, %v2203
      %v2442 = vmul.f32 %v2208, %v2208
      %v2443 = vmul.f32 %v2211, %v2211
      %v2444 = vadd.f32 %v2412, %v2413
      %v2445 = vadd.f32 %v2444, %v2414
      %v2446 = vadd.f32 %v2445, %v2415
      %v2447 = vadd.f32 %v2446, %v2416
      %v2448 = vadd.f32 %v2447, %v2417
      %v2449 = vadd.f32 %v2448, %v2418
      %v2450 = vadd.f32 %v2449, %v2419
      %v2451 = vadd.f32 %v2450, %v2420
      %v2452 = vadd.f32 %v2451, %v2421
      %v2453 = vadd.f32 %v2452, %v2422
      %v2454 = vadd.f32 %v2453, %v2423
      %v2455 = vadd.f32 %v2454, %v2424
      %v2456 = vadd.f32 %v2455, %v2425
      %v2457 = vadd.f32 %v2456, %v2426
      %v2458 = vadd.f32 %v2457, %v2427
      %v2459 = vadd.f32 %v2458, %v2428
      %v2460 = vadd.f32 %v2459, %v2429
      %v2461 = vadd.f32 %v2460, %v2430
      %v2462 = vadd.f32 %v2461, %v2431
      %v2463 = vadd.f32 %v2462, %v2432
      %v2464 = vadd.f32 %v2463, %v2433
      %v2465 = vadd.f32 %v2464, %v2434
      %v2466 = vadd.f32 %v2465, %v2435
      %v2467 = vadd.f32 %v2466, %v2436
      %v2468 = vadd.f32 %v2467, %v2437
      %v2469 = vadd.f32 %v2468, %v2438
      %v2470 = vadd.f32 %v2469, %v2439
      %v2471 = vadd.f32 %v2470, %v2440
      %v2472 = vadd.f32 %v2471, %v2441
      %v2473 = vadd.f32 %v2472, %v2442
      %v2474 = vadd.f32 %v2473, %v2443
      %v2475 = vrot.slane %v2474, 4
      %v2476 = vadd.f32 %v2474, %v2475
      %v2477 = vrot.slane %v2476, 2
      %v2478 = vadd.f32 %v2476, %v2477
      %v2479 = vrot.slane %v2478, 1
      %v2480 = vadd.f32 %v2478, %v2479
      %2481 = vst [vmem:[%s214] sm:$0x1] %v2480
      %p2482 = scmp.lt.s32.totalorder %s16, 1
      %s2483 = scalar_select %p2482, %s16, 1
      %s2484 = smul.addr %s2483, 32
      %s2485 = smul.addr %s2484, 4
      %s2486 = scalar_lea.vmem %s2, %s2485
      %p2487 = scmp.lt.s32.totalorder %s16, 1
      %s2488 = scalar_select %p2487, %s16, 1
      %s2489 = scalar_lea.vmem %s3, %s2488
      %p2490 = scmp.lt.s32.totalorder %s16, 1
      %s2491 = scalar_select %p2490, %s16, 1
      %s2492 = scalar_lea.vmem %s4, %s2491
      // Predicated region
      $region29: #{residual_block_forward.3} parent=27 // pred_check
        %p2493 = pneg %p81
      $region30: #{residual_block_forward.3} parent=27 // pred_check_branch
        %2495 = sbr.rel (%p2493) target = $region32
      $region31: #{residual_block_forward.3} parent=27 // pred_region
        _
      $region32: #{residual_block_forward.3} parent=27 // pred_fallthru
        _
      // Predicated region
      $region33: #{residual_block_forward.3} parent=27 // pred_check
        %p2496 = pneg %p107
      $region34: #{residual_block_forward.3} parent=27 // pred_check_branch
        %2498 = sbr.rel (%p2496) target = $region36
      $region35: #{residual_block_forward.3} parent=27 // pred_region
        _
      $region36: #{residual_block_forward.3} parent=27 // pred_fallthru
        _
      // Predicated region
      $region37: #{residual_block_forward.3} parent=27 // pred_check
        %p2499 = pneg %p133
      $region38: #{residual_block_forward.3} parent=27 // pred_check_branch
        %2501 = sbr.rel (%p2499) target = $region40
      $region39: #{residual_block_forward.3} parent=27 // pred_region
        _
      $region40: #{residual_block_forward.3} parent=27 // pred_fallthru
        _
    $region28: #{residual_block_forward.3} parent=5 // pred_fallthru
      _
    %p2502 = scmp.le.s32.totalorder 2, %s11
    // Predicated region
    $region41: #{residual_block_forward.3} parent=5 // pred_check
      %p2503 = pneg %p2502
    $region42: #{residual_block_forward.3} parent=5 // pred_check_branch
      %2505 = sbr.rel (%p2503) target = $region44
    $region43: #{residual_block_forward.3} parent=5 // pred_region
      %s2506 = ssub.s32 %s11, 2
      // Predicated region
      $region45: #{residual_block_forward.3} parent=43 // pred_check
        %p2507 = pneg %p87
      $region46: #{residual_block_forward.3} parent=43 // pred_check_branch
        %2509 = sbr.rel (%p2507) target = $region48
      $region47: #{residual_block_forward.3} parent=43 // pred_region
        %p2510 = scmp.lt.s32.totalorder %s17, 1
        %s2511 = scalar_select %p2510, %s17, 1
        %s2512 = smul.addr %s2511, 32
        %s2513 = smul.addr %s2512, 4
        %s2514 = scalar_lea.vmem %s2, %s2513
      $region48: #{residual_block_forward.3} parent=43 // pred_fallthru
        _
      // Predicated region
      $region49: #{residual_block_forward.3} parent=43 // pred_check
        %p2515 = pneg %p113
      $region50: #{residual_block_forward.3} parent=43 // pred_check_branch
        %2517 = sbr.rel (%p2515) target = $region52
      $region51: #{residual_block_forward.3} parent=43 // pred_region
        %p2518 = scmp.lt.s32.totalorder %s17, 1
        %s2519 = scalar_select %p2518, %s17, 1
        %s2520 = scalar_lea.vmem %s3, %s2519
      $region52: #{residual_block_forward.3} parent=43 // pred_fallthru
        _
      // Predicated region
      $region53: #{residual_block_forward.3} parent=43 // pred_check
        %p2521 = pneg %p139
      $region54: #{residual_block_forward.3} parent=43 // pred_check_branch
        %2523 = sbr.rel (%p2521) target = $region56
      $region55: #{residual_block_forward.3} parent=43 // pred_region
        %p2524 = scmp.lt.s32.totalorder %s17, 1
        %s2525 = scalar_select %p2524, %s17, 1
        %s2526 = scalar_lea.vmem %s4, %s2525
      $region56: #{residual_block_forward.3} parent=43 // pred_fallthru
        _
    $region44: #{residual_block_forward.3} parent=5 // pred_fallthru
      _
  $region6: #{residual_block_forward.3} parent=0 // loop_footer
    %s15 = sadd.s32 1, %s11
  $region7: #{residual_block_forward.3} parent=0 // loop_footer_branch
    %10 = sbr.rel target = $region3
  $region8: #{residual_block_forward.3} parent=0 // loop_exit
    _

// kernel: residual_block_forward.4
$region0: #{residual_block_forward.4}
  #allocation0 [shape = 'u32[]', space=smem, size = 0x4, offset = 0x4, fixed_abs, tag = 'smem constant byte address 0x4 - core index']
  #allocation1 [shape = 'u32[144,128]{1,0:T(1,128)}', space=vmem, size = 0x12000, scoped, tag = 'internal scratch']
  #allocation2 [shape = 'f32[18,18,128]{2,1,0:T(8,128)}', space=vmem, size = 0x36000, scoped, tag = 'scratch operand']
  %s0 = inlined_call_operand.vmem [shape: bf16[2,16,16,128], index: 0, kind: input, shape index: {}]
  %s1 = inlined_call_operand.vmem [shape: f32[1,1,128], index: 1, kind: input, shape index: {}]
  %s2 = inlined_call_operand.vmem [shape: f32[1,1,128], index: 2, kind: input, shape index: {}]
  %s3 = inlined_call_operand.vmem [shape: bf16[1152,128], index: 3, kind: input, shape index: {}]
  %s4 = inlined_call_operand.vmem [shape: bf16[2,128,256], index: 4, kind: output, shape index: {0}]
  %s5 = inlined_call_operand.vmem [shape: f32[2,1,128], index: 5, kind: output, shape index: {1}]
  %s6 = inlined_call_operand.vmem [shape: f32[2,1,128], index: 6, kind: output, shape index: {2}]
  %7 = xla_tuple %s4, %s5, %s6
  %s8 = sld [smem:[#allocation0]]
  $region65: #{residual_block_forward.4} parent=0
    _
  %s10 = ssub.s32 1, %s8
  %s11 = scalar_select 0, %s10, %s8
  loop: start=0, step=1, limit=4
  $region2: #{residual_block_forward.4} parent=0 // loop_pre_header
    _
  $region3: #{residual_block_forward.4} parent=0 // loop_header
    %s13 = sphi 0, %s17
    %p14 = scmp.ge.s32.totalorder %s13, 4
    %s23 = sphi 0, %s25
    %s26 = sphi 0, %s23
    %s27 = sphi 0, %s26
    %s43 = sphi 0, %s27
    %s47 = sphi 0, %s47
    %s49 = sphi 0, %s47
    %s50 = sphi 0, %s49
    %s64 = sphi 0, %s50
    %s68 = sphi 0, %s68
    %s70 = sphi 0, %s68
    %s71 = sphi 0, %s70
    %s85 = sphi 0, %s71
    %s89 = sphi 0, %s89
    %s91 = sphi 0, %s89
    %s92 = sphi 0, %s91
    %s106 = sphi 0, %s92
    %s112 = sphi 0, %s114
    %s115 = sphi 0, %s112
    %s116 = sphi 0, %s115
    %s132 = sphi 0, %s116
    %s138 = sphi 0, %s140
    %s141 = sphi 0, %s138
    %s142 = sphi 0, %s141
    %s158 = sphi 0, %s142
    %s164 = sphi 0, %s166
    %s167 = sphi 0, %s164
    %s168 = sphi 0, %s167
    %s184 = sphi 0, %s168
  $region4: #{residual_block_forward.4} parent=0 // loop_header_branch
    %16 = sbr.rel (%p14) target = $region8
  $region5: #{residual_block_forward.4} parent=0 // loop_body
    %s18 = ssub.s32 %s13, 1
    %s19 = ssub.s32 %s13, 2
    %s20 = sadd.s32 %s13, 1
    %s21 = ssub.s32 %s13, %s20
    %p22 = scmp.eq.s32.totalorder %s21, 0
    %s24 = sadd.s32 %s23, 1
    %s25 = scalar_select %p22, %s23, %s24
    %p28 = pneg %p22
    %p29 = scmp.eq.s32.totalorder %s13, 1
    %p30 = por %p28, %p29
    %p31 = scmp.ne.s32.totalorder %s23, %s26
    %p32 = scmp.eq.s32.totalorder %s13, 0
    %p33 = por %p31, %p32
    %p34 = scmp.ne.s32.totalorder %s23, %s26
    %p35 = scmp.eq.s32.totalorder %s18, 1
    %p36 = por %p34, %p35
    %p37 = scmp.ne.s32.totalorder %s26, %s27
    %p38 = scmp.eq.s32.totalorder %s18, 0
    %p39 = por %p37, %p38
    %p40 = scmp.ne.s32.totalorder %s26, %s27
    %p41 = scmp.eq.s32.totalorder %s19, 1
    %p42 = por %p40, %p41
    %p44 = scmp.ne.s32.totalorder %s27, %s43
    %p45 = scmp.eq.s32.totalorder %s19, 0
    %p46 = por %p44, %p45
    %s48 = sadd.s32 %s47, 1
    %p51 = scmp.eq.s32.totalorder %s13, 1
    %p52 = scmp.ne.s32.totalorder %s47, %s49
    %p53 = scmp.eq.s32.totalorder %s13, 0
    %p54 = por %p52, %p53
    %p55 = scmp.ne.s32.totalorder %s47, %s49
    %p56 = scmp.eq.s32.totalorder %s18, 1
    %p57 = por %p55, %p56
    %p58 = scmp.ne.s32.totalorder %s49, %s50
    %p59 = scmp.eq.s32.totalorder %s18, 0
    %p60 = por %p58, %p59
    %p61 = scmp.ne.s32.totalorder %s49, %s50
    %p62 = scmp.eq.s32.totalorder %s19, 1
    %p63 = por %p61, %p62
    %p65 = scmp.ne.s32.totalorder %s50, %s64
    %p66 = scmp.eq.s32.totalorder %s19, 0
    %p67 = por %p65, %p66
    %s69 = sadd.s32 %s68, 1
    %p72 = scmp.eq.s32.totalorder %s13, 1
    %p73 = scmp.ne.s32.totalorder %s68, %s70
    %p74 = scmp.eq.s32.totalorder %s13, 0
    %p75 = por %p73, %p74
    %p76 = scmp.ne.s32.totalorder %s68, %s70
    %p77 = scmp.eq.s32.totalorder %s18, 1
    %p78 = por %p76, %p77
    %p79 = scmp.ne.s32.totalorder %s70, %s71
    %p80 = scmp.eq.s32.totalorder %s18, 0
    %p81 = por %p79, %p80
    %p82 = scmp.ne.s32.totalorder %s70, %s71
    %p83 = scmp.eq.s32.totalorder %s19, 1
    %p84 = por %p82, %p83
    %p86 = scmp.ne.s32.totalorder %s71, %s85
    %p87 = scmp.eq.s32.totalorder %s19, 0
    %p88 = por %p86, %p87
    %s90 = sadd.s32 %s89, 1
    %p93 = scmp.eq.s32.totalorder %s13, 1
    %p94 = scmp.ne.s32.totalorder %s89, %s91
    %p95 = scmp.eq.s32.totalorder %s13, 0
    %p96 = por %p94, %p95
    %p97 = scmp.ne.s32.totalorder %s89, %s91
    %p98 = scmp.eq.s32.totalorder %s18, 1
    %p99 = por %p97, %p98
    %p100 = scmp.ne.s32.totalorder %s91, %s92
    %p101 = scmp.eq.s32.totalorder %s18, 0
    %p102 = por %p100, %p101
    %p103 = scmp.ne.s32.totalorder %s91, %s92
    %p104 = scmp.eq.s32.totalorder %s19, 1
    %p105 = por %p103, %p104
    %p107 = scmp.ne.s32.totalorder %s92, %s106
    %p108 = scmp.eq.s32.totalorder %s19, 0
    %p109 = por %p107, %p108
    %s110 = ssub.s32 %s13, %s20
    %p111 = scmp.eq.s32.totalorder %s110, 0
    %s113 = sadd.s32 %s112, 1
    %s114 = scalar_select %p111, %s112, %s113
    %p117 = pneg %p111
    %p118 = scmp.eq.s32.totalorder %s13, 1
    %p119 = por %p117, %p118
    %p120 = scmp.ne.s32.totalorder %s112, %s115
    %p121 = scmp.eq.s32.totalorder %s13, 0
    %p122 = por %p120, %p121
    %p123 = scmp.ne.s32.totalorder %s112, %s115
    %p124 = scmp.eq.s32.totalorder %s18, 1
    %p125 = por %p123, %p124
    %p126 = scmp.ne.s32.totalorder %s115, %s116
    %p127 = scmp.eq.s32.totalorder %s18, 0
    %p128 = por %p126, %p127
    %p129 = scmp.ne.s32.totalorder %s115, %s116
    %p130 = scmp.eq.s32.totalorder %s19, 1
    %p131 = por %p129, %p130
    %p133 = scmp.ne.s32.totalorder %s116, %s132
    %p134 = scmp.eq.s32.totalorder %s19, 0
    %p135 = por %p133, %p134
    %s136 = ssub.s32 %s13, %s20
    %p137 = scmp.eq.s32.totalorder %s136, 0
    %s139 = sadd.s32 %s138, 1
    %s140 = scalar_select %p137, %s138, %s139
    %p143 = pneg %p137
    %p144 = scmp.eq.s32.totalorder %s13, 1
    %p145 = por %p143, %p144
    %p146 = scmp.ne.s32.totalorder %s138, %s141
    %p147 = scmp.eq.s32.totalorder %s13, 0
    %p148 = por %p146, %p147
    %p149 = scmp.ne.s32.totalorder %s138, %s141
    %p150 = scmp.eq.s32.totalorder %s18, 1
    %p151 = por %p149, %p150
    %p152 = scmp.ne.s32.totalorder %s141, %s142
    %p153 = scmp.eq.s32.totalorder %s18, 0
    %p154 = por %p152, %p153
    %p155 = scmp.ne.s32.totalorder %s141, %s142
    %p156 = scmp.eq.s32.totalorder %s19, 1
    %p157 = por %p155, %p156
    %p159 = scmp.ne.s32.totalorder %s142, %s158
    %p160 = scmp.eq.s32.totalorder %s19, 0
    %p161 = por %p159, %p160
    %s162 = ssub.s32 %s13, %s20
    %p163 = scmp.eq.s32.totalorder %s162, 0
    %s165 = sadd.s32 %s164, 1
    %s166 = scalar_select %p163, %s164, %s165
    %p169 = pneg %p163
    %p170 = scmp.eq.s32.totalorder %s13, 1
    %p171 = por %p169, %p170
    %p172 = scmp.ne.s32.totalorder %s164, %s167
    %p173 = scmp.eq.s32.totalorder %s13, 0
    %p174 = por %p172, %p173
    %p175 = scmp.ne.s32.totalorder %s164, %s167
    %p176 = scmp.eq.s32.totalorder %s18, 1
    %p177 = por %p175, %p176
    %p178 = scmp.ne.s32.totalorder %s167, %s168
    %p179 = scmp.eq.s32.totalorder %s18, 0
    %p180 = por %p178, %p179
    %p181 = scmp.ne.s32.totalorder %s167, %s168
    %p182 = scmp.eq.s32.totalorder %s19, 1
    %p183 = por %p181, %p182
    %p185 = scmp.ne.s32.totalorder %s168, %s184
    %p186 = scmp.eq.s32.totalorder %s19, 0
    %p187 = por %p185, %p186
    %p188 = scmp.le.s32.totalorder 1, %s13
    %p189 = scmp.lt.s32.totalorder %s13, 3
    %p190 = pnand %p188, %p189
    %p191 = pneg %p190
    // Predicated region
    $region9: #{residual_block_forward.4} parent=5 // pred_check
      _
    $region10: #{residual_block_forward.4} parent=5 // pred_check_branch
      %193 = sbr.rel (%p190) target = $region12
    $region11: #{residual_block_forward.4} parent=5 // pred_region
      %s194 = ssub.s32 %s13, 1
      // Predicated region
      $region13: #{residual_block_forward.4} parent=11 // pred_check
        %p195 = pneg %p60
      $region14: #{residual_block_forward.4} parent=11 // pred_check_branch
        %197 = sbr.rel (%p195) target = $region16
      $region15: #{residual_block_forward.4} parent=11 // pred_region
        _
      $region16: #{residual_block_forward.4} parent=11 // pred_fallthru
        _
      // Predicated region
      $region17: #{residual_block_forward.4} parent=11 // pred_check
        %p198 = pneg %p81
      $region18: #{residual_block_forward.4} parent=11 // pred_check_branch
        %200 = sbr.rel (%p198) target = $region20
      $region19: #{residual_block_forward.4} parent=11 // pred_region
        _
      $region20: #{residual_block_forward.4} parent=11 // pred_fallthru
        _
      // Predicated region
      $region21: #{residual_block_forward.4} parent=11 // pred_check
        %p201 = pneg %p102
      $region22: #{residual_block_forward.4} parent=11 // pred_check_branch
        %203 = sbr.rel (%p201) target = $region24
      $region23: #{residual_block_forward.4} parent=11 // pred_region
        _
      $region24: #{residual_block_forward.4} parent=11 // pred_fallthru
        _
    $region12: #{residual_block_forward.4} parent=5 // pred_fallthru
      _
    %p204 = scmp.lt.s32.totalorder %s13, 2
    // Predicated region
    $region25: #{residual_block_forward.4} parent=5 // pred_check
      %p205 = pneg %p204
    $region26: #{residual_block_forward.4} parent=5 // pred_check_branch
      %207 = sbr.rel (%p205) target = $region28
    $region27: #{residual_block_forward.4} parent=5 // pred_region
      // Predicated region
      $region29: #{residual_block_forward.4} parent=27 // pred_check
        %p208 = pneg %p33
      $region30: #{residual_block_forward.4} parent=27 // pred_check_branch
        %210 = sbr.rel (%p208) target = $region32
      $region31: #{residual_block_forward.4} parent=27 // pred_region
        %p211 = scmp.lt.s32.totalorder %s13, 1
        %s212 = scalar_select %p211, %s13, 1
        %s213 = smul.addr %s212, 32
        %s214 = smul.addr %s213, 4
        %s215 = scalar_lea.vmem %s0, %s214
      $region32: #{residual_block_forward.4} parent=27 // pred_fallthru
        _
    $region28: #{residual_block_forward.4} parent=5 // pred_fallthru
      _
    %p216 = scmp.le.s32.totalorder 1, %s13
    %p217 = scmp.lt.s32.totalorder %s13, 3
    %p218 = pnand %p216, %p217
    %p219 = pneg %p218
    // Predicated region
    $region33: #{residual_block_forward.4} parent=5 // pred_check
      _
    $region34: #{residual_block_forward.4} parent=5 // pred_check_branch
      %221 = sbr.rel (%p218) target = $region36
    $region35: #{residual_block_forward.4} parent=5 // pred_region
      %s222 = ssub.s32 %s13, 1
      %p223 = scmp.lt.s32.totalorder %s18, 1
      %s224 = scalar_select %p223, %s18, 1
      %s225 = smul.addr %s224, 32
      %s226 = smul.addr %s225, 4
      %s227 = scalar_lea.vmem %s0, %s226
      %p228 = pneg %p39
      %p229 = pneg %p36
      %p230 = pneg %p60
      %p231 = pneg %p57
      %p232 = pneg %p81
      %p233 = pneg %p78
      %p234 = pneg %p102
      %p235 = pneg %p99
      %p236 = pneg %p128
      %p237 = pneg %p125
      %p238 = scmp.lt.s32.totalorder %s18, 1
      %s239 = scalar_select %p238, %s18, 1
      %s240 = smul.addr %s239, 32
      %s241 = smul.addr %s240, 4
      %s242 = scalar_lea.vmem %s4, %s241
      %p243 = pneg %p154
      %p244 = pneg %p151
      %p245 = scmp.lt.s32.totalorder %s18, 1
      %s246 = scalar_select %p245, %s18, 1
      %s247 = scalar_lea.vmem %s5, %s246
      %p248 = pneg %p180
      %p249 = pneg %p177
      %p250 = scmp.lt.s32.totalorder %s18, 1
      %s251 = scalar_select %p250, %s18, 1
      %s252 = scalar_lea.vmem %s6, %s251
      %p253 = scmp.lt.s32.totalorder %s18, 1
      %s254 = scalar_select %p253, %s18, 1
      %s255 = smul.addr %s254, 32
      %s256 = smul.addr %s255, 4
      %s257 = scalar_lea.vmem %s0, %s256
      %p258 = scmp.lt.s32.totalorder %s18, 1
      %s259 = scalar_select %p258, %s18, 1
      %s260 = smul.addr %s259, 32
      %s261 = smul.addr %s260, 4
      %s262 = scalar_lea.vmem %s4, %s261
      %p263 = scmp.lt.s32.totalorder %s18, 1
      %s264 = scalar_select %p263, %s18, 1
      %s265 = scalar_lea.vmem %s5, %s264
      %p266 = scmp.lt.s32.totalorder %s18, 1
      %s267 = scalar_select %p266, %s18, 1
      %s268 = scalar_lea.vmem %s6, %s267
      %v270 = vld [vmem:[%s257] sm:$0xf]
      %v271 = vld [vmem:[%s257 + $0x4] sm:$0xf]
      %v272 = vld [vmem:[%s257 + $0x8] sm:$0xf]
      %v273 = vld [vmem:[%s257 + $0xc] sm:$0xf]
      %v274 = vld [vmem:[%s257 + $0x10] sm:$0xf]
      %v275 = vld [vmem:[%s257 + $0x14] sm:$0xf]
      %v276 = vld [vmem:[%s257 + $0x18] sm:$0xf]
      %v277 = vld [vmem:[%s257 + $0x1c] sm:$0xf]
      %v278 = vld [vmem:[%s257 + $0x20] sm:$0xf]
      %v279 = vld [vmem:[%s257 + $0x24] sm:$0xf]
      %v280 = vld [vmem:[%s257 + $0x28] sm:$0xf]
      %v281 = vld [vmem:[%s257 + $0x2c] sm:$0xf]
      %v282 = vld [vmem:[%s257 + $0x30] sm:$0xf]
      %v283 = vld [vmem:[%s257 + $0x34] sm:$0xf]
      %v284 = vld [vmem:[%s257 + $0x38] sm:$0xf]
      %v285 = vld [vmem:[%s257 + $0x3c] sm:$0xf]
      %v286 = vld [vmem:[%s257 + $0x40] sm:$0xf]
      %v287 = vld [vmem:[%s257 + $0x44] sm:$0xf]
      %v288 = vld [vmem:[%s257 + $0x48] sm:$0xf]
      %v289 = vld [vmem:[%s257 + $0x4c] sm:$0xf]
      %v290 = vld [vmem:[%s257 + $0x50] sm:$0xf]
      %v291 = vld [vmem:[%s257 + $0x54] sm:$0xf]
      %v292 = vld [vmem:[%s257 + $0x58] sm:$0xf]
      %v293 = vld [vmem:[%s257 + $0x5c] sm:$0xf]
      %v294 = vld [vmem:[%s257 + $0x60] sm:$0xf]
      %v295 = vld [vmem:[%s257 + $0x64] sm:$0xf]
      %v296 = vld [vmem:[%s257 + $0x68] sm:$0xf]
      %v297 = vld [vmem:[%s257 + $0x6c] sm:$0xf]
      %v298 = vld [vmem:[%s257 + $0x70] sm:$0xf]
      %v299 = vld [vmem:[%s257 + $0x74] sm:$0xf]
      %v300 = vld [vmem:[%s257 + $0x78] sm:$0xf]
      %v301 = vld [vmem:[%s257 + $0x7c] sm:$0xf]
      %v302 = vunpack.c.l.bf16 %v270
      %v303 = vunpack.c.l.bf16 %v271
      %v304 = vunpack.c.l.bf16 %v272
      %v305 = vunpack.c.l.bf16 %v273
      %v306 = vunpack.c.l.bf16 %v274
      %v307 = vunpack.c.l.bf16 %v275
      %v308 = vunpack.c.l.bf16 %v276
      %v309 = vunpack.c.l.bf16 %v277
      %v310 = vunpack.c.l.bf16 %v278
      %v311 = vunpack.c.l.bf16 %v279
      %v312 = vunpack.c.l.bf16 %v280
      %v313 = vunpack.c.l.bf16 %v281
      %v314 = vunpack.c.l.bf16 %v282
      %v315 = vunpack.c.l.bf16 %v283
      %v316 = vunpack.c.l.bf16 %v284
      %v317 = vunpack.c.l.bf16 %v285
      %v318 = vunpack.c.l.bf16 %v286
      %v319 = vunpack.c.l.bf16 %v287
      %v320 = vunpack.c.l.bf16 %v288
      %v321 = vunpack.c.l.bf16 %v289
      %v322 = vunpack.c.l.bf16 %v290
      %v323 = vunpack.c.l.bf16 %v291
      %v324 = vunpack.c.l.bf16 %v292
      %v325 = vunpack.c.l.bf16 %v293
      %v326 = vunpack.c.l.bf16 %v294
      %v327 = vunpack.c.l.bf16 %v295
      %v328 = vunpack.c.l.bf16 %v296
      %v329 = vunpack.c.l.bf16 %v297
      %v330 = vunpack.c.l.bf16 %v298
      %v331 = vunpack.c.l.bf16 %v299
      %v332 = vunpack.c.l.bf16 %v300
      %v333 = vunpack.c.l.bf16 %v301
      %v334 = vld [vmem:[%s1] sm:$0x1]
      %v336 = vlaneseq
      %v337 = vshrl.u32 %v336, 7
      %v338 = vsub.s32 0, %v337
      %v339 = vrot.slane %v334, %v338
      %v341 = vmul.f32 %v302, %v339
      %v342 = vmul.f32 %v303, %v339
      %v343 = vmul.f32 %v304, %v339
      %v344 = vmul.f32 %v305, %v339
      %v345 = vmul.f32 %v306, %v339
      %v346 = vmul.f32 %v307, %v339
      %v347 = vmul.f32 %v308, %v339
      %v348 = vmul.f32 %v309, %v339
      %v349 = vmul.f32 %v310, %v339
      %v350 = vmul.f32 %v311, %v339
      %v351 = vmul.f32 %v312, %v339
      %v352 = vmul.f32 %v313, %v339
      %v353 = vmul.f32 %v314, %v339
      %v354 = vmul.f32 %v315, %v339
      %v355 = vmul.f32 %v316, %v339
      %v356 = vmul.f32 %v317, %v339
      %v357 = vmul.f32 %v318, %v339
      %v358 = vmul.f32 %v319, %v339
      %v359 = vmul.f32 %v320, %v339
      %v360 = vmul.f32 %v321, %v339
      %v361 = vmul.f32 %v322, %v339
      %v362 = vmul.f32 %v323, %v339
      %v363 = vmul.f32 %v324, %v339
      %v364 = vmul.f32 %v325, %v339
      %v365 = vmul.f32 %v326, %v339
      %v366 = vmul.f32 %v327, %v339
      %v367 = vmul.f32 %v328, %v339
      %v368 = vmul.f32 %v329, %v339
      %v369 = vmul.f32 %v330, %v339
      %v370 = vmul.f32 %v331, %v339
      %v371 = vmul.f32 %v332, %v339
      %v372 = vmul.f32 %v333, %v339
      %v373 = vld [vmem:[%s2] sm:$0x1]
      %v375 = vlaneseq
      %v376 = vshrl.u32 %v375, 7
      %v377 = vsub.s32 0, %v376
      %v378 = vrot.slane %v373, %v377
      %v380 = vadd.f32 %v341, %v378
      %v381 = vadd.f32 %v342, %v378
      %v382 = vadd.f32 %v343, %v378
      %v383 = vadd.f32 %v344, %v378
      %v384 = vadd.f32 %v345, %v378
      %v385 = vadd.f32 %v346, %v378
      %v386 = vadd.f32 %v347, %v378
      %v387 = vadd.f32 %v348, %v378
      %v388 = vadd.f32 %v349, %v378
      %v389 = vadd.f32 %v350, %v378
      %v390 = vadd.f32 %v351, %v378
      %v391 = vadd.f32 %v352, %v378
      %v392 = vadd.f32 %v353, %v378
      %v393 = vadd.f32 %v354, %v378
      %v394 = vadd.f32 %v355, %v378
      %v395 = vadd.f32 %v356, %v378
      %v396 = vadd.f32 %v357, %v378
      %v397 = vadd.f32 %v358, %v378
      %v398 = vadd.f32 %v359, %v378
      %v399 = vadd.f32 %v360, %v378
      %v400 = vadd.f32 %v361, %v378
      %v401 = vadd.f32 %v362, %v378
      %v402 = vadd.f32 %v363, %v378
      %v403 = vadd.f32 %v364, %v378
      %v404 = vadd.f32 %v365, %v378
      %v405 = vadd.f32 %v366, %v378
      %v406 = vadd.f32 %v367, %v378
      %v407 = vadd.f32 %v368, %v378
      %v408 = vadd.f32 %v369, %v378
      %v409 = vadd.f32 %v370, %v378
      %v410 = vadd.f32 %v371, %v378
      %v411 = vadd.f32 %v372, %v378
      %v412 = vmax.f32 %v380, 0.0
      %v413 = vmax.f32 %v381, 0.0
      %v414 = vmax.f32 %v382, 0.0
      %v415 = vmax.f32 %v383, 0.0
      %v416 = vmax.f32 %v384, 0.0
      %v417 = vmax.f32 %v385, 0.0
      %v418 = vmax.f32 %v386, 0.0
      %v419 = vmax.f32 %v387, 0.0
      %v420 = vmax.f32 %v388, 0.0
      %v421 = vmax.f32 %v389, 0.0
      %v422 = vmax.f32 %v390, 0.0
      %v423 = vmax.f32 %v391, 0.0
      %v424 = vmax.f32 %v392, 0.0
      %v425 = vmax.f32 %v393, 0.0
      %v426 = vmax.f32 %v394, 0.0
      %v427 = vmax.f32 %v395, 0.0
      %v428 = vmax.f32 %v396, 0.0
      %v429 = vmax.f32 %v397, 0.0
      %v430 = vmax.f32 %v398, 0.0
      %v431 = vmax.f32 %v399, 0.0
      %v432 = vmax.f32 %v400, 0.0
      %v433 = vmax.f32 %v401, 0.0
      %v434 = vmax.f32 %v402, 0.0
      %v435 = vmax.f32 %v403, 0.0
      %v436 = vmax.f32 %v404, 0.0
      %v437 = vmax.f32 %v405, 0.0
      %v438 = vmax.f32 %v406, 0.0
      %v439 = vmax.f32 %v407, 0.0
      %v440 = vmax.f32 %v408, 0.0
      %v441 = vmax.f32 %v409, 0.0
      %v442 = vmax.f32 %v410, 0.0
      %v443 = vmax.f32 %v411, 0.0
      %444 = vst [vmem:[#allocation2] sm:$0xff] 0.0
      %445 = vst [vmem:[#allocation2 + $0x8] sm:$0xff] 0.0
      %446 = vst [vmem:[#allocation2 + $0x10] sm:$0x3] 0.0
      %447 = vst [vmem:[#allocation2 + $0x18] sm:$0xff] 0.0
      %448 = vst [vmem:[#allocation2 + $0x20] sm:$0xff] 0.0
      %449 = vst [vmem:[#allocation2 + $0x28] sm:$0x3] 0.0
      %450 = vst [vmem:[#allocation2 + $0x30] sm:$0xff] 0.0
      %451 = vst [vmem:[#allocation2 + $0x38] sm:$0xff] 0.0
      %452 = vst [vmem:[#allocation2 + $0x40] sm:$0x3] 0.0
      %453 = vst [vmem:[#allocation2 + $0x48] sm:$0xff] 0.0
      %454 = vst [vmem:[#allocation2 + $0x50] sm:$0xff] 0.0
      %455 = vst [vmem:[#allocation2 + $0x58] sm:$0x3] 0.0
      %456 = vst [vmem:[#allocation2 + $0x60] sm:$0xff] 0.0
      %457 = vst [vmem:[#allocation2 + $0x68] sm:$0xff] 0.0
      %458 = vst [vmem:[#allocation2 + $0x70] sm:$0x3] 0.0
      %459 = vst [vmem:[#allocation2 + $0x78] sm:$0xff] 0.0
      %460 = vst [vmem:[#allocation2 + $0x80] sm:$0xff] 0.0
      %461 = vst [vmem:[#allocation2 + $0x88] sm:$0x3] 0.0
      %462 = vst [vmem:[#allocation2 + $0x90] sm:$0xff] 0.0
      %463 = vst [vmem:[#allocation2 + $0x98] sm:$0xff] 0.0
      %464 = vst [vmem:[#allocation2 + $0xa0] sm:$0x3] 0.0
      %465 = vst [vmem:[#allocation2 + $0xa8] sm:$0xff] 0.0
      %466 = vst [vmem:[#allocation2 + $0xb0] sm:$0xff] 0.0
      %467 = vst [vmem:[#allocation2 + $0xb8] sm:$0x3] 0.0
      %468 = vst [vmem:[#allocation2 + $0xc0] sm:$0xff] 0.0
      %469 = vst [vmem:[#allocation2 + $0xc8] sm:$0xff] 0.0
      %470 = vst [vmem:[#allocation2 + $0xd0] sm:$0x3] 0.0
      %471 = vst [vmem:[#allocation2 + $0xd8] sm:$0xff] 0.0
      %472 = vst [vmem:[#allocation2 + $0xe0] sm:$0xff] 0.0
      %473 = vst [vmem:[#allocation2 + $0xe8] sm:$0x3] 0.0
      %474 = vst [vmem:[#allocation2 + $0xf0] sm:$0xff] 0.0
      %475 = vst [vmem:[#allocation2 + $0xf8] sm:$0xff] 0.0
      %476 = vst [vmem:[#allocation2 + $0x100] sm:$0x3] 0.0
      %477 = vst [vmem:[#allocation2 + $0x108] sm:$0xff] 0.0
      %478 = vst [vmem:[#allocation2 + $0x110] sm:$0xff] 0.0
      %479 = vst [vmem:[#allocation2 + $0x118] sm:$0x3] 0.0
      %480 = vst [vmem:[#allocation2 + $0x120] sm:$0xff] 0.0
      %481 = vst [vmem:[#allocation2 + $0x128] sm:$0xff] 0.0
      %482 = vst [vmem:[#allocation2 + $0x130] sm:$0x3] 0.0
      %483 = vst [vmem:[#allocation2 + $0x138] sm:$0xff] 0.0
      %484 = vst [vmem:[#allocation2 + $0x140] sm:$0xff] 0.0
      %485 = vst [vmem:[#allocation2 + $0x148] sm:$0x3] 0.0
      %486 = vst [vmem:[#allocation2 + $0x150] sm:$0xff] 0.0
      %487 = vst [vmem:[#allocation2 + $0x158] sm:$0xff] 0.0
      %488 = vst [vmem:[#allocation2 + $0x160] sm:$0x3] 0.0
      %489 = vst [vmem:[#allocation2 + $0x168] sm:$0xff] 0.0
      %490 = vst [vmem:[#allocation2 + $0x170] sm:$0xff] 0.0
      %491 = vst [vmem:[#allocation2 + $0x178] sm:$0x3] 0.0
      %492 = vst [vmem:[#allocation2 + $0x180] sm:$0xff] 0.0
      %493 = vst [vmem:[#allocation2 + $0x188] sm:$0xff] 0.0
      %494 = vst [vmem:[#allocation2 + $0x190] sm:$0x3] 0.0
      %495 = vst [vmem:[#allocation2 + $0x198] sm:$0xff] 0.0
      %496 = vst [vmem:[#allocation2 + $0x1a0] sm:$0xff] 0.0
      %497 = vst [vmem:[#allocation2 + $0x1a8] sm:$0x3] 0.0
      %s498 = scalar_lea.vmem [#allocation2], 24
      %499 = vst [vmem:[%s498 + $0x1] sm:$0xff] %v412
      %500 = vst [vmem:[%s498 + $0x9] sm:$0xff] %v413
      %501 = vst [vmem:[%s498 + $0x19] sm:$0xff] %v414
      %502 = vst [vmem:[%s498 + $0x21] sm:$0xff] %v415
      %503 = vst [vmem:[%s498 + $0x31] sm:$0xff] %v416
      %504 = vst [vmem:[%s498 + $0x39] sm:$0xff] %v417
      %505 = vst [vmem:[%s498 + $0x49] sm:$0xff] %v418
      %506 = vst [vmem:[%s498 + $0x51] sm:$0xff] %v419
      %507 = vst [vmem:[%s498 + $0x61] sm:$0xff] %v420
      %508 = vst [vmem:[%s498 + $0x69] sm:$0xff] %v421
      %509 = vst [vmem:[%s498 + $0x79] sm:$0xff] %v422
      %510 = vst [vmem:[%s498 + $0x81] sm:$0xff] %v423
      %511 = vst [vmem:[%s498 + $0x91] sm:$0xff] %v424
      %512 = vst [vmem:[%s498 + $0x99] sm:$0xff] %v425
      %513 = vst [vmem:[%s498 + $0xa9] sm:$0xff] %v426
      %514 = vst [vmem:[%s498 + $0xb1] sm:$0xff] %v427
      %515 = vst [vmem:[%s498 + $0xc1] sm:$0xff] %v428
      %516 = vst [vmem:[%s498 + $0xc9] sm:$0xff] %v429
      %517 = vst [vmem:[%s498 + $0xd9] sm:$0xff] %v430
      %518 = vst [vmem:[%s498 + $0xe1] sm:$0xff] %v431
      %519 = vst [vmem:[%s498 + $0xf1] sm:$0xff] %v432
      %520 = vst [vmem:[%s498 + $0xf9] sm:$0xff] %v433
      %521 = vst [vmem:[%s498 + $0x109] sm:$0xff] %v434
      %522 = vst [vmem:[%s498 + $0x111] sm:$0xff] %v435
      %523 = vst [vmem:[%s498 + $0x121] sm:$0xff] %v436
      %524 = vst [vmem:[%s498 + $0x129] sm:$0xff] %v437
      %525 = vst [vmem:[%s498 + $0x139] sm:$0xff] %v438
      %526 = vst [vmem:[%s498 + $0x141] sm:$0xff] %v439
      %527 = vst [vmem:[%s498 + $0x151] sm:$0xff] %v440
      %528 = vst [vmem:[%s498 + $0x159] sm:$0xff] %v441
      %529 = vst [vmem:[%s498 + $0x169] sm:$0xff] %v442
      %530 = vst [vmem:[%s498 + $0x171] sm:$0xff] %v443
      %v531 = vld [vmem:[#allocation2] sm:$0xff]
      %v532 = vld [vmem:[#allocation2 + $0x8] sm:$0xff]
      %v533 = vld [vmem:[#allocation2 + $0x10] sm:$0x3]
      %v534 = vld [vmem:[#allocation2 + $0x18] sm:$0xff]
      %v535 = vld [vmem:[#allocation2 + $0x20] sm:$0xff]
      %v536 = vld [vmem:[#allocation2 + $0x28] sm:$0x3]
      %v537 = vld [vmem:[#allocation2 + $0x30] sm:$0xff]
      %v538 = vld [vmem:[#allocation2 + $0x38] sm:$0xff]
      %v539 = vld [vmem:[#allocation2 + $0x40] sm:$0x3]
      %v540 = vld [vmem:[#allocation2 + $0x48] sm:$0xff]
      %v541 = vld [vmem:[#allocation2 + $0x50] sm:$0xff]
      %v542 = vld [vmem:[#allocation2 + $0x58] sm:$0x3]
      %v543 = vld [vmem:[#allocation2 + $0x60] sm:$0xff]
      %v544 = vld [vmem:[#allocation2 + $0x68] sm:$0xff]
      %v545 = vld [vmem:[#allocation2 + $0x70] sm:$0x3]
      %v546 = vld [vmem:[#allocation2 + $0x78] sm:$0xff]
      %v547 = vld [vmem:[#allocation2 + $0x80] sm:$0xff]
      %v548 = vld [vmem:[#allocation2 + $0x88] sm:$0x3]
      %v549 = vld [vmem:[#allocation2 + $0x90] sm:$0xff]
      %v550 = vld [vmem:[#allocation2 + $0x98] sm:$0xff]
      %v551 = vld [vmem:[#allocation2 + $0xa0] sm:$0x3]
      %v552 = vld [vmem:[#allocation2 + $0xa8] sm:$0xff]
      %v553 = vld [vmem:[#allocation2 + $0xb0] sm:$0xff]
      %v554 = vld [vmem:[#allocation2 + $0xb8] sm:$0x3]
      %v555 = vld [vmem:[#allocation2 + $0xc0] sm:$0xff]
      %v556 = vld [vmem:[#allocation2 + $0xc8] sm:$0xff]
      %v557 = vld [vmem:[#allocation2 + $0xd0] sm:$0x3]
      %v558 = vld [vmem:[#allocation2 + $0xd8] sm:$0xff]
      %v559 = vld [vmem:[#allocation2 + $0xe0] sm:$0xff]
      %v560 = vld [vmem:[#allocation2 + $0xe8] sm:$0x3]
      %v561 = vld [vmem:[#allocation2 + $0xf0] sm:$0xff]
      %v562 = vld [vmem:[#allocation2 + $0xf8] sm:$0xff]
      %v563 = vld [vmem:[#allocation2 + $0x100] sm:$0x3]
      %v564 = vld [vmem:[#allocation2 + $0x108] sm:$0xff]
      %v565 = vld [vmem:[#allocation2 + $0x110] sm:$0xff]
      %v566 = vld [vmem:[#allocation2 + $0x118] sm:$0x3]
      %v567 = vld [vmem:[#allocation2 + $0x120] sm:$0xff]
      %v568 = vld [vmem:[#allocation2 + $0x128] sm:$0xff]
      %v569 = vld [vmem:[#allocation2 + $0x130] sm:$0x3]
      %v570 = vld [vmem:[#allocation2 + $0x138] sm:$0xff]
      %v571 = vld [vmem:[#allocation2 + $0x140] sm:$0xff]
      %v572 = vld [vmem:[#allocation2 + $0x148] sm:$0x3]
      %v573 = vld [vmem:[#allocation2 + $0x150] sm:$0xff]
      %v574 = vld [vmem:[#allocation2 + $0x158] sm:$0xff]
      %v575 = vld [vmem:[#allocation2 + $0x160] sm:$0x3]
      %v576 = vld [vmem:[#allocation2 + $0x168] sm:$0xff]
      %v577 = vld [vmem:[#allocation2 + $0x170] sm:$0xff]
      %v578 = vld [vmem:[#allocation2 + $0x178] sm:$0x3]
      %v579 = vld [vmem:[#allocation2 + $0x180] sm:$0xff]
      %v580 = vld [vmem:[#allocation2 + $0x188] sm:$0xff]
      %v581 = vld [vmem:[#allocation2 + $0x190] sm:$0x3]
      %v582 = vld [vmem:[#allocation2 + $0x198] sm:$0xff]
      %v583 = vld [vmem:[#allocation2 + $0x1a0] sm:$0xff]
      %v584 = vld [vmem:[#allocation2 + $0x1a8] sm:$0x3]
      %v585 = vpack.c.bf16 %v532, %v531
      %v586 = vpack.c.bf16 %v533, %v533
      %v587 = vpack.c.bf16 %v535, %v534
      %v588 = vpack.c.bf16 %v536, %v536
      %v589 = vpack.c.bf16 %v538, %v537
      %v590 = vpack.c.bf16 %v539, %v539
      %v591 = vpack.c.bf16 %v541, %v540
      %v592 = vpack.c.bf16 %v542, %v542
      %v593 = vpack.c.bf16 %v544, %v543
      %v594 = vpack.c.bf16 %v545, %v545
      %v595 = vpack.c.bf16 %v547, %v546
      %v596 = vpack.c.bf16 %v548, %v548
      %v597 = vpack.c.bf16 %v550, %v549
      %v598 = vpack.c.bf16 %v551, %v551
      %v599 = vpack.c.bf16 %v553, %v552
      %v600 = vpack.c.bf16 %v554, %v554
      %v601 = vpack.c.bf16 %v556, %v555
      %v602 = vpack.c.bf16 %v557, %v557
      %v603 = vpack.c.bf16 %v559, %v558
      %v604 = vpack.c.bf16 %v560, %v560
      %v605 = vpack.c.bf16 %v562, %v561
      %v606 = vpack.c.bf16 %v563, %v563
      %v607 = vpack.c.bf16 %v565, %v564
      %v608 = vpack.c.bf16 %v566, %v566
      %v609 = vpack.c.bf16 %v568, %v567
      %v610 = vpack.c.bf16 %v569, %v569
      %v611 = vpack.c.bf16 %v571, %v570
      %v612 = vpack.c.bf16 %v572, %v572
      %v613 = vpack.c.bf16 %v574, %v573
      %v614 = vpack.c.bf16 %v575, %v575
      %v615 = vpack.c.bf16 %v577, %v576
      %v616 = vpack.c.bf16 %v578, %v578
      %v617 = vpack.c.bf16 %v580, %v579
      %v618 = vpack.c.bf16 %v581, %v581
      %v619 = vpack.c.bf16 %v583, %v582
      %v620 = vpack.c.bf16 %v584, %v584
      %vm621 = vsmask.f32 7424
      %v623 = vshrl.u32 %v585, 16
      %v625 = vshll.u32 %v585, 16
      %v627 = vrot.slane %v625, 1
      %v628 = vor.u32 %v623, %v627
      %v630 = vshll.u32 %v586, 16
      %v632 = vrot.slane %v630, 1
      %v633 = vsel %vm621, %v628, %v632
      %v635 = vshrl.u32 %v587, 16
      %v637 = vshll.u32 %v587, 16
      %v639 = vrot.slane %v637, 1
      %v640 = vor.u32 %v635, %v639
      %v642 = vshll.u32 %v588, 16
      %v644 = vrot.slane %v642, 1
      %v645 = vsel %vm621, %v640, %v644
      %v647 = vshrl.u32 %v589, 16
      %v649 = vshll.u32 %v589, 16
      %v651 = vrot.slane %v649, 1
      %v652 = vor.u32 %v647, %v651
      %v654 = vshll.u32 %v590, 16
      %v656 = vrot.slane %v654, 1
      %v657 = vsel %vm621, %v652, %v656
      %v659 = vshrl.u32 %v591, 16
      %v661 = vshll.u32 %v591, 16
      %v663 = vrot.slane %v661, 1
      %v664 = vor.u32 %v659, %v663
      %v666 = vshll.u32 %v592, 16
      %v668 = vrot.slane %v666, 1
      %v669 = vsel %vm621, %v664, %v668
      %v671 = vshrl.u32 %v593, 16
      %v673 = vshll.u32 %v593, 16
      %v675 = vrot.slane %v673, 1
      %v676 = vor.u32 %v671, %v675
      %v678 = vshll.u32 %v594, 16
      %v680 = vrot.slane %v678, 1
      %v681 = vsel %vm621, %v676, %v680
      %v683 = vshrl.u32 %v595, 16
      %v685 = vshll.u32 %v595, 16
      %v687 = vrot.slane %v685, 1
      %v688 = vor.u32 %v683, %v687
      %v690 = vshll.u32 %v596, 16
      %v692 = vrot.slane %v690, 1
      %v693 = vsel %vm621, %v688, %v692
      %v695 = vshrl.u32 %v597, 16
      %v697 = vshll.u32 %v597, 16
      %v699 = vrot.slane %v697, 1
      %v700 = vor.u32 %v695, %v699
      %v702 = vshll.u32 %v598, 16
      %v704 = vrot.slane %v702, 1
      %v705 = vsel %vm621, %v700, %v704
      %v707 = vshrl.u32 %v599, 16
      %v709 = vshll.u32 %v599, 16
      %v711 = vrot.slane %v709, 1
      %v712 = vor.u32 %v707, %v711
      %v714 = vshll.u32 %v600, 16
      %v716 = vrot.slane %v714, 1
      %v717 = vsel %vm621, %v712, %v716
      %v719 = vshrl.u32 %v601, 16
      %v721 = vshll.u32 %v601, 16
      %v723 = vrot.slane %v721, 1
      %v724 = vor.u32 %v719, %v723
      %v726 = vshll.u32 %v602, 16
      %v728 = vrot.slane %v726, 1
      %v729 = vsel %vm621, %v724, %v728
      %v731 = vshrl.u32 %v603, 16
      %v733 = vshll.u32 %v603, 16
      %v735 = vrot.slane %v733, 1
      %v736 = vor.u32 %v731, %v735
      %v738 = vshll.u32 %v604, 16
      %v740 = vrot.slane %v738, 1
      %v741 = vsel %vm621, %v736, %v740
      %v743 = vshrl.u32 %v605, 16
      %v745 = vshll.u32 %v605, 16
      %v747 = vrot.slane %v745, 1
      %v748 = vor.u32 %v743, %v747
      %v750 = vshll.u32 %v606, 16
      %v752 = vrot.slane %v750, 1
      %v753 = vsel %vm621, %v748, %v752
      %v755 = vshrl.u32 %v607, 16
      %v757 = vshll.u32 %v607, 16
      %v759 = vrot.slane %v757, 1
      %v760 = vor.u32 %v755, %v759
      %v762 = vshll.u32 %v608, 16
      %v764 = vrot.slane %v762, 1
      %v765 = vsel %vm621, %v760, %v764
      %v767 = vshrl.u32 %v609, 16
      %v769 = vshll.u32 %v609, 16
      %v771 = vrot.slane %v769, 1
      %v772 = vor.u32 %v767, %v771
      %v774 = vshll.u32 %v610, 16
      %v776 = vrot.slane %v774, 1
      %v777 = vsel %vm621, %v772, %v776
      %v779 = vshrl.u32 %v611, 16
      %v781 = vshll.u32 %v611, 16
      %v783 = vrot.slane %v781, 1
      %v784 = vor.u32 %v779, %v783
      %v786 = vshll.u32 %v612, 16
      %v788 = vrot.slane %v786, 1
      %v789 = vsel %vm621, %v784, %v788
      %v791 = vshrl.u32 %v613, 16
      %v793 = vshll.u32 %v613, 16
      %v795 = vrot.slane %v793, 1
      %v796 = vor.u32 %v791, %v795
      %v798 = vshll.u32 %v614, 16
      %v800 = vrot.slane %v798, 1
      %v801 = vsel %vm621, %v796, %v800
      %v803 = vshrl.u32 %v615, 16
      %v805 = vshll.u32 %v615, 16
      %v807 = vrot.slane %v805, 1
      %v808 = vor.u32 %v803, %v807
      %v810 = vshll.u32 %v616, 16
      %v812 = vrot.slane %v810, 1
      %v813 = vsel %vm621, %v808, %v812
      %vm862 = vcmask 1046528
      %v863 = vrot.slane %v585, 1
      %v864 = vrot.slane %v586, 1
      %v865 = vsel %vm862, %v863, %v864
      %v866 = vrot.slane %v587, 1
      %v867 = vrot.slane %v588, 1
      %v868 = vsel %vm862, %v866, %v867
      %v869 = vrot.slane %v589, 1
      %v870 = vrot.slane %v590, 1
      %v871 = vsel %vm862, %v869, %v870
      %v872 = vrot.slane %v591, 1
      %v873 = vrot.slane %v592, 1
      %v874 = vsel %vm862, %v872, %v873
      %v875 = vrot.slane %v593, 1
      %v876 = vrot.slane %v594, 1
      %v877 = vsel %vm862, %v875, %v876
      %v878 = vrot.slane %v595, 1
      %v879 = vrot.slane %v596, 1
      %v880 = vsel %vm862, %v878, %v879
      %v881 = vrot.slane %v597, 1
      %v882 = vrot.slane %v598, 1
      %v883 = vsel %vm862, %v881, %v882
      %v884 = vrot.slane %v599, 1
      %v885 = vrot.slane %v600, 1
      %v886 = vsel %vm862, %v884, %v885
      %v887 = vrot.slane %v601, 1
      %v888 = vrot.slane %v602, 1
      %v889 = vsel %vm862, %v887, %v888
      %v890 = vrot.slane %v603, 1
      %v891 = vrot.slane %v604, 1
      %v892 = vsel %vm862, %v890, %v891
      %v893 = vrot.slane %v605, 1
      %v894 = vrot.slane %v606, 1
      %v895 = vsel %vm862, %v893, %v894
      %v896 = vrot.slane %v607, 1
      %v897 = vrot.slane %v608, 1
      %v898 = vsel %vm862, %v896, %v897
      %v899 = vrot.slane %v609, 1
      %v900 = vrot.slane %v610, 1
      %v901 = vsel %vm862, %v899, %v900
      %v902 = vrot.slane %v611, 1
      %v903 = vrot.slane %v612, 1
      %v904 = vsel %vm862, %v902, %v903
      %v905 = vrot.slane %v613, 1
      %v906 = vrot.slane %v614, 1
      %v907 = vsel %vm862, %v905, %v906
      %v908 = vrot.slane %v615, 1
      %v909 = vrot.slane %v616, 1
      %v910 = vsel %vm862, %v908, %v909
      %v928 = vshrl.u32 %v617, 16
      %v930 = vshll.u32 %v617, 16
      %v932 = vrot.slane %v930, 1
      %v933 = vor.u32 %v928, %v932
      %v935 = vshll.u32 %v618, 16
      %v937 = vrot.slane %v935, 1
      %v938 = vsel %vm621, %v933, %v937
      %v942 = vrot.slane %v617, 1
      %v943 = vrot.slane %v618, 1
      %v944 = vsel %vm862, %v942, %v943
      %v947 = vshrl.u32 %v619, 16
      %v949 = vshll.u32 %v619, 16
      %v951 = vrot.slane %v949, 1
      %v952 = vor.u32 %v947, %v951
      %v954 = vshll.u32 %v620, 16
      %v956 = vrot.slane %v954, 1
      %v957 = vsel %vm621, %v952, %v956
      %v961 = vrot.slane %v619, 1
      %v962 = vrot.slane %v620, 1
      %v963 = vsel %vm862, %v961, %v962
      %v965 = vld [vmem:[%s3] sm:$0xf]
      %v966 = vld [vmem:[%s3 + $0x4] sm:$0xf]
      %v967 = vld [vmem:[%s3 + $0x8] sm:$0xf]
      %v968 = vld [vmem:[%s3 + $0xc] sm:$0xf]
      %v969 = vld [vmem:[%s3 + $0x10] sm:$0xf]
      %v970 = vld [vmem:[%s3 + $0x14] sm:$0xf]
      %v971 = vld [vmem:[%s3 + $0x18] sm:$0xf]
      %v972 = vld [vmem:[%s3 + $0x1c] sm:$0xf]
      %v973 = vld [vmem:[%s3 + $0x20] sm:$0xf]
      %v974 = vld [vmem:[%s3 + $0x24] sm:$0xf]
      %v975 = vld [vmem:[%s3 + $0x28] sm:$0xf]
      %v976 = vld [vmem:[%s3 + $0x2c] sm:$0xf]
      %v977 = vld [vmem:[%s3 + $0x30] sm:$0xf]
      %v978 = vld [vmem:[%s3 + $0x34] sm:$0xf]
      %v979 = vld [vmem:[%s3 + $0x38] sm:$0xf]
      %v980 = vld [vmem:[%s3 + $0x3c] sm:$0xf]
      %v981 = vld [vmem:[%s3 + $0x40] sm:$0xf]
      %v982 = vld [vmem:[%s3 + $0x44] sm:$0xf]
      %v983 = vld [vmem:[%s3 + $0x48] sm:$0xf]
      %v984 = vld [vmem:[%s3 + $0x4c] sm:$0xf]
      %v985 = vld [vmem:[%s3 + $0x50] sm:$0xf]
      %v986 = vld [vmem:[%s3 + $0x54] sm:$0xf]
      %v987 = vld [vmem:[%s3 + $0x58] sm:$0xf]
      %v988 = vld [vmem:[%s3 + $0x5c] sm:$0xf]
      %v989 = vld [vmem:[%s3 + $0x60] sm:$0xf]
      %v990 = vld [vmem:[%s3 + $0x64] sm:$0xf]
      %v991 = vld [vmem:[%s3 + $0x68] sm:$0xf]
      %v992 = vld [vmem:[%s3 + $0x6c] sm:$0xf]
      %v993 = vld [vmem:[%s3 + $0x70] sm:$0xf]
      %v994 = vld [vmem:[%s3 + $0x74] sm:$0xf]
      %v995 = vld [vmem:[%s3 + $0x78] sm:$0xf]
      %v996 = vld [vmem:[%s3 + $0x7c] sm:$0xf]
      %v997 = vld [vmem:[%s3 + $0x80] sm:$0xf]
      %v998 = vld [vmem:[%s3 + $0x84] sm:$0xf]
      %v999 = vld [vmem:[%s3 + $0x88] sm:$0xf]
      %v1000 = vld [vmem:[%s3 + $0x8c] sm:$0xf]
      %v1001 = vld [vmem:[%s3 + $0x90] sm:$0xf]
      %v1002 = vld [vmem:[%s3 + $0x94] sm:$0xf]
      %v1003 = vld [vmem:[%s3 + $0x98] sm:$0xf]
      %v1004 = vld [vmem:[%s3 + $0x9c] sm:$0xf]
      %v1005 = vld [vmem:[%s3 + $0xa0] sm:$0xf]
      %v1006 = vld [vmem:[%s3 + $0xa4] sm:$0xf]
      %v1007 = vld [vmem:[%s3 + $0xa8] sm:$0xf]
      %v1008 = vld [vmem:[%s3 + $0xac] sm:$0xf]
      %v1009 = vld [vmem:[%s3 + $0xb0] sm:$0xf]
      %v1010 = vld [vmem:[%s3 + $0xb4] sm:$0xf]
      %v1011 = vld [vmem:[%s3 + $0xb8] sm:$0xf]
      %v1012 = vld [vmem:[%s3 + $0xbc] sm:$0xf]
      %v1013 = vld [vmem:[%s3 + $0xc0] sm:$0xf]
      %v1014 = vld [vmem:[%s3 + $0xc4] sm:$0xf]
      %v1015 = vld [vmem:[%s3 + $0xc8] sm:$0xf]
      %v1016 = vld [vmem:[%s3 + $0xcc] sm:$0xf]
      %v1017 = vld [vmem:[%s3 + $0xd0] sm:$0xf]
      %v1018 = vld [vmem:[%s3 + $0xd4] sm:$0xf]
      %v1019 = vld [vmem:[%s3 + $0xd8] sm:$0xf]
      %v1020 = vld [vmem:[%s3 + $0xdc] sm:$0xf]
      %v1021 = vld [vmem:[%s3 + $0xe0] sm:$0xf]
      %v1022 = vld [vmem:[%s3 + $0xe4] sm:$0xf]
      %v1023 = vld [vmem:[%s3 + $0xe8] sm:$0xf]
      %v1024 = vld [vmem:[%s3 + $0xec] sm:$0xf]
      %v1025 = vld [vmem:[%s3 + $0xf0] sm:$0xf]
      %v1026 = vld [vmem:[%s3 + $0xf4] sm:$0xf]
      %v1027 = vld [vmem:[%s3 + $0xf8] sm:$0xf]
      %v1028 = vld [vmem:[%s3 + $0xfc] sm:$0xf]
      %v1029 = vld [vmem:[%s3 + $0x100] sm:$0xf]
      %v1030 = vld [vmem:[%s3 + $0x104] sm:$0xf]
      %v1031 = vld [vmem:[%s3 + $0x108] sm:$0xf]
      %v1032 = vld [vmem:[%s3 + $0x10c] sm:$0xf]
      %v1033 = vld [vmem:[%s3 + $0x110] sm:$0xf]
      %v1034 = vld [vmem:[%s3 + $0x114] sm:$0xf]
      %v1035 = vld [vmem:[%s3 + $0x118] sm:$0xf]
      %v1036 = vld [vmem:[%s3 + $0x11c] sm:$0xf]
      %v1037 = vld [vmem:[%s3 + $0x120] sm:$0xf]
      %v1038 = vld [vmem:[%s3 + $0x124] sm:$0xf]
      %v1039 = vld [vmem:[%s3 + $0x128] sm:$0xf]
      %v1040 = vld [vmem:[%s3 + $0x12c] sm:$0xf]
      %v1041 = vld [vmem:[%s3 + $0x130] sm:$0xf]
      %v1042 = vld [vmem:[%s3 + $0x134] sm:$0xf]
      %v1043 = vld [vmem:[%s3 + $0x138] sm:$0xf]
      %v1044 = vld [vmem:[%s3 + $0x13c] sm:$0xf]
      %v1045 = vld [vmem:[%s3 + $0x140] sm:$0xf]
      %v1046 = vld [vmem:[%s3 + $0x144] sm:$0xf]
      %v1047 = vld [vmem:[%s3 + $0x148] sm:$0xf]
      %v1048 = vld [vmem:[%s3 + $0x14c] sm:$0xf]
      %v1049 = vld [vmem:[%s3 + $0x150] sm:$0xf]
      %v1050 = vld [vmem:[%s3 + $0x154] sm:$0xf]
      %v1051 = vld [vmem:[%s3 + $0x158] sm:$0xf]
      %v1052 = vld [vmem:[%s3 + $0x15c] sm:$0xf]
      %v1053 = vld [vmem:[%s3 + $0x160] sm:$0xf]
      %v1054 = vld [vmem:[%s3 + $0x164] sm:$0xf]
      %v1055 = vld [vmem:[%s3 + $0x168] sm:$0xf]
      %v1056 = vld [vmem:[%s3 + $0x16c] sm:$0xf]
      %v1057 = vld [vmem:[%s3 + $0x170] sm:$0xf]
      %v1058 = vld [vmem:[%s3 + $0x174] sm:$0xf]
      %v1059 = vld [vmem:[%s3 + $0x178] sm:$0xf]
      %v1060 = vld [vmem:[%s3 + $0x17c] sm:$0xf]
      %v1061 = vld [vmem:[%s3 + $0x180] sm:$0xf]
      %v1062 = vld [vmem:[%s3 + $0x184] sm:$0xf]
      %v1063 = vld [vmem:[%s3 + $0x188] sm:$0xf]
      %v1064 = vld [vmem:[%s3 + $0x18c] sm:$0xf]
      %v1065 = vld [vmem:[%s3 + $0x190] sm:$0xf]
      %v1066 = vld [vmem:[%s3 + $0x194] sm:$0xf]
      %v1067 = vld [vmem:[%s3 + $0x198] sm:$0xf]
      %v1068 = vld [vmem:[%s3 + $0x19c] sm:$0xf]
      %v1069 = vld [vmem:[%s3 + $0x1a0] sm:$0xf]
      %v1070 = vld [vmem:[%s3 + $0x1a4] sm:$0xf]
      %v1071 = vld [vmem:[%s3 + $0x1a8] sm:$0xf]
      %v1072 = vld [vmem:[%s3 + $0x1ac] sm:$0xf]
      %v1073 = vld [vmem:[%s3 + $0x1b0] sm:$0xf]
      %v1074 = vld [vmem:[%s3 + $0x1b4] sm:$0xf]
      %v1075 = vld [vmem:[%s3 + $0x1b8] sm:$0xf]
      %v1076 = vld [vmem:[%s3 + $0x1bc] sm:$0xf]
      %v1077 = vld [vmem:[%s3 + $0x1c0] sm:$0xf]
      %v1078 = vld [vmem:[%s3 + $0x1c4] sm:$0xf]
      %v1079 = vld [vmem:[%s3 + $0x1c8] sm:$0xf]
      %v1080 = vld [vmem:[%s3 + $0x1cc] sm:$0xf]
      %v1081 = vld [vmem:[%s3 + $0x1d0] sm:$0xf]
      %v1082 = vld [vmem:[%s3 + $0x1d4] sm:$0xf]
      %v1083 = vld [vmem:[%s3 + $0x1d8] sm:$0xf]
      %v1084 = vld [vmem:[%s3 + $0x1dc] sm:$0xf]
      %v1085 = vld [vmem:[%s3 + $0x1e0] sm:$0xf]
      %v1086 = vld [vmem:[%s3 + $0x1e4] sm:$0xf]
      %v1087 = vld [vmem:[%s3 + $0x1e8] sm:$0xf]
      %v1088 = vld [vmem:[%s3 + $0x1ec] sm:$0xf]
      %v1089 = vld [vmem:[%s3 + $0x1f0] sm:$0xf]
      %v1090 = vld [vmem:[%s3 + $0x1f4] sm:$0xf]
      %v1091 = vld [vmem:[%s3 + $0x1f8] sm:$0xf]
      %v1092 = vld [vmem:[%s3 + $0x1fc] sm:$0xf]
      %v1093 = vld [vmem:[%s3 + $0x200] sm:$0xf]
      %v1094 = vld [vmem:[%s3 + $0x204] sm:$0xf]
      %v1095 = vld [vmem:[%s3 + $0x208] sm:$0xf]
      %v1096 = vld [vmem:[%s3 + $0x20c] sm:$0xf]
      %v1097 = vld [vmem:[%s3 + $0x210] sm:$0xf]
      %v1098 = vld [vmem:[%s3 + $0x214] sm:$0xf]
      %v1099 = vld [vmem:[%s3 + $0x218] sm:$0xf]
      %v1100 = vld [vmem:[%s3 + $0x21c] sm:$0xf]
      %v1101 = vld [vmem:[%s3 + $0x220] sm:$0xf]
      %v1102 = vld [vmem:[%s3 + $0x224] sm:$0xf]
      %v1103 = vld [vmem:[%s3 + $0x228] sm:$0xf]
      %v1104 = vld [vmem:[%s3 + $0x22c] sm:$0xf]
      %v1105 = vld [vmem:[%s3 + $0x230] sm:$0xf]
      %v1106 = vld [vmem:[%s3 + $0x234] sm:$0xf]
      %v1107 = vld [vmem:[%s3 + $0x238] sm:$0xf]
      %v1108 = vld [vmem:[%s3 + $0x23c] sm:$0xf]
      %v1253 = vunpack.c.l.b16 %v965
      %v1254 = vunpack.c.l.b16 %v966
      %v1255 = vunpack.c.l.b16 %v967
      %v1256 = vunpack.c.l.b16 %v968
      %v1257 = vunpack.c.l.b16 %v969
      %v1258 = vunpack.c.l.b16 %v970
      %v1259 = vunpack.c.l.b16 %v971
      %v1260 = vunpack.c.l.b16 %v972
      %v1261 = vunpack.c.l.b16 %v973
      %v1262 = vunpack.c.l.b16 %v974
      %v1263 = vunpack.c.l.b16 %v975
      %v1264 = vunpack.c.l.b16 %v976
      %v1265 = vunpack.c.l.b16 %v977
      %v1266 = vunpack.c.l.b16 %v978
      %v1267 = vunpack.c.l.b16 %v979
      %v1268 = vunpack.c.l.b16 %v980
      %v1269 = vunpack.c.l.b16 %v981
      %v1270 = vunpack.c.l.b16 %v982
      %v1271 = vunpack.c.l.b16 %v983
      %v1272 = vunpack.c.l.b16 %v984
      %v1273 = vunpack.c.l.b16 %v985
      %v1274 = vunpack.c.l.b16 %v986
      %v1275 = vunpack.c.l.b16 %v987
      %v1276 = vunpack.c.l.b16 %v988
      %v1277 = vunpack.c.l.b16 %v989
      %v1278 = vunpack.c.l.b16 %v990
      %v1279 = vunpack.c.l.b16 %v991
      %v1280 = vunpack.c.l.b16 %v992
      %v1281 = vunpack.c.l.b16 %v993
      %v1282 = vunpack.c.l.b16 %v994
      %v1283 = vunpack.c.l.b16 %v995
      %v1284 = vunpack.c.l.b16 %v996
      %v1285 = vunpack.c.l.b16 %v997
      %v1286 = vunpack.c.l.b16 %v998
      %v1287 = vunpack.c.l.b16 %v999
      %v1288 = vunpack.c.l.b16 %v1000
      %v1289 = vunpack.c.l.b16 %v1001
      %v1290 = vunpack.c.l.b16 %v1002
      %v1291 = vunpack.c.l.b16 %v1003
      %v1292 = vunpack.c.l.b16 %v1004
      %v1293 = vunpack.c.l.b16 %v1005
      %v1294 = vunpack.c.l.b16 %v1006
      %v1295 = vunpack.c.l.b16 %v1007
      %v1296 = vunpack.c.l.b16 %v1008
      %v1297 = vunpack.c.l.b16 %v1009
      %v1298 = vunpack.c.l.b16 %v1010
      %v1299 = vunpack.c.l.b16 %v1011
      %v1300 = vunpack.c.l.b16 %v1012
      %v1301 = vunpack.c.l.b16 %v1013
      %v1302 = vunpack.c.l.b16 %v1014
      %v1303 = vunpack.c.l.b16 %v1015
      %v1304 = vunpack.c.l.b16 %v1016
      %v1305 = vunpack.c.l.b16 %v1017
      %v1306 = vunpack.c.l.b16 %v1018
      %v1307 = vunpack.c.l.b16 %v1019
      %v1308 = vunpack.c.l.b16 %v1020
      %v1309 = vunpack.c.l.b16 %v1021
      %v1310 = vunpack.c.l.b16 %v1022
      %v1311 = vunpack.c.l.b16 %v1023
      %v1312 = vunpack.c.l.b16 %v1024
      %v1313 = vunpack.c.l.b16 %v1025
      %v1314 = vunpack.c.l.b16 %v1026
      %v1315 = vunpack.c.l.b16 %v1027
      %v1316 = vunpack.c.l.b16 %v1028
      %v1317 = vunpack.c.l.b16 %v1029
      %v1318 = vunpack.c.l.b16 %v1030
      %v1319 = vunpack.c.l.b16 %v1031
      %v1320 = vunpack.c.l.b16 %v1032
      %v1321 = vunpack.c.l.b16 %v1033
      %v1322 = vunpack.c.l.b16 %v1034
      %v1323 = vunpack.c.l.b16 %v1035
      %v1324 = vunpack.c.l.b16 %v1036
      %v1325 = vunpack.c.l.b16 %v1037
      %v1326 = vunpack.c.l.b16 %v1038
      %v1327 = vunpack.c.l.b16 %v1039
      %v1328 = vunpack.c.l.b16 %v1040
      %v1329 = vunpack.c.l.b16 %v1041
      %v1330 = vunpack.c.l.b16 %v1042
      %v1331 = vunpack.c.l.b16 %v1043
      %v1332 = vunpack.c.l.b16 %v1044
      %v1333 = vunpack.c.l.b16 %v1045
      %v1334 = vunpack.c.l.b16 %v1046
      %v1335 = vunpack.c.l.b16 %v1047
      %v1336 = vunpack.c.l.b16 %v1048
      %v1337 = vunpack.c.l.b16 %v1049
      %v1338 = vunpack.c.l.b16 %v1050
      %v1339 = vunpack.c.l.b16 %v1051
      %v1340 = vunpack.c.l.b16 %v1052
      %v1341 = vunpack.c.l.b16 %v1053
      %v1342 = vunpack.c.l.b16 %v1054
      %v1343 = vunpack.c.l.b16 %v1055
      %v1344 = vunpack.c.l.b16 %v1056
      %v1345 = vunpack.c.l.b16 %v1057
      %v1346 = vunpack.c.l.b16 %v1058
      %v1347 = vunpack.c.l.b16 %v1059
      %v1348 = vunpack.c.l.b16 %v1060
      %v1349 = vunpack.c.l.b16 %v1061
      %v1350 = vunpack.c.l.b16 %v1062
      %v1351 = vunpack.c.l.b16 %v1063
      %v1352 = vunpack.c.l.b16 %v1064
      %v1353 = vunpack.c.l.b16 %v1065
      %v1354 = vunpack.c.l.b16 %v1066
      %v1355 = vunpack.c.l.b16 %v1067
      %v1356 = vunpack.c.l.b16 %v1068
      %v1357 = vunpack.c.l.b16 %v1069
      %v1358 = vunpack.c.l.b16 %v1070
      %v1359 = vunpack.c.l.b16 %v1071
      %v1360 = vunpack.c.l.b16 %v1072
      %v1361 = vunpack.c.l.b16 %v1073
      %v1362 = vunpack.c.l.b16 %v1074
      %v1363 = vunpack.c.l.b16 %v1075
      %v1364 = vunpack.c.l.b16 %v1076
      %v1365 = vunpack.c.l.b16 %v1077
      %v1366 = vunpack.c.l.b16 %v1078
      %v1367 = vunpack.c.l.b16 %v1079
      %v1368 = vunpack.c.l.b16 %v1080
      %v1369 = vunpack.c.l.b16 %v1081
      %v1370 = vunpack.c.l.b16 %v1082
      %v1371 = vunpack.c.l.b16 %v1083
      %v1372 = vunpack.c.l.b16 %v1084
      %v1373 = vunpack.c.l.b16 %v1085
      %v1374 = vunpack.c.l.b16 %v1086
      %v1375 = vunpack.c.l.b16 %v1087
      %v1376 = vunpack.c.l.b16 %v1088
      %v1377 = vunpack.c.l.b16 %v1089
      %v1378 = vunpack.c.l.b16 %v1090
      %v1379 = vunpack.c.l.b16 %v1091
      %v1380 = vunpack.c.l.b16 %v1092
      %v1381 = vunpack.c.l.b16 %v1093
      %v1382 = vunpack.c.l.b16 %v1094
      %v1383 = vunpack.c.l.b16 %v1095
      %v1384 = vunpack.c.l.b16 %v1096
      %v1385 = vunpack.c.l.b16 %v1097
      %v1386 = vunpack.c.l.b16 %v1098
      %v1387 = vunpack.c.l.b16 %v1099
      %v1388 = vunpack.c.l.b16 %v1100
      %v1389 = vunpack.c.l.b16 %v1101
      %v1390 = vunpack.c.l.b16 %v1102
      %v1391 = vunpack.c.l.b16 %v1103
      %v1392 = vunpack.c.l.b16 %v1104
      %v1393 = vunpack.c.l.b16 %v1105
      %v1394 = vunpack.c.l.b16 %v1106
      %v1395 = vunpack.c.l.b16 %v1107
      %v1396 = vunpack.c.l.b16 %v1108
      %v1397 = vpack.c.b16 %v1254, %v1253
      %v1398 = vpack.c.b16 %v1256, %v1255
      %v1399 = vpack.c.b16 %v1258, %v1257
      %v1400 = vpack.c.b16 %v1260, %v1259
      %v1401 = vpack.c.b16 %v1262, %v1261
      %v1402 = vpack.c.b16 %v1264, %v1263
      %v1403 = vpack.c.b16 %v1266, %v1265
      %v1404 = vpack.c.b16 %v1268, %v1267
      %v1405 = vpack.c.b16 %v1270, %v1269
      %v1406 = vpack.c.b16 %v1272, %v1271
      %v1407 = vpack.c.b16 %v1274, %v1273
      %v1408 = vpack.c.b16 %v1276, %v1275
      %v1409 = vpack.c.b16 %v1278, %v1277
      %v1410 = vpack.c.b16 %v1280, %v1279
      %v1411 = vpack.c.b16 %v1282, %v1281
      %v1412 = vpack.c.b16 %v1284, %v1283
      %v1413 = vpack.c.b16 %v1286, %v1285
      %v1414 = vpack.c.b16 %v1288, %v1287
      %v1415 = vpack.c.b16 %v1290, %v1289
      %v1416 = vpack.c.b16 %v1292, %v1291
      %v1417 = vpack.c.b16 %v1294, %v1293
      %v1418 = vpack.c.b16 %v1296, %v1295
      %v1419 = vpack.c.b16 %v1298, %v1297
      %v1420 = vpack.c.b16 %v1300, %v1299
      %v1421 = vpack.c.b16 %v1302, %v1301
      %v1422 = vpack.c.b16 %v1304, %v1303
      %v1423 = vpack.c.b16 %v1306, %v1305
      %v1424 = vpack.c.b16 %v1308, %v1307
      %v1425 = vpack.c.b16 %v1310, %v1309
      %v1426 = vpack.c.b16 %v1312, %v1311
      %v1427 = vpack.c.b16 %v1314, %v1313
      %v1428 = vpack.c.b16 %v1316, %v1315
      %v1429 = vpack.c.b16 %v1318, %v1317
      %v1430 = vpack.c.b16 %v1320, %v1319
      %v1431 = vpack.c.b16 %v1322, %v1321
      %v1432 = vpack.c.b16 %v1324, %v1323
      %v1433 = vpack.c.b16 %v1326, %v1325
      %v1434 = vpack.c.b16 %v1328, %v1327
      %v1435 = vpack.c.b16 %v1330, %v1329
      %v1436 = vpack.c.b16 %v1332, %v1331
      %v1437 = vpack.c.b16 %v1334, %v1333
      %v1438 = vpack.c.b16 %v1336, %v1335
      %v1439 = vpack.c.b16 %v1338, %v1337
      %v1440 = vpack.c.b16 %v1340, %v1339
      %v1441 = vpack.c.b16 %v1342, %v1341
      %v1442 = vpack.c.b16 %v1344, %v1343
      %v1443 = vpack.c.b16 %v1346, %v1345
      %v1444 = vpack.c.b16 %v1348, %v1347
      %v1445 = vpack.c.b16 %v1350, %v1349
      %v1446 = vpack.c.b16 %v1352, %v1351
      %v1447 = vpack.c.b16 %v1354, %v1353
      %v1448 = vpack.c.b16 %v1356, %v1355
      %v1449 = vpack.c.b16 %v1358, %v1357
      %v1450 = vpack.c.b16 %v1360, %v1359
      %v1451 = vpack.c.b16 %v1362, %v1361
      %v1452 = vpack.c.b16 %v1364, %v1363
      %v1453 = vpack.c.b16 %v1366, %v1365
      %v1454 = vpack.c.b16 %v1368, %v1367
      %v1455 = vpack.c.b16 %v1370, %v1369
      %v1456 = vpack.c.b16 %v1372, %v1371
      %v1457 = vpack.c.b16 %v1374, %v1373
      %v1458 = vpack.c.b16 %v1376, %v1375
      %v1459 = vpack.c.b16 %v1378, %v1377
      %v1460 = vpack.c.b16 %v1380, %v1379
      %v1461 = vpack.c.b16 %v1382, %v1381
      %v1462 = vpack.c.b16 %v1384, %v1383
      %v1463 = vpack.c.b16 %v1386, %v1385
      %v1464 = vpack.c.b16 %v1388, %v1387
      %v1465 = vpack.c.b16 %v1390, %v1389
      %v1466 = vpack.c.b16 %v1392, %v1391
      %v1467 = vpack.c.b16 %v1394, %v1393
      %v1468 = vpack.c.b16 %v1396, %v1395
      %1541 = vmatprep.subr.bf16.mxu0 0
      %1542 = vmatpush1.bf16.msra.mxu0 %v1397
      %1543 = vmatprep.subr.bf16.mxu0 0
      %1544 = vmatpush1.bf16.msra.mxu0 %v1398
      %1545 = vmatprep.subr.bf16.mxu0 0
      %1546 = vmatpush1.bf16.msra.mxu0 %v1399
      %1547 = vmatprep.subr.bf16.mxu0 0
      %1548 = vmatpush1.bf16.msra.mxu0 %v1400
      %1549 = vmatprep.subr.bf16.mxu0 0
      %1550 = vmatpush1.bf16.msra.mxu0 %v1401
      %1551 = vmatprep.subr.bf16.mxu0 0
      %1552 = vmatpush1.bf16.msra.mxu0 %v1402
      %1553 = vmatprep.subr.bf16.mxu0 0
      %1554 = vmatpush1.bf16.msra.mxu0 %v1403
      %1555 = vmatprep.subr.bf16.mxu0 0
      %1556 = vmatpush1.bf16.msra.mxu0 %v1404
      %1557 = vmatprep.subr.bf16.mxu0 0
      %1558 = vmatpush1.bf16.msra.mxu0 %v1405
      %1559 = vmatprep.subr.bf16.mxu0 0
      %1560 = vmatpush1.bf16.msra.mxu0 %v1406
      %1561 = vmatprep.subr.bf16.mxu0 0
      %1562 = vmatpush1.bf16.msra.mxu0 %v1407
      %1563 = vmatprep.subr.bf16.mxu0 0
      %1564 = vmatpush1.bf16.msra.mxu0 %v1408
      %1565 = vmatprep.subr.bf16.mxu0 0
      %1566 = vmatpush1.bf16.msra.mxu0 %v1409
      %1567 = vmatprep.subr.bf16.mxu0 0
      %1568 = vmatpush1.bf16.msra.mxu0 %v1410
      %1569 = vmatprep.subr.bf16.mxu0 0
      %1570 = vmatpush1.bf16.msra.mxu0 %v1411
      %1571 = vmatprep.subr.bf16.mxu0 0
      %1572 = vmatpush1.bf16.msra.mxu0 %v1412
      %1573 = vmatprep.mubr.bf16.mxu0 %v633
      %1574 = vmatmul.mubr.bf16.gmra.mrb[0].mxu0 %v585
      %v1575 = vpop.f32.mrb[0].mxu0
      %v1576 = vadd.f32 0.0, %v1575
      %v1577 = vpop.f32.mrb[0].mxu0
      %v1578 = vpop.f32.mrb[0].mxu0
      %v1579 = vadd.f32 0.0, %v1578
      %v1580 = vpop.f32.mrb[0].mxu0
      %1581 = vmatprep.mubr.bf16.mxu0 %v645
      %1582 = vmatmul.mubr.bf16.gmra.mrb[0].mxu0 %v587
      %v1583 = vpop.f32.mrb[0].mxu0
      %v1584 = vadd.f32 0.0, %v1583
      %v1585 = vpop.f32.mrb[0].mxu0
      %v1586 = vpop.f32.mrb[0].mxu0
      %v1587 = vadd.f32 0.0, %v1586
      %v1588 = vpop.f32.mrb[0].mxu0
      %1589 = vmatprep.mubr.bf16.mxu0 %v657
      %1590 = vmatmul.mubr.bf16.gmra.mrb[0].mxu0 %v589
      %v1591 = vpop.f32.mrb[0].mxu0
      %v1592 = vadd.f32 0.0, %v1591
      %v1593 = vpop.f32.mrb[0].mxu0
      %v1594 = vpop.f32.mrb[0].mxu0
      %v1595 = vadd.f32 0.0, %v1594
      %v1596 = vpop.f32.mrb[0].mxu0
      %1597 = vmatprep.mubr.bf16.mxu0 %v669
      %1598 = vmatmul.mubr.bf16.gmra.mrb[0].mxu0 %v591
      %v1599 = vpop.f32.mrb[0].mxu0
      %v1600 = vadd.f32 0.0, %v1599
      %v1601 = vpop.f32.mrb[0].mxu0
      %v1602 = vpop.f32.mrb[0].mxu0
      %v1603 = vadd.f32 0.0, %v1602
      %v1604 = vpop.f32.mrb[0].mxu0
      %1605 = vmatprep.mubr.bf16.mxu0 %v681
      %1606 = vmatmul.mubr.bf16.gmra.mrb[0].mxu0 %v593
      %v1607 = vpop.f32.mrb[0].mxu0
      %v1608 = vadd.f32 0.0, %v1607
      %v1609 = vpop.f32.mrb[0].mxu0
      %v1610 = vpop.f32.mrb[0].mxu0
      %v1611 = vadd.f32 0.0, %v1610
      %v1612 = vpop.f32.mrb[0].mxu0
      %1613 = vmatprep.mubr.bf16.mxu0 %v693
      %1614 = vmatmul.mubr.bf16.gmra.mrb[0].mxu0 %v595
      %v1615 = vpop.f32.mrb[0].mxu0
      %v1616 = vadd.f32 0.0, %v1615
      %v1617 = vpop.f32.mrb[0].mxu0
      %v1618 = vpop.f32.mrb[0].mxu0
      %v1619 = vadd.f32 0.0, %v1618
      %v1620 = vpop.f32.mrb[0].mxu0
      %1621 = vmatprep.mubr.bf16.mxu0 %v705
      %1622 = vmatmul.mubr.bf16.gmra.mrb[0].mxu0 %v597
      %v1623 = vpop.f32.mrb[0].mxu0
      %v1624 = vadd.f32 0.0, %v1623
      %v1625 = vpop.f32.mrb[0].mxu0
      %v1626 = vpop.f32.mrb[0].mxu0
      %v1627 = vadd.f32 0.0, %v1626
      %v1628 = vpop.f32.mrb[0].mxu0
      %1629 = vmatprep.mubr.bf16.mxu0 %v717
      %1630 = vmatmul.mubr.bf16.gmra.mrb[0].mxu0 %v599
      %v1631 = vpop.f32.mrb[0].mxu0
      %v1632 = vadd.f32 0.0, %v1631
      %v1633 = vpop.f32.mrb[0].mxu0
      %v1634 = vpop.f32.mrb[0].mxu0
      %v1635 = vadd.f32 0.0, %v1634
      %v1636 = vpop.f32.mrb[0].mxu0
      %1637 = vmatprep.mubr.bf16.mxu0 %v729
      %1638 = vmatmul.mubr.bf16.gmra.mrb[0].mxu0 %v601
      %v1639 = vpop.f32.mrb[0].mxu0
      %v1640 = vadd.f32 0.0, %v1639
      %v1641 = vpop.f32.mrb[0].mxu0
      %v1642 = vpop.f32.mrb[0].mxu0
      %v1643 = vadd.f32 0.0, %v1642
      %v1644 = vpop.f32.mrb[0].mxu0
      %1645 = vmatprep.mubr.bf16.mxu0 %v741
      %1646 = vmatmul.mubr.bf16.gmra.mrb[0].mxu0 %v603
      %v1647 = vpop.f32.mrb[0].mxu0
      %v1648 = vadd.f32 0.0, %v1647
      %v1649 = vpop.f32.mrb[0].mxu0
      %v1650 = vpop.f32.mrb[0].mxu0
      %v1651 = vadd.f32 0.0, %v1650
      %v1652 = vpop.f32.mrb[0].mxu0
      %1653 = vmatprep.mubr.bf16.mxu0 %v753
      %1654 = vmatmul.mubr.bf16.gmra.mrb[0].mxu0 %v605
      %v1655 = vpop.f32.mrb[0].mxu0
      %v1656 = vadd.f32 0.0, %v1655
      %v1657 = vpop.f32.mrb[0].mxu0
      %v1658 = vpop.f32.mrb[0].mxu0
      %v1659 = vadd.f32 0.0, %v1658
      %v1660 = vpop.f32.mrb[0].mxu0
      %1661 = vmatprep.mubr.bf16.mxu0 %v765
      %1662 = vmatmul.mubr.bf16.gmra.mrb[0].mxu0 %v607
      %v1663 = vpop.f32.mrb[0].mxu0
      %v1664 = vadd.f32 0.0, %v1663
      %v1665 = vpop.f32.mrb[0].mxu0
      %v1666 = vpop.f32.mrb[0].mxu0
      %v1667 = vadd.f32 0.0, %v1666
      %v1668 = vpop.f32.mrb[0].mxu0
      %1669 = vmatprep.mubr.bf16.mxu0 %v777
      %1670 = vmatmul.mubr.bf16.gmra.mrb[0].mxu0 %v609
      %v1671 = vpop.f32.mrb[0].mxu0
      %v1672 = vadd.f32 0.0, %v1671
      %v1673 = vpop.f32.mrb[0].mxu0
      %v1674 = vpop.f32.mrb[0].mxu0
      %v1675 = vadd.f32 0.0, %v1674
      %v1676 = vpop.f32.mrb[0].mxu0
      %1677 = vmatprep.mubr.bf16.mxu0 %v789
      %1678 = vmatmul.mubr.bf16.gmra.mrb[0].mxu0 %v611
      %v1679 = vpop.f32.mrb[0].mxu0
      %v1680 = vadd.f32 0.0, %v1679
      %v1681 = vpop.f32.mrb[0].mxu0
      %v1682 = vpop.f32.mrb[0].mxu0
      %v1683 = vadd.f32 0.0, %v1682
      %v1684 = vpop.f32.mrb[0].mxu0
      %1685 = vmatprep.mubr.bf16.mxu0 %v801
      %1686 = vmatmul.mubr.bf16.gmra.mrb[0].mxu0 %v613
      %v1687 = vpop.f32.mrb[0].mxu0
      %v1688 = vadd.f32 0.0, %v1687
      %v1689 = vpop.f32.mrb[0].mxu0
      %v1690 = vpop.f32.mrb[0].mxu0
      %v1691 = vadd.f32 0.0, %v1690
      %v1692 = vpop.f32.mrb[0].mxu0
      %1693 = vmatprep.mubr.bf16.mxu0 %v813
      %1694 = vmatmul.mubr.bf16.gmra.mrb[0].mxu0 %v615
      %v1695 = vpop.f32.mrb[0].mxu0
      %v1696 = vadd.f32 0.0, %v1695
      %v1697 = vpop.f32.mrb[0].mxu0
      %v1698 = vpop.f32.mrb[0].mxu0
      %v1699 = vadd.f32 0.0, %v1698
      %v1700 = vpop.f32.mrb[0].mxu0
      %1701 = vdwg.mxu0
      %1702 = vmatprep.subr.bf16.mxu0 0
      %1703 = vmatpush1.bf16.msra.mxu0 %v1413
      %1704 = vmatprep.subr.bf16.mxu0 0
      %1705 = vmatpush1.bf16.msra.mxu0 %v1414
      %1706 = vmatprep.subr.bf16.mxu0 0
      %1707 = vmatpush1.bf16.msra.mxu0 %v1415
      %1708 = vmatprep.subr.bf16.mxu0 0
      %1709 = vmatpush1.bf16.msra.mxu0 %v1416
      %1710 = vmatprep.subr.bf16.mxu0 0
      %1711 = vmatpush1.bf16.msra.mxu0 %v1417
      %1712 = vmatprep.subr.bf16.mxu0 0
      %1713 = vmatpush1.bf16.msra.mxu0 %v1418
      %1714 = vmatprep.subr.bf16.mxu0 0
      %1715 = vmatpush1.bf16.msra.mxu0 %v1419
      %1716 = vmatprep.subr.bf16.mxu0 0
      %1717 = vmatpush1.bf16.msra.mxu0 %v1420
      %1718 = vmatprep.subr.bf16.mxu0 0
      %1719 = vmatpush1.bf16.msra.mxu0 %v1421
      %1720 = vmatprep.subr.bf16.mxu0 0
      %1721 = vmatpush1.bf16.msra.mxu0 %v1422
      %1722 = vmatprep.subr.bf16.mxu0 0
      %1723 = vmatpush1.bf16.msra.mxu0 %v1423
      %1724 = vmatprep.subr.bf16.mxu0 0
      %1725 = vmatpush1.bf16.msra.mxu0 %v1424
      %1726 = vmatprep.subr.bf16.mxu0 0
      %1727 = vmatpush1.bf16.msra.mxu0 %v1425
      %1728 = vmatprep.subr.bf16.mxu0 0
      %1729 = vmatpush1.bf16.msra.mxu0 %v1426
      %1730 = vmatprep.subr.bf16.mxu0 0
      %1731 = vmatpush1.bf16.msra.mxu0 %v1427
      %1732 = vmatprep.subr.bf16.mxu0 0
      %1733 = vmatpush1.bf16.msra.mxu0 %v1428
      %1734 = vmatprep.mubr.bf16.mxu0 %v587
      %1735 = vmatmul.mubr.bf16.gmra.mrb[0].mxu0 %v865
      %v1736 = vpop.f32.mrb[0].mxu0
      %v1737 = vadd.f32 %v1576, %v1736
      %v1738 = vpop.f32.mrb[0].mxu0
      %v1739 = vpop.f32.mrb[0].mxu0
      %v1740 = vadd.f32 %v1579, %v1739
      %v1741 = vpop.f32.mrb[0].mxu0
      %1742 = vmatprep.mubr.bf16.mxu0 %v589
      %1743 = vmatmul.mubr.bf16.gmra.mrb[0].mxu0 %v868
      %v1744 = vpop.f32.mrb[0].mxu0
      %v1745 = vadd.f32 %v1584, %v1744
      %v1746 = vpop.f32.mrb[0].mxu0
      %v1747 = vpop.f32.mrb[0].mxu0
      %v1748 = vadd.f32 %v1587, %v1747
      %v1749 = vpop.f32.mrb[0].mxu0
      %1750 = vmatprep.mubr.bf16.mxu0 %v591
      %1751 = vmatmul.mubr.bf16.gmra.mrb[0].mxu0 %v871
      %v1752 = vpop.f32.mrb[0].mxu0
      %v1753 = vadd.f32 %v1592, %v1752
      %v1754 = vpop.f32.mrb[0].mxu0
      %v1755 = vpop.f32.mrb[0].mxu0
      %v1756 = vadd.f32 %v1595, %v1755
      %v1757 = vpop.f32.mrb[0].mxu0
      %1758 = vmatprep.mubr.bf16.mxu0 %v593
      %1759 = vmatmul.mubr.bf16.gmra.mrb[0].mxu0 %v874
      %v1760 = vpop.f32.mrb[0].mxu0
      %v1761 = vadd.f32 %v1600, %v1760
      %v1762 = vpop.f32.mrb[0].mxu0
      %v1763 = vpop.f32.mrb[0].mxu0
      %v1764 = vadd.f32 %v1603, %v1763
      %v1765 = vpop.f32.mrb[0].mxu0
      %1766 = vmatprep.mubr.bf16.mxu0 %v595
      %1767 = vmatmul.mubr.bf16.gmra.mrb[0].mxu0 %v877
      %v1768 = vpop.f32.mrb[0].mxu0
      %v1769 = vadd.f32 %v1608, %v1768
      %v1770 = vpop.f32.mrb[0].mxu0
      %v1771 = vpop.f32.mrb[0].mxu0
      %v1772 = vadd.f32 %v1611, %v1771
      %v1773 = vpop.f32.mrb[0].mxu0
      %1774 = vmatprep.mubr.bf16.mxu0 %v597
      %1775 = vmatmul.mubr.bf16.gmra.mrb[0].mxu0 %v880
      %v1776 = vpop.f32.mrb[0].mxu0
      %v1777 = vadd.f32 %v1616, %v1776
      %v1778 = vpop.f32.mrb[0].mxu0
      %v1779 = vpop.f32.mrb[0].mxu0
      %v1780 = vadd.f32 %v1619, %v1779
      %v1781 = vpop.f32.mrb[0].mxu0
      %1782 = vmatprep.mubr.bf16.mxu0 %v599
      %1783 = vmatmul.mubr.bf16.gmra.mrb[0].mxu0 %v883
      %v1784 = vpop.f32.mrb[0].mxu0
      %v1785 = vadd.f32 %v1624, %v1784
      %v1786 = vpop.f32.mrb[0].mxu0
      %v1787 = vpop.f32.mrb[0].mxu0
      %v1788 = vadd.f32 %v1627, %v1787
      %v1789 = vpop.f32.mrb[0].mxu0
      %1790 = vmatprep.mubr.bf16.mxu0 %v601
      %1791 = vmatmul.mubr.bf16.gmra.mrb[0].mxu0 %v886
      %v1792 = vpop.f32.mrb[0].mxu0
      %v1793 = vadd.f32 %v1632, %v1792
      %v1794 = vpop.f32.mrb[0].mxu0
      %v1795 = vpop.f32.mrb[0].mxu0
      %v1796 = vadd.f32 %v1635, %v1795
      %v1797 = vpop.f32.mrb[0].mxu0
      %1798 = vmatprep.mubr.bf16.mxu0 %v603
      %1799 = vmatmul.mubr.bf16.gmra.mrb[0].mxu0 %v889
      %v1800 = vpop.f32.mrb[0].mxu0
      %v1801 = vadd.f32 %v1640, %v1800
      %v1802 = vpop.f32.mrb[0].mxu0
      %v1803 = vpop.f32.mrb[0].mxu0
      %v1804 = vadd.f32 %v1643, %v1803
      %v1805 = vpop.f32.mrb[0].mxu0
      %1806 = vmatprep.mubr.bf16.mxu0 %v605
      %1807 = vmatmul.mubr.bf16.gmra.mrb[0].mxu0 %v892
      %v1808 = vpop.f32.mrb[0].mxu0
      %v1809 = vadd.f32 %v1648, %v1808
      %v1810 = vpop.f32.mrb[0].mxu0
      %v1811 = vpop.f32.mrb[0].mxu0
      %v1812 = vadd.f32 %v1651, %v1811
      %v1813 = vpop.f32.mrb[0].mxu0
      %1814 = vmatprep.mubr.bf16.mxu0 %v607
      %1815 = vmatmul.mubr.bf16.gmra.mrb[0].mxu0 %v895
      %v1816 = vpop.f32.mrb[0].mxu0
      %v1817 = vadd.f32 %v1656, %v1816
      %v1818 = vpop.f32.mrb[0].mxu0
      %v1819 = vpop.f32.mrb[0].mxu0
      %v1820 = vadd.f32 %v1659, %v1819
      %v1821 = vpop.f32.mrb[0].mxu0
      %1822 = vmatprep.mubr.bf16.mxu0 %v609
      %1823 = vmatmul.mubr.bf16.gmra.mrb[0].mxu0 %v898
      %v1824 = vpop.f32.mrb[0].mxu0
      %v1825 = vadd.f32 %v1664, %v1824
      %v1826 = vpop.f32.mrb[0].mxu0
      %v1827 = vpop.f32.mrb[0].mxu0
      %v1828 = vadd.f32 %v1667, %v1827
      %v1829 = vpop.f32.mrb[0].mxu0
      %1830 = vmatprep.mubr.bf16.mxu0 %v611
      %1831 = vmatmul.mubr.bf16.gmra.mrb[0].mxu0 %v901
      %v1832 = vpop.f32.mrb[0].mxu0
      %v1833 = vadd.f32 %v1672, %v1832
      %v1834 = vpop.f32.mrb[0].mxu0
      %v1835 = vpop.f32.mrb[0].mxu0
      %v1836 = vadd.f32 %v1675, %v1835
      %v1837 = vpop.f32.mrb[0].mxu0
      %1838 = vmatprep.mubr.bf16.mxu0 %v613
      %1839 = vmatmul.mubr.bf16.gmra.mrb[0].mxu0 %v904
      %v1840 = vpop.f32.mrb[0].mxu0
      %v1841 = vadd.f32 %v1680, %v1840
      %v1842 = vpop.f32.mrb[0].mxu0
      %v1843 = vpop.f32.mrb[0].mxu0
      %v1844 = vadd.f32 %v1683, %v1843
      %v1845 = vpop.f32.mrb[0].mxu0
      %1846 = vmatprep.mubr.bf16.mxu0 %v615
      %1847 = vmatmul.mubr.bf16.gmra.mrb[0].mxu0 %v907
      %v1848 = vpop.f32.mrb[0].mxu0
      %v1849 = vadd.f32 %v1688, %v1848
      %v1850 = vpop.f32.mrb[0].mxu0
      %v1851 = vpop.f32.mrb[0].mxu0
      %v1852 = vadd.f32 %v1691, %v1851
      %v1853 = vpop.f32.mrb[0].mxu0
      %1854 = vmatprep.mubr.bf16.mxu0 %v617
      %1855 = vmatmul.mubr.bf16.gmra.mrb[0].mxu0 %v910
      %v1856 = vpop.f32.mrb[0].mxu0
      %v1857 = vadd.f32 %v1696, %v1856
      %v1858 = vpop.f32.mrb[0].mxu0
      %v1859 = vpop.f32.mrb[0].mxu0
      %v1860 = vadd.f32 %v1699, %v1859
      %v1861 = vpop.f32.mrb[0].mxu0
      %1862 = vdwg.mxu0
      %1863 = vmatprep.subr.bf16.mxu0 0
      %1864 = vmatpush1.bf16.msra.mxu0 %v1429
      %1865 = vmatprep.subr.bf16.mxu0 0
      %1866 = vmatpush1.bf16.msra.mxu0 %v1430
      %1867 = vmatprep.subr.bf16.mxu0 0
      %1868 = vmatpush1.bf16.msra.mxu0 %v1431
      %1869 = vmatprep.subr.bf16.mxu0 0
      %1870 = vmatpush1.bf16.msra.mxu0 %v1432
      %1871 = vmatprep.subr.bf16.mxu0 0
      %1872 = vmatpush1.bf16.msra.mxu0 %v1433
      %1873 = vmatprep.subr.bf16.mxu0 0
      %1874 = vmatpush1.bf16.msra.mxu0 %v1434
      %1875 = vmatprep.subr.bf16.mxu0 0
      %1876 = vmatpush1.bf16.msra.mxu0 %v1435
      %1877 = vmatprep.subr.bf16.mxu0 0
      %1878 = vmatpush1.bf16.msra.mxu0 %v1436
      %1879 = vmatprep.subr.bf16.mxu0 0
      %1880 = vmatpush1.bf16.msra.mxu0 %v1437
      %1881 = vmatprep.subr.bf16.mxu0 0
      %1882 = vmatpush1.bf16.msra.mxu0 %v1438
      %1883 = vmatprep.subr.bf16.mxu0 0
      %1884 = vmatpush1.bf16.msra.mxu0 %v1439
      %1885 = vmatprep.subr.bf16.mxu0 0
      %1886 = vmatpush1.bf16.msra.mxu0 %v1440
      %1887 = vmatprep.subr.bf16.mxu0 0
      %1888 = vmatpush1.bf16.msra.mxu0 %v1441
      %1889 = vmatprep.subr.bf16.mxu0 0
      %1890 = vmatpush1.bf16.msra.mxu0 %v1442
      %1891 = vmatprep.subr.bf16.mxu0 0
      %1892 = vmatpush1.bf16.msra.mxu0 %v1443
      %1893 = vmatprep.subr.bf16.mxu0 0
      %1894 = vmatpush1.bf16.msra.mxu0 %v1444
      %1895 = vmatprep.mubr.bf16.mxu0 %v868
      %1896 = vmatmul.mubr.bf16.gmra.mrb[0].mxu0 %v645
      %v1897 = vpop.f32.mrb[0].mxu0
      %v1898 = vadd.f32 %v1737, %v1897
      %v1899 = vpop.f32.mrb[0].mxu0
      %v1900 = vpop.f32.mrb[0].mxu0
      %v1901 = vadd.f32 %v1740, %v1900
      %v1902 = vpop.f32.mrb[0].mxu0
      %1903 = vmatprep.mubr.bf16.mxu0 %v871
      %1904 = vmatmul.mubr.bf16.gmra.mrb[0].mxu0 %v657
      %v1905 = vpop.f32.mrb[0].mxu0
      %v1906 = vadd.f32 %v1745, %v1905
      %v1907 = vpop.f32.mrb[0].mxu0
      %v1908 = vpop.f32.mrb[0].mxu0
      %v1909 = vadd.f32 %v1748, %v1908
      %v1910 = vpop.f32.mrb[0].mxu0
      %1911 = vmatprep.mubr.bf16.mxu0 %v874
      %1912 = vmatmul.mubr.bf16.gmra.mrb[0].mxu0 %v669
      %v1913 = vpop.f32.mrb[0].mxu0
      %v1914 = vadd.f32 %v1753, %v1913
      %v1915 = vpop.f32.mrb[0].mxu0
      %v1916 = vpop.f32.mrb[0].mxu0
      %v1917 = vadd.f32 %v1756, %v1916
      %v1918 = vpop.f32.mrb[0].mxu0
      %1919 = vmatprep.mubr.bf16.mxu0 %v877
      %1920 = vmatmul.mubr.bf16.gmra.mrb[0].mxu0 %v681
      %v1921 = vpop.f32.mrb[0].mxu0
      %v1922 = vadd.f32 %v1761, %v1921
      %v1923 = vpop.f32.mrb[0].mxu0
      %v1924 = vpop.f32.mrb[0].mxu0
      %v1925 = vadd.f32 %v1764, %v1924
      %v1926 = vpop.f32.mrb[0].mxu0
      %1927 = vmatprep.mubr.bf16.mxu0 %v880
      %1928 = vmatmul.mubr.bf16.gmra.mrb[0].mxu0 %v693
      %v1929 = vpop.f32.mrb[0].mxu0
      %v1930 = vadd.f32 %v1769, %v1929
      %v1931 = vpop.f32.mrb[0].mxu0
      %v1932 = vpop.f32.mrb[0].mxu0
      %v1933 = vadd.f32 %v1772, %v1932
      %v1934 = vpop.f32.mrb[0].mxu0
      %1935 = vmatprep.mubr.bf16.mxu0 %v883
      %1936 = vmatmul.mubr.bf16.gmra.mrb[0].mxu0 %v705
      %v1937 = vpop.f32.mrb[0].mxu0
      %v1938 = vadd.f32 %v1777, %v1937
      %v1939 = vpop.f32.mrb[0].mxu0
      %v1940 = vpop.f32.mrb[0].mxu0
      %v1941 = vadd.f32 %v1780, %v1940
      %v1942 = vpop.f32.mrb[0].mxu0
      %1943 = vmatprep.mubr.bf16.mxu0 %v886
      %1944 = vmatmul.mubr.bf16.gmra.mrb[0].mxu0 %v717
      %v1945 = vpop.f32.mrb[0].mxu0
      %v1946 = vadd.f32 %v1785, %v1945
      %v1947 = vpop.f32.mrb[0].mxu0
      %v1948 = vpop.f32.mrb[0].mxu0
      %v1949 = vadd.f32 %v1788, %v1948
      %v1950 = vpop.f32.mrb[0].mxu0
      %1951 = vmatprep.mubr.bf16.mxu0 %v889
      %1952 = vmatmul.mubr.bf16.gmra.mrb[0].mxu0 %v729
      %v1953 = vpop.f32.mrb[0].mxu0
      %v1954 = vadd.f32 %v1793, %v1953
      %v1955 = vpop.f32.mrb[0].mxu0
      %v1956 = vpop.f32.mrb[0].mxu0
      %v1957 = vadd.f32 %v1796, %v1956
      %v1958 = vpop.f32.mrb[0].mxu0
      %1959 = vmatprep.mubr.bf16.mxu0 %v892
      %1960 = vmatmul.mubr.bf16.gmra.mrb[0].mxu0 %v741
      %v1961 = vpop.f32.mrb[0].mxu0
      %v1962 = vadd.f32 %v1801, %v1961
      %v1963 = vpop.f32.mrb[0].mxu0
      %v1964 = vpop.f32.mrb[0].mxu0
      %v1965 = vadd.f32 %v1804, %v1964
      %v1966 = vpop.f32.mrb[0].mxu0
      %1967 = vmatprep.mubr.bf16.mxu0 %v895
      %1968 = vmatmul.mubr.bf16.gmra.mrb[0].mxu0 %v753
      %v1969 = vpop.f32.mrb[0].mxu0
      %v1970 = vadd.f32 %v1809, %v1969
      %v1971 = vpop.f32.mrb[0].mxu0
      %v1972 = vpop.f32.mrb[0].mxu0
      %v1973 = vadd.f32 %v1812, %v1972
      %v1974 = vpop.f32.mrb[0].mxu0
      %1975 = vmatprep.mubr.bf16.mxu0 %v898
      %1976 = vmatmul.mubr.bf16.gmra.mrb[0].mxu0 %v765
      %v1977 = vpop.f32.mrb[0].mxu0
      %v1978 = vadd.f32 %v1817, %v1977
      %v1979 = vpop.f32.mrb[0].mxu0
      %v1980 = vpop.f32.mrb[0].mxu0
      %v1981 = vadd.f32 %v1820, %v1980
      %v1982 = vpop.f32.mrb[0].mxu0
      %1983 = vmatprep.mubr.bf16.mxu0 %v901
      %1984 = vmatmul.mubr.bf16.gmra.mrb[0].mxu0 %v777
      %v1985 = vpop.f32.mrb[0].mxu0
      %v1986 = vadd.f32 %v1825, %v1985
      %v1987 = vpop.f32.mrb[0].mxu0
      %v1988 = vpop.f32.mrb[0].mxu0
      %v1989 = vadd.f32 %v1828, %v1988
      %v1990 = vpop.f32.mrb[0].mxu0
      %1991 = vmatprep.mubr.bf16.mxu0 %v904
      %1992 = vmatmul.mubr.bf16.gmra.mrb[0].mxu0 %v789
      %v1993 = vpop.f32.mrb[0].mxu0
      %v1994 = vadd.f32 %v1833, %v1993
      %v1995 = vpop.f32.mrb[0].mxu0
      %v1996 = vpop.f32.mrb[0].mxu0
      %v1997 = vadd.f32 %v1836, %v1996
      %v1998 = vpop.f32.mrb[0].mxu0
      %1999 = vmatprep.mubr.bf16.mxu0 %v907
      %2000 = vmatmul.mubr.bf16.gmra.mrb[0].mxu0 %v801
      %v2001 = vpop.f32.mrb[0].mxu0
      %v2002 = vadd.f32 %v1841, %v2001
      %v2003 = vpop.f32.mrb[0].mxu0
      %v2004 = vpop.f32.mrb[0].mxu0
      %v2005 = vadd.f32 %v1844, %v2004
      %v2006 = vpop.f32.mrb[0].mxu0
      %2007 = vmatprep.mubr.bf16.mxu0 %v910
      %2008 = vmatmul.mubr.bf16.gmra.mrb[0].mxu0 %v813
      %v2009 = vpop.f32.mrb[0].mxu0
      %v2010 = vadd.f32 %v1849, %v2009
      %v2011 = vpop.f32.mrb[0].mxu0
      %v2012 = vpop.f32.mrb[0].mxu0
      %v2013 = vadd.f32 %v1852, %v2012
      %v2014 = vpop.f32.mrb[0].mxu0
      %2015 = vmatprep.mubr.bf16.mxu0 %v944
      %2016 = vmatmul.mubr.bf16.gmra.mrb[0].mxu0 %v938
      %v2017 = vpop.f32.mrb[0].mxu0
      %v2018 = vadd.f32 %v1857, %v2017
      %v2019 = vpop.f32.mrb[0].mxu0
      %v2020 = vpop.f32.mrb[0].mxu0
      %v2021 = vadd.f32 %v1860, %v2020
      %v2022 = vpop.f32.mrb[0].mxu0
      %2023 = vdwg.mxu0
      %2024 = vmatprep.subr.bf16.mxu0 0
      %2025 = vmatpush1.bf16.msra.mxu0 %v1445
      %2026 = vmatprep.subr.bf16.mxu0 0
      %2027 = vmatpush1.bf16.msra.mxu0 %v1446
      %2028 = vmatprep.subr.bf16.mxu0 0
      %2029 = vmatpush1.bf16.msra.mxu0 %v1447
      %2030 = vmatprep.subr.bf16.mxu0 0
      %2031 = vmatpush1.bf16.msra.mxu0 %v1448
      %2032 = vmatprep.subr.bf16.mxu0 0
      %2033 = vmatpush1.bf16.msra.mxu0 %v1449
      %2034 = vmatprep.subr.bf16.mxu0 0
      %2035 = vmatpush1.bf16.msra.mxu0 %v1450
      %2036 = vmatprep.subr.bf16.mxu0 0
      %2037 = vmatpush1.bf16.msra.mxu0 %v1451
      %2038 = vmatprep.subr.bf16.mxu0 0
      %2039 = vmatpush1.bf16.msra.mxu0 %v1452
      %2040 = vmatprep.subr.bf16.mxu0 0
      %2041 = vmatpush1.bf16.msra.mxu0 %v1453
      %2042 = vmatprep.subr.bf16.mxu0 0
      %2043 = vmatpush1.bf16.msra.mxu0 %v1454
      %2044 = vmatprep.subr.bf16.mxu0 0
      %2045 = vmatpush1.bf16.msra.mxu0 %v1455
      %2046 = vmatprep.subr.bf16.mxu0 0
      %2047 = vmatpush1.bf16.msra.mxu0 %v1456
      %2048 = vmatprep.subr.bf16.mxu0 0
      %2049 = vmatpush1.bf16.msra.mxu0 %v1457
      %2050 = vmatprep.subr.bf16.mxu0 0
      %2051 = vmatpush1.bf16.msra.mxu0 %v1458
      %2052 = vmatprep.subr.bf16.mxu0 0
      %2053 = vmatpush1.bf16.msra.mxu0 %v1459
      %2054 = vmatprep.subr.bf16.mxu0 0
      %2055 = vmatpush1.bf16.msra.mxu0 %v1460
      %2056 = vmatprep.mubr.bf16.mxu0 %v657
      %2057 = vmatmul.mubr.bf16.gmra.mrb[0].mxu0 %v589
      %v2058 = vpop.f32.mrb[0].mxu0
      %v2059 = vadd.f32 %v1898, %v2058
      %v2060 = vpop.f32.mrb[0].mxu0
      %v2061 = vpop.f32.mrb[0].mxu0
      %v2062 = vadd.f32 %v1901, %v2061
      %v2063 = vpop.f32.mrb[0].mxu0
      %2064 = vmatprep.mubr.bf16.mxu0 %v669
      %2065 = vmatmul.mubr.bf16.gmra.mrb[0].mxu0 %v591
      %v2066 = vpop.f32.mrb[0].mxu0
      %v2067 = vadd.f32 %v1906, %v2066
      %v2068 = vpop.f32.mrb[0].mxu0
      %v2069 = vpop.f32.mrb[0].mxu0
      %v2070 = vadd.f32 %v1909, %v2069
      %v2071 = vpop.f32.mrb[0].mxu0
      %2072 = vmatprep.mubr.bf16.mxu0 %v681
      %2073 = vmatmul.mubr.bf16.gmra.mrb[0].mxu0 %v593
      %v2074 = vpop.f32.mrb[0].mxu0
      %v2075 = vadd.f32 %v1914, %v2074
      %v2076 = vpop.f32.mrb[0].mxu0
      %v2077 = vpop.f32.mrb[0].mxu0
      %v2078 = vadd.f32 %v1917, %v2077
      %v2079 = vpop.f32.mrb[0].mxu0
      %2080 = vmatprep.mubr.bf16.mxu0 %v693
      %2081 = vmatmul.mubr.bf16.gmra.mrb[0].mxu0 %v595
      %v2082 = vpop.f32.mrb[0].mxu0
      %v2083 = vadd.f32 %v1922, %v2082
      %v2084 = vpop.f32.mrb[0].mxu0
      %v2085 = vpop.f32.mrb[0].mxu0
      %v2086 = vadd.f32 %v1925, %v2085
      %v2087 = vpop.f32.mrb[0].mxu0
      %2088 = vmatprep.mubr.bf16.mxu0 %v705
      %2089 = vmatmul.mubr.bf16.gmra.mrb[0].mxu0 %v597
      %v2090 = vpop.f32.mrb[0].mxu0
      %v2091 = vadd.f32 %v1930, %v2090
      %v2092 = vpop.f32.mrb[0].mxu0
      %v2093 = vpop.f32.mrb[0].mxu0
      %v2094 = vadd.f32 %v1933, %v2093
      %v2095 = vpop.f32.mrb[0].mxu0
      %2096 = vmatprep.mubr.bf16.mxu0 %v717
      %2097 = vmatmul.mubr.bf16.gmra.mrb[0].mxu0 %v599
      %v2098 = vpop.f32.mrb[0].mxu0
      %v2099 = vadd.f32 %v1938, %v2098
      %v2100 = vpop.f32.mrb[0].mxu0
      %v2101 = vpop.f32.mrb[0].mxu0
      %v2102 = vadd.f32 %v1941, %v2101
      %v2103 = vpop.f32.mrb[0].mxu0
      %2104 = vmatprep.mubr.bf16.mxu0 %v729
      %2105 = vmatmul.mubr.bf16.gmra.mrb[0].mxu0 %v601
      %v2106 = vpop.f32.mrb[0].mxu0
      %v2107 = vadd.f32 %v1946, %v2106
      %v2108 = vpop.f32.mrb[0].mxu0
      %v2109 = vpop.f32.mrb[0].mxu0
      %v2110 = vadd.f32 %v1949, %v2109
      %v2111 = vpop.f32.mrb[0].mxu0
      %2112 = vmatprep.mubr.bf16.mxu0 %v741
      %2113 = vmatmul.mubr.bf16.gmra.mrb[0].mxu0 %v603
      %v2114 = vpop.f32.mrb[0].mxu0
      %v2115 = vadd.f32 %v1954, %v2114
      %v2116 = vpop.f32.mrb[0].mxu0
      %v2117 = vpop.f32.mrb[0].mxu0
      %v2118 = vadd.f32 %v1957, %v2117
      %v2119 = vpop.f32.mrb[0].mxu0
      %2120 = vmatprep.mubr.bf16.mxu0 %v753
      %2121 = vmatmul.mubr.bf16.gmra.mrb[0].mxu0 %v605
      %v2122 = vpop.f32.mrb[0].mxu0
      %v2123 = vadd.f32 %v1962, %v2122
      %v2124 = vpop.f32.mrb[0].mxu0
      %v2125 = vpop.f32.mrb[0].mxu0
      %v2126 = vadd.f32 %v1965, %v2125
      %v2127 = vpop.f32.mrb[0].mxu0
      %2128 = vmatprep.mubr.bf16.mxu0 %v765
      %2129 = vmatmul.mubr.bf16.gmra.mrb[0].mxu0 %v607
      %v2130 = vpop.f32.mrb[0].mxu0
      %v2131 = vadd.f32 %v1970, %v2130
      %v2132 = vpop.f32.mrb[0].mxu0
      %v2133 = vpop.f32.mrb[0].mxu0
      %v2134 = vadd.f32 %v1973, %v2133
      %v2135 = vpop.f32.mrb[0].mxu0
      %2136 = vmatprep.mubr.bf16.mxu0 %v777
      %2137 = vmatmul.mubr.bf16.gmra.mrb[0].mxu0 %v609
      %v2138 = vpop.f32.mrb[0].mxu0
      %v2139 = vadd.f32 %v1978, %v2138
      %v2140 = vpop.f32.mrb[0].mxu0
      %v2141 = vpop.f32.mrb[0].mxu0
      %v2142 = vadd.f32 %v1981, %v2141
      %v2143 = vpop.f32.mrb[0].mxu0
      %2144 = vmatprep.mubr.bf16.mxu0 %v789
      %2145 = vmatmul.mubr.bf16.gmra.mrb[0].mxu0 %v611
      %v2146 = vpop.f32.mrb[0].mxu0
      %v2147 = vadd.f32 %v1986, %v2146
      %v2148 = vpop.f32.mrb[0].mxu0
      %v2149 = vpop.f32.mrb[0].mxu0
      %v2150 = vadd.f32 %v1989, %v2149
      %v2151 = vpop.f32.mrb[0].mxu0
      %2152 = vmatprep.mubr.bf16.mxu0 %v801
      %2153 = vmatmul.mubr.bf16.gmra.mrb[0].mxu0 %v613
      %v2154 = vpop.f32.mrb[0].mxu0
      %v2155 = vadd.f32 %v1994, %v2154
      %v2156 = vpop.f32.mrb[0].mxu0
      %v2157 = vpop.f32.mrb[0].mxu0
      %v2158 = vadd.f32 %v1997, %v2157
      %v2159 = vpop.f32.mrb[0].mxu0
      %2160 = vmatprep.mubr.bf16.mxu0 %v813
      %2161 = vmatmul.mubr.bf16.gmra.mrb[0].mxu0 %v615
      %v2162 = vpop.f32.mrb[0].mxu0
      %v2163 = vadd.f32 %v2002, %v2162
      %v2164 = vpop.f32.mrb[0].mxu0
      %v2165 = vpop.f32.mrb[0].mxu0
      %v2166 = vadd.f32 %v2005, %v2165
      %v2167 = vpop.f32.mrb[0].mxu0
      %2168 = vmatprep.mubr.bf16.mxu0 %v938
      %2169 = vmatmul.mubr.bf16.gmra.mrb[0].mxu0 %v617
      %v2170 = vpop.f32.mrb[0].mxu0
      %v2171 = vadd.f32 %v2010, %v2170
      %v2172 = vpop.f32.mrb[0].mxu0
      %v2173 = vpop.f32.mrb[0].mxu0
      %v2174 = vadd.f32 %v2013, %v2173
      %v2175 = vpop.f32.mrb[0].mxu0
      %2176 = vmatprep.mubr.bf16.mxu0 %v957
      %2177 = vmatmul.mubr.bf16.gmra.mrb[0].mxu0 %v619
      %v2178 = vpop.f32.mrb[0].mxu0
      %v2179 = vadd.f32 %v2018, %v2178
      %v2180 = vpop.f32.mrb[0].mxu0
      %v2181 = vpop.f32.mrb[0].mxu0
      %v2182 = vadd.f32 %v2021, %v2181
      %v2183 = vpop.f32.mrb[0].mxu0
      %2184 = vdwg.mxu0
      %2185 = vmatprep.subr.bf16.mxu0 0
      %2186 = vmatpush1.bf16.msra.mxu0 %v1461
      %2187 = vmatprep.subr.bf16.mxu0 0
      %2188 = vmatpush1.bf16.msra.mxu0 %v1462
      %2189 = vmatprep.subr.bf16.mxu0 0
      %2190 = vmatpush1.bf16.msra.mxu0 %v1463
      %2191 = vmatprep.subr.bf16.mxu0 0
      %2192 = vmatpush1.bf16.msra.mxu0 %v1464
      %2193 = vmatprep.subr.bf16.mxu0 0
      %2194 = vmatpush1.bf16.msra.mxu0 %v1465
      %2195 = vmatprep.subr.bf16.mxu0 0
      %2196 = vmatpush1.bf16.msra.mxu0 %v1466
      %2197 = vmatprep.subr.bf16.mxu0 0
      %2198 = vmatpush1.bf16.msra.mxu0 %v1467
      %2199 = vmatprep.subr.bf16.mxu0 0
      %2200 = vmatpush1.bf16.msra.mxu0 %v1468
      %2201 = vmatprep.subr.bf16.mxu0 0
      %2202 = vmatpush1.bf16.msra.mxu0 0
      %2203 = vmatprep.subr.bf16.mxu0 0
      %2204 = vmatpush1.bf16.msra.mxu0 0
      %2205 = vmatprep.subr.bf16.mxu0 0
      %2206 = vmatpush1.bf16.msra.mxu0 0
      %2207 = vmatprep.subr.bf16.mxu0 0
      %2208 = vmatpush1.bf16.msra.mxu0 0
      %2209 = vmatprep.subr.bf16.mxu0 0
      %2210 = vmatpush1.bf16.msra.mxu0 0
      %2211 = vmatprep.subr.bf16.mxu0 0
      %2212 = vmatpush1.bf16.msra.mxu0 0
      %2213 = vmatprep.subr.bf16.mxu0 0
      %2214 = vmatpush1.bf16.msra.mxu0 0
      %2215 = vmatprep.subr.bf16.mxu0 0
      %2216 = vmatpush1.bf16.msra.mxu0 0
      %2217 = vmatprep.mubr.bf16.mxu0 0
      %2218 = vmatmul.mubr.bf16.gmra.mrb[0].mxu0 %v871
      %v2219 = vpop.f32.mrb[0].mxu0
      %v2220 = vadd.f32 %v2059, %v2219
      %v2221 = vpop.f32.mrb[0].mxu0
      %v2222 = vpop.f32.mrb[0].mxu0
      %v2223 = vadd.f32 %v2062, %v2222
      %v2224 = vpop.f32.mrb[0].mxu0
      %2225 = vmatprep.mubr.bf16.mxu0 0
      %2226 = vmatmul.mubr.bf16.gmra.mrb[0].mxu0 %v874
      %v2227 = vpop.f32.mrb[0].mxu0
      %v2228 = vadd.f32 %v2067, %v2227
      %v2229 = vpop.f32.mrb[0].mxu0
      %v2230 = vpop.f32.mrb[0].mxu0
      %v2231 = vadd.f32 %v2070, %v2230
      %v2232 = vpop.f32.mrb[0].mxu0
      %2233 = vmatprep.mubr.bf16.mxu0 0
      %2234 = vmatmul.mubr.bf16.gmra.mrb[0].mxu0 %v877
      %v2235 = vpop.f32.mrb[0].mxu0
      %v2236 = vadd.f32 %v2075, %v2235
      %v2237 = vpop.f32.mrb[0].mxu0
      %v2238 = vpop.f32.mrb[0].mxu0
      %v2239 = vadd.f32 %v2078, %v2238
      %v2240 = vpop.f32.mrb[0].mxu0
      %2241 = vmatprep.mubr.bf16.mxu0 0
      %2242 = vmatmul.mubr.bf16.gmra.mrb[0].mxu0 %v880
      %v2243 = vpop.f32.mrb[0].mxu0
      %v2244 = vadd.f32 %v2083, %v2243
      %v2245 = vpop.f32.mrb[0].mxu0
      %v2246 = vpop.f32.mrb[0].mxu0
      %v2247 = vadd.f32 %v2086, %v2246
      %v2248 = vpop.f32.mrb[0].mxu0
      %2249 = vmatprep.mubr.bf16.mxu0 0
      %2250 = vmatmul.mubr.bf16.gmra.mrb[0].mxu0 %v883
      %v2251 = vpop.f32.mrb[0].mxu0
      %v2252 = vadd.f32 %v2091, %v2251
      %v2253 = vpop.f32.mrb[0].mxu0
      %v2254 = vpop.f32.mrb[0].mxu0
      %v2255 = vadd.f32 %v2094, %v2254
      %v2256 = vpop.f32.mrb[0].mxu0
      %2257 = vmatprep.mubr.bf16.mxu0 0
      %2258 = vmatmul.mubr.bf16.gmra.mrb[0].mxu0 %v886
      %v2259 = vpop.f32.mrb[0].mxu0
      %v2260 = vadd.f32 %v2099, %v2259
      %v2261 = vpop.f32.mrb[0].mxu0
      %v2262 = vpop.f32.mrb[0].mxu0
      %v2263 = vadd.f32 %v2102, %v2262
      %v2264 = vpop.f32.mrb[0].mxu0
      %2265 = vmatprep.mubr.bf16.mxu0 0
      %2266 = vmatmul.mubr.bf16.gmra.mrb[0].mxu0 %v889
      %v2267 = vpop.f32.mrb[0].mxu0
      %v2268 = vadd.f32 %v2107, %v2267
      %v2269 = vpop.f32.mrb[0].mxu0
      %v2270 = vpop.f32.mrb[0].mxu0
      %v2271 = vadd.f32 %v2110, %v2270
      %v2272 = vpop.f32.mrb[0].mxu0
      %2273 = vmatprep.mubr.bf16.mxu0 0
      %2274 = vmatmul.mubr.bf16.gmra.mrb[0].mxu0 %v892
      %v2275 = vpop.f32.mrb[0].mxu0
      %v2276 = vadd.f32 %v2115, %v2275
      %v2277 = vpop.f32.mrb[0].mxu0
      %v2278 = vpop.f32.mrb[0].mxu0
      %v2279 = vadd.f32 %v2118, %v2278
      %v2280 = vpop.f32.mrb[0].mxu0
      %2281 = vmatprep.mubr.bf16.mxu0 0
      %2282 = vmatmul.mubr.bf16.gmra.mrb[0].mxu0 %v895
      %v2283 = vpop.f32.mrb[0].mxu0
      %v2284 = vadd.f32 %v2123, %v2283
      %v2285 = vpop.f32.mrb[0].mxu0
      %v2286 = vpop.f32.mrb[0].mxu0
      %v2287 = vadd.f32 %v2126, %v2286
      %v2288 = vpop.f32.mrb[0].mxu0
      %2289 = vmatprep.mubr.bf16.mxu0 0
      %2290 = vmatmul.mubr.bf16.gmra.mrb[0].mxu0 %v898
      %v2291 = vpop.f32.mrb[0].mxu0
      %v2292 = vadd.f32 %v2131, %v2291
      %v2293 = vpop.f32.mrb[0].mxu0
      %v2294 = vpop.f32.mrb[0].mxu0
      %v2295 = vadd.f32 %v2134, %v2294
      %v2296 = vpop.f32.mrb[0].mxu0
      %2297 = vmatprep.mubr.bf16.mxu0 0
      %2298 = vmatmul.mubr.bf16.gmra.mrb[0].mxu0 %v901
      %v2299 = vpop.f32.mrb[0].mxu0
      %v2300 = vadd.f32 %v2139, %v2299
      %v2301 = vpop.f32.mrb[0].mxu0
      %v2302 = vpop.f32.mrb[0].mxu0
      %v2303 = vadd.f32 %v2142, %v2302
      %v2304 = vpop.f32.mrb[0].mxu0
      %2305 = vmatprep.mubr.bf16.mxu0 0
      %2306 = vmatmul.mubr.bf16.gmra.mrb[0].mxu0 %v904
      %v2307 = vpop.f32.mrb[0].mxu0
      %v2308 = vadd.f32 %v2147, %v2307
      %v2309 = vpop.f32.mrb[0].mxu0
      %v2310 = vpop.f32.mrb[0].mxu0
      %v2311 = vadd.f32 %v2150, %v2310
      %v2312 = vpop.f32.mrb[0].mxu0
      %2313 = vmatprep.mubr.bf16.mxu0 0
      %2314 = vmatmul.mubr.bf16.gmra.mrb[0].mxu0 %v907
      %v2315 = vpop.f32.mrb[0].mxu0
      %v2316 = vadd.f32 %v2155, %v2315
      %v2317 = vpop.f32.mrb[0].mxu0
      %v2318 = vpop.f32.mrb[0].mxu0
      %v2319 = vadd.f32 %v2158, %v2318
      %v2320 = vpop.f32.mrb[0].mxu0
      %2321 = vmatprep.mubr.bf16.mxu0 0
      %2322 = vmatmul.mubr.bf16.gmra.mrb[0].mxu0 %v910
      %v2323 = vpop.f32.mrb[0].mxu0
      %v2324 = vadd.f32 %v2163, %v2323
      %v2325 = vpop.f32.mrb[0].mxu0
      %v2326 = vpop.f32.mrb[0].mxu0
      %v2327 = vadd.f32 %v2166, %v2326
      %v2328 = vpop.f32.mrb[0].mxu0
      %2329 = vmatprep.mubr.bf16.mxu0 0
      %2330 = vmatmul.mubr.bf16.gmra.mrb[0].mxu0 %v944
      %v2331 = vpop.f32.mrb[0].mxu0
      %v2332 = vadd.f32 %v2171, %v2331
      %v2333 = vpop.f32.mrb[0].mxu0
      %v2334 = vpop.f32.mrb[0].mxu0
      %v2335 = vadd.f32 %v2174, %v2334
      %v2336 = vpop.f32.mrb[0].mxu0
      %2337 = vmatprep.mubr.bf16.mxu0 0
      %2338 = vmatmul.mubr.bf16.gmra.mrb[0].mxu0 %v963
      %v2339 = vpop.f32.mrb[0].mxu0
      %v2340 = vadd.f32 %v2179, %v2339
      %v2341 = vpop.f32.mrb[0].mxu0
      %v2342 = vpop.f32.mrb[0].mxu0
      %v2343 = vadd.f32 %v2182, %v2342
      %v2344 = vpop.f32.mrb[0].mxu0
      %2345 = vdwg.mxu0
      %v2346 = vadd.f32 %v2220, %v2223
      %v2347 = vadd.f32 %v2346, %v2228
      %v2348 = vadd.f32 %v2347, %v2231
      %v2349 = vadd.f32 %v2348, %v2236
      %v2350 = vadd.f32 %v2349, %v2239
      %v2351 = vadd.f32 %v2350, %v2244
      %v2352 = vadd.f32 %v2351, %v2247
      %v2353 = vadd.f32 %v2352, %v2252
      %v2354 = vadd.f32 %v2353, %v2255
      %v2355 = vadd.f32 %v2354, %v2260
      %v2356 = vadd.f32 %v2355, %v2263
      %v2357 = vadd.f32 %v2356, %v2268
      %v2358 = vadd.f32 %v2357, %v2271
      %v2359 = vadd.f32 %v2358, %v2276
      %v2360 = vadd.f32 %v2359, %v2279
      %v2361 = vadd.f32 %v2360, %v2284
      %v2362 = vadd.f32 %v2361, %v2287
      %v2363 = vadd.f32 %v2362, %v2292
      %v2364 = vadd.f32 %v2363, %v2295
      %v2365 = vadd.f32 %v2364, %v2300
      %v2366 = vadd.f32 %v2365, %v2303
      %v2367 = vadd.f32 %v2366, %v2308
      %v2368 = vadd.f32 %v2367, %v2311
      %v2369 = vadd.f32 %v2368, %v2316
      %v2370 = vadd.f32 %v2369, %v2319
      %v2371 = vadd.f32 %v2370, %v2324
      %v2372 = vadd.f32 %v2371, %v2327
      %v2373 = vadd.f32 %v2372, %v2332
      %v2374 = vadd.f32 %v2373, %v2335
      %v2375 = vadd.f32 %v2374, %v2340
      %v2376 = vadd.f32 %v2375, %v2343
      %v2377 = vrot.slane %v2376, 4
      %v2378 = vadd.f32 %v2376, %v2377
      %v2379 = vrot.slane %v2378, 2
      %v2380 = vadd.f32 %v2378, %v2379
      %v2381 = vrot.slane %v2380, 1
      %v2382 = vadd.f32 %v2380, %v2381
      %2383 = vst [vmem:[%s265] sm:$0x1] %v2382
      %v2384 = vmul.f32 %v2220, %v2220
      %v2385 = vmul.f32 %v2223, %v2223
      %v2386 = vmul.f32 %v2228, %v2228
      %v2387 = vmul.f32 %v2231, %v2231
      %v2388 = vmul.f32 %v2236, %v2236
      %v2389 = vmul.f32 %v2239, %v2239
      %v2390 = vmul.f32 %v2244, %v2244
      %v2391 = vmul.f32 %v2247, %v2247
      %v2392 = vmul.f32 %v2252, %v2252
      %v2393 = vmul.f32 %v2255, %v2255
      %v2394 = vmul.f32 %v2260, %v2260
      %v2395 = vmul.f32 %v2263, %v2263
      %v2396 = vmul.f32 %v2268, %v2268
      %v2397 = vmul.f32 %v2271, %v2271
      %v2398 = vmul.f32 %v2276, %v2276
      %v2399 = vmul.f32 %v2279, %v2279
      %v2400 = vmul.f32 %v2284, %v2284
      %v2401 = vmul.f32 %v2287, %v2287
      %v2402 = vmul.f32 %v2292, %v2292
      %v2403 = vmul.f32 %v2295, %v2295
      %v2404 = vmul.f32 %v2300, %v2300
      %v2405 = vmul.f32 %v2303, %v2303
      %v2406 = vmul.f32 %v2308, %v2308
      %v2407 = vmul.f32 %v2311, %v2311
      %v2408 = vmul.f32 %v2316, %v2316
      %v2409 = vmul.f32 %v2319, %v2319
      %v2410 = vmul.f32 %v2324, %v2324
      %v2411 = vmul.f32 %v2327, %v2327
      %v2412 = vmul.f32 %v2332, %v2332
      %v2413 = vmul.f32 %v2335, %v2335
      %v2414 = vmul.f32 %v2340, %v2340
      %v2415 = vmul.f32 %v2343, %v2343
      %v2416 = vadd.f32 %v2384, %v2385
      %v2417 = vadd.f32 %v2416, %v2386
      %v2418 = vadd.f32 %v2417, %v2387
      %v2419 = vadd.f32 %v2418, %v2388
      %v2420 = vadd.f32 %v2419, %v2389
      %v2421 = vadd.f32 %v2420, %v2390
      %v2422 = vadd.f32 %v2421, %v2391
      %v2423 = vadd.f32 %v2422, %v2392
      %v2424 = vadd.f32 %v2423, %v2393
      %v2425 = vadd.f32 %v2424, %v2394
      %v2426 = vadd.f32 %v2425, %v2395
      %v2427 = vadd.f32 %v2426, %v2396
      %v2428 = vadd.f32 %v2427, %v2397
      %v2429 = vadd.f32 %v2428, %v2398
      %v2430 = vadd.f32 %v2429, %v2399
      %v2431 = vadd.f32 %v2430, %v2400
      %v2432 = vadd.f32 %v2431, %v2401
      %v2433 = vadd.f32 %v2432, %v2402
      %v2434 = vadd.f32 %v2433, %v2403
      %v2435 = vadd.f32 %v2434, %v2404
      %v2436 = vadd.f32 %v2435, %v2405
      %v2437 = vadd.f32 %v2436, %v2406
      %v2438 = vadd.f32 %v2437, %v2407
      %v2439 = vadd.f32 %v2438, %v2408
      %v2440 = vadd.f32 %v2439, %v2409
      %v2441 = vadd.f32 %v2440, %v2410
      %v2442 = vadd.f32 %v2441, %v2411
      %v2443 = vadd.f32 %v2442, %v2412
      %v2444 = vadd.f32 %v2443, %v2413
      %v2445 = vadd.f32 %v2444, %v2414
      %v2446 = vadd.f32 %v2445, %v2415
      %v2447 = vrot.slane %v2446, 4
      %v2448 = vadd.f32 %v2446, %v2447
      %v2449 = vrot.slane %v2448, 2
      %v2450 = vadd.f32 %v2448, %v2449
      %v2451 = vrot.slane %v2450, 1
      %v2452 = vadd.f32 %v2450, %v2451
      %2453 = vst [vmem:[%s268] sm:$0x1] %v2452
      %2454 = vxpose.xlu0.b32.start [1/16] %v2220, 128
      %2455 = vxpose.xlu0.b32.cont [2/16] %v2223, 128
      %2456 = vxpose.xlu0.b32.cont [3/16] %v2228, 128
      %2457 = vxpose.xlu0.b32.cont [4/16] %v2231, 128
      %2458 = vxpose.xlu0.b32.cont [5/16] %v2236, 128
      %2459 = vxpose.xlu0.b32.cont [6/16] %v2239, 128
      %2460 = vxpose.xlu0.b32.cont [7/16] %v2244, 128
      %2461 = vxpose.xlu0.b32.cont [8/16] %v2247, 128
      %2462 = vxpose.xlu0.b32.cont [9/16] %v2252, 128
      %2463 = vxpose.xlu0.b32.cont [10/16] %v2255, 128
      %2464 = vxpose.xlu0.b32.cont [11/16] %v2260, 128
      %2465 = vxpose.xlu0.b32.cont [12/16] %v2263, 128
      %2466 = vxpose.xlu0.b32.cont [13/16] %v2268, 128
      %2467 = vxpose.xlu0.b32.cont [14/16] %v2271, 128
      %2468 = vxpose.xlu0.b32.cont [15/16] %v2276, 128
      %2469 = vxpose.xlu0.b32.end [16/16] %v2279, 128
      %v2470 = vpop.trf.xlu0
      %v2471 = vpop.trf.xlu0
      %v2472 = vpop.trf.xlu0
      %v2473 = vpop.trf.xlu0
      %v2474 = vpop.trf.xlu0
      %v2475 = vpop.trf.xlu0
      %v2476 = vpop.trf.xlu0
      %v2477 = vpop.trf.xlu0
      %v2478 = vpop.trf.xlu0
      %v2479 = vpop.trf.xlu0
      %v2480 = vpop.trf.xlu0
      %v2481 = vpop.trf.xlu0
      %v2482 = vpop.trf.xlu0
      %v2483 = vpop.trf.xlu0
      %v2484 = vpop.trf.xlu0
      %v2485 = vpop.trf.xlu0
      %2486 = vxpose.xlu0.b32.start [1/16] %v2284, 128
      %2487 = vxpose.xlu0.b32.cont [2/16] %v2287, 128
      %2488 = vxpose.xlu0.b32.cont [3/16] %v2292, 128
      %2489 = vxpose.xlu0.b32.cont [4/16] %v2295, 128
      %2490 = vxpose.xlu0.b32.cont [5/16] %v2300, 128
      %2491 = vxpose.xlu0.b32.cont [6/16] %v2303, 128
      %2492 = vxpose.xlu0.b32.cont [7/16] %v2308, 128
      %2493 = vxpose.xlu0.b32.cont [8/16] %v2311, 128
      %2494 = vxpose.xlu0.b32.cont [9/16] %v2316, 128
      %2495 = vxpose.xlu0.b32.cont [10/16] %v2319, 128
      %2496 = vxpose.xlu0.b32.cont [11/16] %v2324, 128
      %2497 = vxpose.xlu0.b32.cont [12/16] %v2327, 128
      %2498 = vxpose.xlu0.b32.cont [13/16] %v2332, 128
      %2499 = vxpose.xlu0.b32.cont [14/16] %v2335, 128
      %2500 = vxpose.xlu0.b32.cont [15/16] %v2340, 128
      %2501 = vxpose.xlu0.b32.end [16/16] %v2343, 128
      %v2502 = vpop.trf.xlu0
      %v2503 = vpop.trf.xlu0
      %v2504 = vpop.trf.xlu0
      %v2505 = vpop.trf.xlu0
      %v2506 = vpop.trf.xlu0
      %v2507 = vpop.trf.xlu0
      %v2508 = vpop.trf.xlu0
      %v2509 = vpop.trf.xlu0
      %v2510 = vpop.trf.xlu0
      %v2511 = vpop.trf.xlu0
      %v2512 = vpop.trf.xlu0
      %v2513 = vpop.trf.xlu0
      %v2514 = vpop.trf.xlu0
      %v2515 = vpop.trf.xlu0
      %v2516 = vpop.trf.xlu0
      %v2517 = vpop.trf.xlu0
      %v2518 = vpack.c.bf16 %v2471, %v2470
      %v2519 = vpack.c.bf16 %v2503, %v2502
      %v2520 = vpack.c.bf16 %v2473, %v2472
      %v2521 = vpack.c.bf16 %v2505, %v2504
      %v2522 = vpack.c.bf16 %v2475, %v2474
      %v2523 = vpack.c.bf16 %v2507, %v2506
      %v2524 = vpack.c.bf16 %v2477, %v2476
      %v2525 = vpack.c.bf16 %v2509, %v2508
      %v2526 = vpack.c.bf16 %v2479, %v2478
      %v2527 = vpack.c.bf16 %v2511, %v2510
      %v2528 = vpack.c.bf16 %v2481, %v2480
      %v2529 = vpack.c.bf16 %v2513, %v2512
      %v2530 = vpack.c.bf16 %v2483, %v2482
      %v2531 = vpack.c.bf16 %v2515, %v2514
      %v2532 = vpack.c.bf16 %v2485, %v2484
      %v2533 = vpack.c.bf16 %v2517, %v2516
      %v2550 = vunpack.c.l.b16 %v2518
      %v2551 = vunpack.c.l.b16 %v2519
      %v2552 = vunpack.c.h.b16 %v2518
      %v2553 = vunpack.c.h.b16 %v2519
      %v2554 = vunpack.c.l.b16 %v2520
      %v2555 = vunpack.c.l.b16 %v2521
      %v2556 = vunpack.c.h.b16 %v2520
      %v2557 = vunpack.c.h.b16 %v2521
      %v2558 = vunpack.c.l.b16 %v2522
      %v2559 = vunpack.c.l.b16 %v2523
      %v2560 = vunpack.c.h.b16 %v2522
      %v2561 = vunpack.c.h.b16 %v2523
      %v2562 = vunpack.c.l.b16 %v2524
      %v2563 = vunpack.c.l.b16 %v2525
      %v2564 = vunpack.c.h.b16 %v2524
      %v2565 = vunpack.c.h.b16 %v2525
      %v2566 = vunpack.c.l.b16 %v2526
      %v2567 = vunpack.c.l.b16 %v2527
      %v2568 = vunpack.c.h.b16 %v2526
      %v2569 = vunpack.c.h.b16 %v2527
      %v2570 = vunpack.c.l.b16 %v2528
      %v2571 = vunpack.c.l.b16 %v2529
      %v2572 = vunpack.c.h.b16 %v2528
      %v2573 = vunpack.c.h.b16 %v2529
      %v2574 = vunpack.c.l.b16 %v2530
      %v2575 = vunpack.c.l.b16 %v2531
      %v2576 = vunpack.c.h.b16 %v2530
      %v2577 = vunpack.c.h.b16 %v2531
      %v2578 = vunpack.c.l.b16 %v2532
      %v2579 = vunpack.c.l.b16 %v2533
      %v2580 = vunpack.c.h.b16 %v2532
      %v2581 = vunpack.c.h.b16 %v2533
      %v2582 = vpack.c.b16 %v2551, %v2550
      %v2583 = vpack.c.b16 %v2553, %v2552
      %v2584 = vpack.c.b16 %v2555, %v2554
      %v2585 = vpack.c.b16 %v2557, %v2556
      %v2586 = vpack.c.b16 %v2559, %v2558
      %v2587 = vpack.c.b16 %v2561, %v2560
      %v2588 = vpack.c.b16 %v2563, %v2562
      %v2589 = vpack.c.b16 %v2565, %v2564
      %v2590 = vpack.c.b16 %v2567, %v2566
      %v2591 = vpack.c.b16 %v2569, %v2568
      %v2592 = vpack.c.b16 %v2571, %v2570
      %v2593 = vpack.c.b16 %v2573, %v2572
      %v2594 = vpack.c.b16 %v2575, %v2574
      %v2595 = vpack.c.b16 %v2577, %v2576
      %v2596 = vpack.c.b16 %v2579, %v2578
      %v2597 = vpack.c.b16 %v2581, %v2580
      %2614 = vst [vmem:[%s262] sm:$0xff] %v2582
      %2615 = vst [vmem:[%s262 + $0x8] sm:$0xff] %v2583
      %2616 = vst [vmem:[%s262 + $0x10] sm:$0xff] %v2584
      %2617 = vst [vmem:[%s262 + $0x18] sm:$0xff] %v2585
      %2618 = vst [vmem:[%s262 + $0x20] sm:$0xff] %v2586
      %2619 = vst [vmem:[%s262 + $0x28] sm:$0xff] %v2587
      %2620 = vst [vmem:[%s262 + $0x30] sm:$0xff] %v2588
      %2621 = vst [vmem:[%s262 + $0x38] sm:$0xff] %v2589
      %2622 = vst [vmem:[%s262 + $0x40] sm:$0xff] %v2590
      %2623 = vst [vmem:[%s262 + $0x48] sm:$0xff] %v2591
      %2624 = vst [vmem:[%s262 + $0x50] sm:$0xff] %v2592
      %2625 = vst [vmem:[%s262 + $0x58] sm:$0xff] %v2593
      %2626 = vst [vmem:[%s262 + $0x60] sm:$0xff] %v2594
      %2627 = vst [vmem:[%s262 + $0x68] sm:$0xff] %v2595
      %2628 = vst [vmem:[%s262 + $0x70] sm:$0xff] %v2596
      %2629 = vst [vmem:[%s262 + $0x78] sm:$0xff] %v2597
      %p2630 = scmp.lt.s32.totalorder %s18, 1
      %s2631 = scalar_select %p2630, %s18, 1
      %s2632 = smul.addr %s2631, 32
      %s2633 = smul.addr %s2632, 4
      %s2634 = scalar_lea.vmem %s4, %s2633
      %p2635 = scmp.lt.s32.totalorder %s18, 1
      %s2636 = scalar_select %p2635, %s18, 1
      %s2637 = scalar_lea.vmem %s5, %s2636
      %p2638 = scmp.lt.s32.totalorder %s18, 1
      %s2639 = scalar_select %p2638, %s18, 1
      %s2640 = scalar_lea.vmem %s6, %s2639
      // Predicated region
      $region37: #{residual_block_forward.4} parent=35 // pred_check
        %p2641 = pneg %p125
      $region38: #{residual_block_forward.4} parent=35 // pred_check_branch
        %2643 = sbr.rel (%p2641) target = $region40
      $region39: #{residual_block_forward.4} parent=35 // pred_region
        _
      $region40: #{residual_block_forward.4} parent=35 // pred_fallthru
        _
      // Predicated region
      $region41: #{residual_block_forward.4} parent=35 // pred_check
        %p2644 = pneg %p151
      $region42: #{residual_block_forward.4} parent=35 // pred_check_branch
        %2646 = sbr.rel (%p2644) target = $region44
      $region43: #{residual_block_forward.4} parent=35 // pred_region
        _
      $region44: #{residual_block_forward.4} parent=35 // pred_fallthru
        _
      // Predicated region
      $region45: #{residual_block_forward.4} parent=35 // pred_check
        %p2647 = pneg %p177
      $region46: #{residual_block_forward.4} parent=35 // pred_check_branch
        %2649 = sbr.rel (%p2647) target = $region48
      $region47: #{residual_block_forward.4} parent=35 // pred_region
        _
      $region48: #{residual_block_forward.4} parent=35 // pred_fallthru
        _
    $region36: #{residual_block_forward.4} parent=5 // pred_fallthru
      _
    %p2650 = scmp.le.s32.totalorder 2, %s13
    // Predicated region
    $region49: #{residual_block_forward.4} parent=5 // pred_check
      %p2651 = pneg %p2650
    $region50: #{residual_block_forward.4} parent=5 // pred_check_branch
      %2653 = sbr.rel (%p2651) target = $region52
    $region51: #{residual_block_forward.4} parent=5 // pred_region
      %s2654 = ssub.s32 %s13, 2
      // Predicated region
      $region53: #{residual_block_forward.4} parent=51 // pred_check
        %p2655 = pneg %p131
      $region54: #{residual_block_forward.4} parent=51 // pred_check_branch
        %2657 = sbr.rel (%p2655) target = $region56
      $region55: #{residual_block_forward.4} parent=51 // pred_region
        %p2658 = scmp.lt.s32.totalorder %s19, 1
        %s2659 = scalar_select %p2658, %s19, 1
        %s2660 = smul.addr %s2659, 32
        %s2661 = smul.addr %s2660, 4
        %s2662 = scalar_lea.vmem %s4, %s2661
      $region56: #{residual_block_forward.4} parent=51 // pred_fallthru
        _
      // Predicated region
      $region57: #{residual_block_forward.4} parent=51 // pred_check
        %p2663 = pneg %p157
      $region58: #{residual_block_forward.4} parent=51 // pred_check_branch
        %2665 = sbr.rel (%p2663) target = $region60
      $region59: #{residual_block_forward.4} parent=51 // pred_region
        %p2666 = scmp.lt.s32.totalorder %s19, 1
        %s2667 = scalar_select %p2666, %s19, 1
        %s2668 = scalar_lea.vmem %s5, %s2667
      $region60: #{residual_block_forward.4} parent=51 // pred_fallthru
        _
      // Predicated region
      $region61: #{residual_block_forward.4} parent=51 // pred_check
        %p2669 = pneg %p183
      $region62: #{residual_block_forward.4} parent=51 // pred_check_branch
        %2671 = sbr.rel (%p2669) target = $region64
      $region63: #{residual_block_forward.4} parent=51 // pred_region
        %p2672 = scmp.lt.s32.totalorder %s19, 1
        %s2673 = scalar_select %p2672, %s19, 1
        %s2674 = scalar_lea.vmem %s6, %s2673
      $region64: #{residual_block_forward.4} parent=51 // pred_fallthru
        _
    $region52: #{residual_block_forward.4} parent=5 // pred_fallthru
      _
  $region6: #{residual_block_forward.4} parent=0 // loop_footer
    %s17 = sadd.s32 1, %s13
  $region7: #{residual_block_forward.4} parent=0 // loop_footer_branch
    %12 = sbr.rel target = $region3
  $region8: #{residual_block_forward.4} parent=0 // loop_exit
    _

</llo_original>
